<compile_context>
chip_gen: v5e
topology: v5e:2x2
jax: 0.10.0
libtpu: 0.0.40
codegen_flags: <defaults>
</compile_context>

<pallas_src>
import functools

import jax
import jax.numpy as jnp
from jax import lax
from jax.experimental import pallas as pl
from jax.experimental.pallas import tpu as pltpu


_COMPUTE_DTYPE = jnp.bfloat16            # MXU-native operands; accumulation is f32.
_VMEM_BUDGET_BYTES = 20 * 1024 * 1024    # per-step working-set target (fits v7x VMEM).
_VMEM_LIMIT_BYTES = 48 * 1024 * 1024     # explicit scoped-VMEM limit (< v7x 64 MiB).


def _round_up(x, m):
    return (x + m - 1) // m * m


def _pick_tile_h(H, W, C):
    """Choose the output-row tile (TILE_H) and padded slab width (Wp)."""
    wp = _round_up(W + 2, 16)  # multiple of 16 so the bf16 (rows, Wp, C) ->
                               # (rows*Wp, C) flatten is layout-preserving (free).
    # Bytes that scale with TILE_H (BlockSpec inputs/outputs are double-buffered).
    per_row = C * (4 * 2 * W          # f32 input block   (x2 buffers)
                   + 4 * 2 * W        # f32 output block  (x2 buffers)
                   + 2 * wp           # bf16 slab scratch
                   + 2 * wp           # bf16 shifted flat operand (live copy)
                   + 4 * wp)          # f32 accumulator
    fixed = (2 * 9 * C * C * 2        # bf16 weights (x2 buffers)
             + 2 * C * 4              # bias
             + 2 * 2 * 2 * W * C * 4)  # two 1-row halo blocks (x2 buffers)
    th = (_VMEM_BUDGET_BYTES - fixed) // max(per_row, 1)
    th = max(8, min((int(th) // 8) * 8, 1024))
    return min(th, H), wp


def _conv3x3_relu_kernel(xc_ref, xt_ref, xb_ref, w_ref, b_ref, o_ref, slab_ref, *, H):
    """One (batch element, row tile) step of relu(conv3x3_same(x)), NHWC."""
    TH, W, C = o_ref.shape[1], o_ref.shape[2], o_ref.shape[3]
    Wp = slab_ref.shape[1]
    cdt = slab_ref.dtype
    t = pl.program_id(1)

    # ------------------------------------------------------------------ slab --
    # slab rows:  0          guard (only its zeroed tail column is ever read)
    #             1          top halo    = input row t*TH - 1   (zero at border)
    #             2 .. TH+1  centre rows = input rows t*TH .. t*TH + TH - 1
    #             TH+2       bottom halo = input row t*TH + TH  (zero at border)
    #             TH+3       guard (feeds only discarded pad columns)
    # slab cols:  0 .. W-1 image columns, W .. Wp-1 zeros.  Once flattened, the
    # zero column Wp-1 of row r doubles as the *left* pad of row r+1.
    slab_ref[:, W:Wp, :] = jnp.zeros((TH + 4, Wp - W, C), cdt)

    centre = xc_ref[0]                                           # (TH, W, C) f32
    row_id = lax.broadcasted_iota(jnp.int32, (TH, 1, 1), 0)
    centre = jnp.where(t * TH + row_id < H, centre, 0.0)         # ragged last tile
    slab_ref[2:TH + 2, 0:W, :] = centre.astype(cdt)

    top = jnp.where(t > 0, xt_ref[0, 0], 0.0)                    # (W, C)
    slab_ref[1:2, 0:W, :] = top.astype(cdt)[None]

    bot = jnp.where(t * TH + TH < H, xb_ref[0, 0], 0.0)
    slab_ref[TH + 2:TH + 3, 0:W, :] = bot.astype(cdt)[None]

    # ---------------------------------------------------------------- 9 taps --
    # Layout-preserving flatten (Wp % 16 == 0): every tap is a static row-range
    # slice of `flat`; the dx != 0 shift is one cheap XLU sublane rotate shared
    # across the three dy taps (no strided-reshape VMEM copies).
    flat = slab_ref[...].reshape((TH + 4) * Wp, C)
    npix = TH * Wp
    bias = b_ref[...].astype(jnp.float32)                        # (1, C)
    acc = jnp.zeros((npix, C), jnp.float32)
    for kx in range(3):
        base = Wp + kx - 1
        shifted = flat[base:base + (TH + 2) * Wp, :]             # shared over dy
        for ky in range(3):
            lhs = shifted[ky * Wp:ky * Wp + npix, :]             # aligned: free
            acc = acc + jnp.dot(lhs, w_ref[ky, kx],
                                preferred_element_type=jnp.float32)
    acc = jnp.maximum(acc + bias, 0.0)                           # bias + ReLU epilogue
    o_ref[0] = acc.reshape(TH, Wp, C)[:, 0:W, :].astype(o_ref.dtype)


def _conv3x3_relu_nhwc(x_nhwc, w_hwio, bias2d):
    """relu(conv3x3 same)(x) for NHWC x; weights HWIO (bf16), bias (1, C) f32."""
    N, H, W, C = x_nhwc.shape
    TH, Wp = _pick_tile_h(H, W, C)
    T = pl.cdiv(H, TH)

    kernel = functools.partial(_conv3x3_relu_kernel, H=H)
    grid_spec = pltpu.PrefetchScalarGridSpec(
        num_scalar_prefetch=0,
        grid=(N, T),
        in_specs=[
            # centre rows of the tile
            pl.BlockSpec((1, TH, W, C), lambda n, t: (n, t, 0, 0)),
            # top / bottom halo rows (index clamped; masked to zero in-kernel)
            pl.BlockSpec((1, 1, W, C),
                         lambda n, t: (n, jnp.maximum(t * TH - 1, 0), 0, 0)),
            pl.BlockSpec((1, 1, W, C),
                         lambda n, t: (n, jnp.minimum((t + 1) * TH, H - 1), 0, 0)),
            pl.BlockSpec((3, 3, C, C), lambda n, t: (0, 0, 0, 0)),
            pl.BlockSpec((1, C), lambda n, t: (0, 0)),
        ],
        out_specs=pl.BlockSpec((1, TH, W, C), lambda n, t: (n, t, 0, 0)),
        scratch_shapes=[pltpu.VMEM((TH + 4, Wp, C), _COMPUTE_DTYPE)],
    )

    flops = 2 * 9 * N * H * W * C * C
    bytes_accessed = 2 * N * H * W * C * 4 + 9 * C * C * 2 + C * 4

    return pl.pallas_call(
        kernel,
        out_shape=jax.ShapeDtypeStruct((N, H, W, C), x_nhwc.dtype),
        grid_spec=grid_spec,
        compiler_params=pltpu.CompilerParams(
            dimension_semantics=("parallel", "parallel"),
            vmem_limit_bytes=_VMEM_LIMIT_BYTES),
        cost_estimate=pl.CostEstimate(flops=flops, transcendentals=0,
                                      bytes_accessed=bytes_accessed),
    )(x_nhwc, x_nhwc, x_nhwc, w_hwio, bias2d)


@jax.jit
def _forward_nchw(xs_nchw, w_hwio, bias2d):
    """All FPN levels inside one traced region so their work overlaps."""
    outs = []
    for z in xs_nchw:
        z_nhwc = jnp.transpose(z, (0, 2, 3, 1))
        y_nhwc = _conv3x3_relu_nhwc(z_nhwc, w_hwio, bias2d)
        outs.append(jnp.transpose(y_nhwc, (0, 3, 1, 2)))
    return tuple(outs)


class RPNHeadFeatureSingleConvPallas:
    """JAX/Pallas port of RPNHeadFeatureSingleConv (3x3 same conv + ReLU)."""

    def __init__(self, in_channels, key):
        # nn.Conv2d(in_channels, in_channels, 3, stride=1, padding=1),
        # normal_(weight, std=0.01), constant_(bias, 0).
        self.w_oihw = 0.01 * jax.random.normal(
            key, (in_channels, in_channels, 3, 3), dtype=jnp.float32)
        # OIHW -> HWIO, cast once to bf16 (MXU operands; accumulation stays f32).
        self.w_hwio = jnp.transpose(self.w_oihw, (2, 3, 1, 0)).astype(jnp.bfloat16)
        self.bias = jnp.zeros((1, in_channels), dtype=jnp.float32)
        self.out_channels = in_channels

    def __call__(self, x):
        assert isinstance(x, (list, tuple))
        return list(_forward_nchw(tuple(x), self.w_hwio, self.bias))


def _ref_conv_relu(z_nchw, w_oihw, bias):
    out = lax.conv_general_dilated(
        z_nchw, w_oihw, window_strides=(1, 1), padding=((1, 1), (1, 1)),
        dimension_numbers=("NCHW", "OIHW", "NCHW"),
        precision=lax.Precision.HIGHEST)
    return jnp.maximum(out + bias.reshape(1, -1, 1, 1), 0.0)


if __name__ == "__main__":
    key = jax.random.PRNGKey(0)
    k_w, k_x1, k_x2 = jax.random.split(key, 3)

    in_channels = 4
    head = RPNHeadFeatureSingleConvPallas(in_channels, k_w)

    # Small FPN-like list of NCHW feature maps.
    x = [
        jax.random.normal(k_x1, (2, in_channels, 16, 16), dtype=jnp.float32),
        jax.random.normal(k_x2, (2, in_channels, 8, 8), dtype=jnp.float32),
    ]

    y = head(x)
    for t in y:
        jax.block_until_ready(t)

    # The kernel uses bf16 MXU operands with f32 accumulation, so compare first
    # against an f32 reference conv on the same bf16-rounded operands (tight),
    # then against the pure-f32 reference (loose, semantic sanity).
    w_bf16_as_f32_oihw = jnp.transpose(head.w_hwio.astype(jnp.float32), (3, 2, 0, 1))
    for z, out in zip(x, y):
        assert out.shape == z.shape and out.dtype == z.dtype
        ref_q = _ref_conv_relu(z.astype(jnp.bfloat16).astype(jnp.float32),
                               w_bf16_as_f32_oihw, head.bias)
        assert jnp.allclose(out, ref_q, atol=1e-4, rtol=1e-4)
        ref_f32 = _ref_conv_relu(z, head.w_oihw, head.bias)
        assert jnp.allclose(out, ref_f32, atol=2e-2, rtol=2e-1)

    print("KERNEL_OK")
</pallas_src>

<mosaic_0001>
module attributes {stable_mosaic.version = 11 : i64} {
  func.func @_conv3x3_relu_kernel(%arg0: i32, %arg1: i32, %arg2: memref<1x16x16x4xf32, #tpu.memory_space<vmem>>, %arg3: memref<1x1x16x4xf32, #tpu.memory_space<vmem>>, %arg4: memref<1x1x16x4xf32, #tpu.memory_space<vmem>>, %arg5: memref<3x3x4x4xbf16, #tpu.memory_space<vmem>>, %arg6: memref<1x4xf32, #tpu.memory_space<vmem>>, %arg7: memref<1x16x16x4xf32, #tpu.memory_space<vmem>>, %arg8: memref<20x32x4xbf16, #tpu.memory_space<vmem>>) attributes {dimension_semantics = [#tpu.dimension_semantics<parallel>, #tpu.dimension_semantics<parallel>], iteration_bounds = array<i64: 2, 1>, scalar_prefetch = 0 : i64, scratch_operands = 1 : i64, tpu.core_type = #tpu.core_type<tc>, window_params = [{transform_indices = @transform_0, window_bounds = array<i64: 1, 16, 16, 4>}, {transform_indices = @transform_1, window_bounds = array<i64: 1, 1, 16, 4>}, {transform_indices = @transform_2, window_bounds = array<i64: 1, 1, 16, 4>}, {pipeline_mode = #tpu.pipeline_mode<synchronous>, transform_indices = @transform_3, window_bounds = array<i64: 3, 3, 4, 4>}, {pipeline_mode = #tpu.pipeline_mode<synchronous>, transform_indices = @transform_4, window_bounds = array<i64: 1, 4>}, {transform_indices = @transform_5, window_bounds = array<i64: 1, 16, 16, 4>}]} {
    %cst = arith.constant 0.000000e+00 : bf16
    %0 = vector.broadcast %cst : bf16 to vector<20x16x4xbf16>
    %c0 = arith.constant 0 : index
    %c16 = arith.constant 16 : index
    %c0_0 = arith.constant 0 : index
    %1 = vector.load %arg8[%c0, %c16, %c0_0] : memref<20x32x4xbf16, #tpu.memory_space<vmem>>, vector<20x16x4xbf16>
    tpu.vector_store %arg8[%c0, %c16, %c0_0], %0 {strides = array<i32>} : memref<20x32x4xbf16, #tpu.memory_space<vmem>>, vector<20x16x4xbf16>,
    %c0_1 = arith.constant 0 : index
    %c0_2 = arith.constant 0 : index
    %c0_3 = arith.constant 0 : index
    %c0_4 = arith.constant 0 : index
    %2 = vector.load %arg2[%c0_1, %c0_2, %c0_3, %c0_4] : memref<1x16x16x4xf32, #tpu.memory_space<vmem>>, vector<1x16x16x4xf32>
    %3 = vector.shape_cast %2 : vector<1x16x16x4xf32> to vector<16x16x4xf32>
    %4 = tpu.iota {dimensions = array<i32: 0>} : vector<16x1x1xi32>
    %c16_i32 = arith.constant 16 : i32
    %5 = arith.muli %arg1, %c16_i32 : i32
    %6 = vector.broadcast %5 : i32 to vector<16x1x1xi32>
    %7 = arith.addi %6, %4 : vector<16x1x1xi32>
    %c16_i32_5 = arith.constant 16 : i32
    %8 = vector.broadcast %c16_i32_5 : i32 to vector<16x1x1xi32>
    %9 = arith.cmpi slt, %7, %8 : vector<16x1x1xi32>
    %cst_6 = arith.constant 0.000000e+00 : f32
    %10 = vector.shape_cast %9 : vector<16x1x1xi1> to vector<16x1x1xi1>
    %11 = vector.broadcast %10 : vector<16x1x1xi1> to vector<16x16x4xi1>
    %12 = vector.broadcast %cst_6 : f32 to vector<16x16x4xf32>
    %13 = arith.select %11, %3, %12 : vector<16x16x4xi1>, vector<16x16x4xf32>
    %14 = arith.truncf %13 : vector<16x16x4xf32> to vector<16x16x4xbf16>
    %c2 = arith.constant 2 : index
    %c0_7 = arith.constant 0 : index
    %c0_8 = arith.constant 0 : index
    %15 = vector.load %arg8[%c2, %c0_7, %c0_8] : memref<20x32x4xbf16, #tpu.memory_space<vmem>>, vector<16x16x4xbf16>
    tpu.vector_store %arg8[%c2, %c0_7, %c0_8], %14 {strides = array<i32>} : memref<20x32x4xbf16, #tpu.memory_space<vmem>>, vector<16x16x4xbf16>,
    %c0_i32 = arith.constant 0 : i32
    %16 = arith.cmpi sgt, %arg1, %c0_i32 : i32
    %c0_9 = arith.constant 0 : index
    %c0_10 = arith.constant 0 : index
    %c0_11 = arith.constant 0 : index
    %c0_12 = arith.constant 0 : index
    %17 = vector.load %arg3[%c0_9, %c0_10, %c0_11, %c0_12] : memref<1x1x16x4xf32, #tpu.memory_space<vmem>>, vector<1x1x16x4xf32>
    %18 = vector.shape_cast %17 : vector<1x1x16x4xf32> to vector<16x4xf32>
    %cst_13 = arith.constant 0.000000e+00 : f32
    %19 = vector.broadcast %cst_13 : f32 to vector<16x4xf32>
    %20 = arith.select %16, %18, %19 : vector<16x4xf32>
    %21 = arith.truncf %20 : vector<16x4xf32> to vector<16x4xbf16>
    %22 = vector.shape_cast %21 : vector<16x4xbf16> to vector<1x16x4xbf16>
    %c1 = arith.constant 1 : index
    %c0_14 = arith.constant 0 : index
    %c0_15 = arith.constant 0 : index
    %23 = vector.load %arg8[%c1, %c0_14, %c0_15] : memref<20x32x4xbf16, #tpu.memory_space<vmem>>, vector<1x16x4xbf16>
    tpu.vector_store %arg8[%c1, %c0_14, %c0_15], %22 {strides = array<i32>} : memref<20x32x4xbf16, #tpu.memory_space<vmem>>, vector<1x16x4xbf16>,
    %c16_i32_16 = arith.constant 16 : i32
    %24 = arith.muli %arg1, %c16_i32_16 : i32
    %c16_i32_17 = arith.constant 16 : i32
    %25 = arith.addi %24, %c16_i32_17 : i32
    %c16_i32_18 = arith.constant 16 : i32
    %26 = arith.cmpi slt, %25, %c16_i32_18 : i32
    %c0_19 = arith.constant 0 : index
    %c0_20 = arith.constant 0 : index
    %c0_21 = arith.constant 0 : index
    %c0_22 = arith.constant 0 : index
    %27 = vector.load %arg4[%c0_19, %c0_20, %c0_21, %c0_22] : memref<1x1x16x4xf32, #tpu.memory_space<vmem>>, vector<1x1x16x4xf32>
    %28 = vector.shape_cast %27 : vector<1x1x16x4xf32> to vector<16x4xf32>
    %cst_23 = arith.constant 0.000000e+00 : f32
    %29 = vector.broadcast %cst_23 : f32 to vector<16x4xf32>
    %30 = arith.select %26, %28, %29 : vector<16x4xf32>
    %31 = arith.truncf %30 : vector<16x4xf32> to vector<16x4xbf16>
    %32 = vector.shape_cast %31 : vector<16x4xbf16> to vector<1x16x4xbf16>
    %c18 = arith.constant 18 : index
    %c0_24 = arith.constant 0 : index
    %c0_25 = arith.constant 0 : index
    %33 = vector.load %arg8[%c18, %c0_24, %c0_25] : memref<20x32x4xbf16, #tpu.memory_space<vmem>>, vector<1x16x4xbf16>
    tpu.vector_store %arg8[%c18, %c0_24, %c0_25], %32 {strides = array<i32>} : memref<20x32x4xbf16, #tpu.memory_space<vmem>>, vector<1x16x4xbf16>,
    %c0_26 = arith.constant 0 : index
    %c0_27 = arith.constant 0 : index
    %c0_28 = arith.constant 0 : index
    %34 = vector.load %arg8[%c0_26, %c0_27, %c0_28] : memref<20x32x4xbf16, #tpu.memory_space<vmem>>, vector<20x32x4xbf16>
    %35 = vector.shape_cast %34 : vector<20x32x4xbf16> to vector<640x4xbf16>
    %c0_29 = arith.constant 0 : index
    %c0_30 = arith.constant 0 : index
    %36 = vector.load %arg6[%c0_29, %c0_30] : memref<1x4xf32, #tpu.memory_space<vmem>>, vector<1x4xf32>
    %cst_31 = arith.constant 0.000000e+00 : f32
    %37 = vector.broadcast %cst_31 : f32 to vector<512x4xf32>
    %38 = vector.extract_strided_slice %35 {offsets = [31, 0], sizes = [576, 4], strides = [1, 1]} : vector<640x4xbf16> to vector<576x4xbf16>
    %39 = vector.extract_strided_slice %38 {offsets = [0, 0], sizes = [512, 4], strides = [1, 1]} : vector<576x4xbf16> to vector<512x4xbf16>
    %c0_32 = arith.constant 0 : index
    %c0_33 = arith.constant 0 : index
    %c0_34 = arith.constant 0 : index
    %c0_35 = arith.constant 0 : index
    %40 = vector.load %arg5[%c0_32, %c0_33, %c0_34, %c0_35] : memref<3x3x4x4xbf16, #tpu.memory_space<vmem>>, vector<1x1x4x4xbf16>
    %41 = vector.shape_cast %40 : vector<1x1x4x4xbf16> to vector<4x4xbf16>
    %cst_36 = arith.constant dense<0.000000e+00> : vector<512x4xf32>
    %42 = tpu.matmul %39, %41, %cst_36 {dimension_numbers = #tpu.dot_dimension_numbers<[1], [0], [0], [1], [0, 0, 1, 1], [], []>} : vector<512x4xbf16>, vector<4x4xbf16>, vector<512x4xf32> -> vector<512x4xf32>
    %43 = arith.addf %37, %42 : vector<512x4xf32>
    %44 = vector.extract_strided_slice %38 {offsets = [32, 0], sizes = [512, 4], strides = [1, 1]} : vector<576x4xbf16> to vector<512x4xbf16>
    %c1_37 = arith.constant 1 : index
    %c0_38 = arith.constant 0 : index
    %c0_39 = arith.constant 0 : index
    %c0_40 = arith.constant 0 : index
    %45 = vector.load %arg5[%c1_37, %c0_38, %c0_39, %c0_40] : memref<3x3x4x4xbf16, #tpu.memory_space<vmem>>, vector<1x1x4x4xbf16>
    %46 = vector.shape_cast %45 : vector<1x1x4x4xbf16> to vector<4x4xbf16>
    %cst_41 = arith.constant dense<0.000000e+00> : vector<512x4xf32>
    %47 = tpu.matmul %44, %46, %cst_41 {dimension_numbers = #tpu.dot_dimension_numbers<[1], [0], [0], [1], [0, 0, 1, 1], [], []>} : vector<512x4xbf16>, vector<4x4xbf16>, vector<512x4xf32> -> vector<512x4xf32>
    %48 = arith.addf %43, %47 : vector<512x4xf32>
    %49 = vector.extract_strided_slice %38 {offsets = [64, 0], sizes = [512, 4], strides = [1, 1]} : vector<576x4xbf16> to vector<512x4xbf16>
    %c2_42 = arith.constant 2 : index
    %c0_43 = arith.constant 0 : index
    %c0_44 = arith.constant 0 : index
    %c0_45 = arith.constant 0 : index
    %50 = vector.load %arg5[%c2_42, %c0_43, %c0_44, %c0_45] : memref<3x3x4x4xbf16, #tpu.memory_space<vmem>>, vector<1x1x4x4xbf16>
    %51 = vector.shape_cast %50 : vector<1x1x4x4xbf16> to vector<4x4xbf16>
    %cst_46 = arith.constant dense<0.000000e+00> : vector<512x4xf32>
    %52 = tpu.matmul %49, %51, %cst_46 {dimension_numbers = #tpu.dot_dimension_numbers<[1], [0], [0], [1], [0, 0, 1, 1], [], []>} : vector<512x4xbf16>, vector<4x4xbf16>, vector<512x4xf32> -> vector<512x4xf32>
    %53 = arith.addf %48, %52 : vector<512x4xf32>
    %54 = vector.extract_strided_slice %35 {offsets = [32, 0], sizes = [576, 4], strides = [1, 1]} : vector<640x4xbf16> to vector<576x4xbf16>
    %55 = vector.extract_strided_slice %54 {offsets = [0, 0], sizes = [512, 4], strides = [1, 1]} : vector<576x4xbf16> to vector<512x4xbf16>
    %c0_47 = arith.constant 0 : index
    %c1_48 = arith.constant 1 : index
    %c0_49 = arith.constant 0 : index
    %c0_50 = arith.constant 0 : index
    %56 = vector.load %arg5[%c0_47, %c1_48, %c0_49, %c0_50] : memref<3x3x4x4xbf16, #tpu.memory_space<vmem>>, vector<1x1x4x4xbf16>
    %57 = vector.shape_cast %56 : vector<1x1x4x4xbf16> to vector<4x4xbf16>
    %cst_51 = arith.constant dense<0.000000e+00> : vector<512x4xf32>
    %58 = tpu.matmul %55, %57, %cst_51 {dimension_numbers = #tpu.dot_dimension_numbers<[1], [0], [0], [1], [0, 0, 1, 1], [], []>} : vector<512x4xbf16>, vector<4x4xbf16>, vector<512x4xf32> -> vector<512x4xf32>
    %59 = arith.addf %53, %58 : vector<512x4xf32>
    %60 = vector.extract_strided_slice %54 {offsets = [32, 0], sizes = [512, 4], strides = [1, 1]} : vector<576x4xbf16> to vector<512x4xbf16>
    %c1_52 = arith.constant 1 : index
    %c1_53 = arith.constant 1 : index
    %c0_54 = arith.constant 0 : index
    %c0_55 = arith.constant 0 : index
    %61 = vector.load %arg5[%c1_52, %c1_53, %c0_54, %c0_55] : memref<3x3x4x4xbf16, #tpu.memory_space<vmem>>, vector<1x1x4x4xbf16>
    %62 = vector.shape_cast %61 : vector<1x1x4x4xbf16> to vector<4x4xbf16>
    %cst_56 = arith.constant dense<0.000000e+00> : vector<512x4xf32>
    %63 = tpu.matmul %60, %62, %cst_56 {dimension_numbers = #tpu.dot_dimension_numbers<[1], [0], [0], [1], [0, 0, 1, 1], [], []>} : vector<512x4xbf16>, vector<4x4xbf16>, vector<512x4xf32> -> vector<512x4xf32>
    %64 = arith.addf %59, %63 : vector<512x4xf32>
    %65 = vector.extract_strided_slice %54 {offsets = [64, 0], sizes = [512, 4], strides = [1, 1]} : vector<576x4xbf16> to vector<512x4xbf16>
    %c2_57 = arith.constant 2 : index
    %c1_58 = arith.constant 1 : index
    %c0_59 = arith.constant 0 : index
    %c0_60 = arith.constant 0 : index
    %66 = vector.load %arg5[%c2_57, %c1_58, %c0_59, %c0_60] : memref<3x3x4x4xbf16, #tpu.memory_space<vmem>>, vector<1x1x4x4xbf16>
    %67 = vector.shape_cast %66 : vector<1x1x4x4xbf16> to vector<4x4xbf16>
    %cst_61 = arith.constant dense<0.000000e+00> : vector<512x4xf32>
    %68 = tpu.matmul %65, %67, %cst_61 {dimension_numbers = #tpu.dot_dimension_numbers<[1], [0], [0], [1], [0, 0, 1, 1], [], []>} : vector<512x4xbf16>, vector<4x4xbf16>, vector<512x4xf32> -> vector<512x4xf32>
    %69 = arith.addf %64, %68 : vector<512x4xf32>
    %70 = vector.extract_strided_slice %35 {offsets = [33, 0], sizes = [576, 4], strides = [1, 1]} : vector<640x4xbf16> to vector<576x4xbf16>
    %71 = vector.extract_strided_slice %70 {offsets = [0, 0], sizes = [512, 4], strides = [1, 1]} : vector<576x4xbf16> to vector<512x4xbf16>
    %c0_62 = arith.constant 0 : index
    %c2_63 = arith.constant 2 : index
    %c0_64 = arith.constant 0 : index
    %c0_65 = arith.constant 0 : index
    %72 = vector.load %arg5[%c0_62, %c2_63, %c0_64, %c0_65] : memref<3x3x4x4xbf16, #tpu.memory_space<vmem>>, vector<1x1x4x4xbf16>
    %73 = vector.shape_cast %72 : vector<1x1x4x4xbf16> to vector<4x4xbf16>
    %cst_66 = arith.constant dense<0.000000e+00> : vector<512x4xf32>
    %74 = tpu.matmul %71, %73, %cst_66 {dimension_numbers = #tpu.dot_dimension_numbers<[1], [0], [0], [1], [0, 0, 1, 1], [], []>} : vector<512x4xbf16>, vector<4x4xbf16>, vector<512x4xf32> -> vector<512x4xf32>
    %75 = arith.addf %69, %74 : vector<512x4xf32>
    %76 = vector.extract_strided_slice %70 {offsets = [32, 0], sizes = [512, 4], strides = [1, 1]} : vector<576x4xbf16> to vector<512x4xbf16>
    %c1_67 = arith.constant 1 : index
    %c2_68 = arith.constant 2 : index
    %c0_69 = arith.constant 0 : index
    %c0_70 = arith.constant 0 : index
    %77 = vector.load %arg5[%c1_67, %c2_68, %c0_69, %c0_70] : memref<3x3x4x4xbf16, #tpu.memory_space<vmem>>, vector<1x1x4x4xbf16>
    %78 = vector.shape_cast %77 : vector<1x1x4x4xbf16> to vector<4x4xbf16>
    %cst_71 = arith.constant dense<0.000000e+00> : vector<512x4xf32>
    %79 = tpu.matmul %76, %78, %cst_71 {dimension_numbers = #tpu.dot_dimension_numbers<[1], [0], [0], [1], [0, 0, 1, 1], [], []>} : vector<512x4xbf16>, vector<4x4xbf16>, vector<512x4xf32> -> vector<512x4xf32>
    %80 = arith.addf %75, %79 : vector<512x4xf32>
    %81 = vector.extract_strided_slice %70 {offsets = [64, 0], sizes = [512, 4], strides = [1, 1]} : vector<576x4xbf16> to vector<512x4xbf16>
    %c2_72 = arith.constant 2 : index
    %c2_73 = arith.constant 2 : index
    %c0_74 = arith.constant 0 : index
    %c0_75 = arith.constant 0 : index
    %82 = vector.load %arg5[%c2_72, %c2_73, %c0_74, %c0_75] : memref<3x3x4x4xbf16, #tpu.memory_space<vmem>>, vector<1x1x4x4xbf16>
    %83 = vector.shape_cast %82 : vector<1x1x4x4xbf16> to vector<4x4xbf16>
    %cst_76 = arith.constant dense<0.000000e+00> : vector<512x4xf32>
    %84 = tpu.matmul %81, %83, %cst_76 {dimension_numbers = #tpu.dot_dimension_numbers<[1], [0], [0], [1], [0, 0, 1, 1], [], []>} : vector<512x4xbf16>, vector<4x4xbf16>, vector<512x4xf32> -> vector<512x4xf32>
    %85 = arith.addf %80, %84 : vector<512x4xf32>
    %86 = vector.broadcast %36 : vector<1x4xf32> to vector<512x4xf32>
    %87 = arith.addf %85, %86 : vector<512x4xf32>
    %cst_77 = arith.constant 0.000000e+00 : f32
    %88 = vector.broadcast %cst_77 : f32 to vector<512x4xf32>
    %89 = arith.maximumf %87, %88 : vector<512x4xf32>
    %90 = vector.shape_cast %89 : vector<512x4xf32> to vector<16x32x4xf32>
    %91 = vector.extract_strided_slice %90 {offsets = [0, 0, 0], sizes = [16, 16, 4], strides = [1, 1, 1]} : vector<16x32x4xf32> to vector<16x16x4xf32>
    %c0_78 = arith.constant 0 : index
    %c0_79 = arith.constant 0 : index
    %c0_80 = arith.constant 0 : index
    %c0_81 = arith.constant 0 : index
    %92 = vector.load %arg7[%c0_78, %c0_79, %c0_80, %c0_81] : memref<1x16x16x4xf32, #tpu.memory_space<vmem>>, vector<1x16x16x4xf32>
    %93 = vector.shape_cast %92 : vector<1x16x16x4xf32> to vector<16x16x4xf32>
    %94 = vector.shape_cast %91 : vector<16x16x4xf32> to vector<1x16x16x4xf32>
    tpu.vector_store %arg7[%c0_78, %c0_79, %c0_80, %c0_81], %94 {strides = array<i32>} : memref<1x16x16x4xf32, #tpu.memory_space<vmem>>, vector<1x16x16x4xf32>,
    return
  }
  func.func @transform_0(%arg0: i32, %arg1: i32) -> (i32, i32, i32, i32) {
    %c0_i32 = arith.constant 0 : i32
    %c0_i32_0 = arith.constant 0 : i32
    %c0_i32_1 = arith.constant 0 : i32
    return %arg0, %arg1, %c0_i32, %c0_i32_0 : i32, i32, i32, i32
  }
  func.func @transform_1(%arg0: i32, %arg1: i32) -> (i32, i32, i32, i32) {
    %c16_i32 = arith.constant 16 : i32
    %0 = arith.muli %arg1, %c16_i32 : i32
    %c1_i32 = arith.constant 1 : i32
    %1 = arith.subi %0, %c1_i32 : i32
    %c0_i32 = arith.constant 0 : i32
    %2 = arith.maxsi %1, %c0_i32 : i32
    %c0_i32_0 = arith.constant 0 : i32
    %c0_i32_1 = arith.constant 0 : i32
    %c0_i32_2 = arith.constant 0 : i32
    return %arg0, %2, %c0_i32_0, %c0_i32_1 : i32, i32, i32, i32
  }
  func.func @transform_2(%arg0: i32, %arg1: i32) -> (i32, i32, i32, i32) {
    %c1_i32 = arith.constant 1 : i32
    %0 = arith.addi %arg1, %c1_i32 : i32
    %c16_i32 = arith.constant 16 : i32
    %1 = arith.muli %0, %c16_i32 : i32
    %c15_i32 = arith.constant 15 : i32
    %2 = arith.minsi %1, %c15_i32 : i32
    %c0_i32 = arith.constant 0 : i32
    %c0_i32_0 = arith.constant 0 : i32
    %c0_i32_1 = arith.constant 0 : i32
    return %arg0, %2, %c0_i32, %c0_i32_0 : i32, i32, i32, i32
  }
  func.func @transform_3(%arg0: i32, %arg1: i32) -> (i32, i32, i32, i32) {
    %c0_i32 = arith.constant 0 : i32
    %c0_i32_0 = arith.constant 0 : i32
    %c0_i32_1 = arith.constant 0 : i32
    %c0_i32_2 = arith.constant 0 : i32
    %c0_i32_3 = arith.constant 0 : i32
    return %c0_i32, %c0_i32_0, %c0_i32_1, %c0_i32_2 : i32, i32, i32, i32
  }
  func.func @transform_4(%arg0: i32, %arg1: i32) -> (i32, i32) {
    %c0_i32 = arith.constant 0 : i32
    %c0_i32_0 = arith.constant 0 : i32
    %c0_i32_1 = arith.constant 0 : i32
    return %c0_i32, %c0_i32_0 : i32, i32
  }
  func.func @transform_5(%arg0: i32, %arg1: i32) -> (i32, i32, i32, i32) {
    %c0_i32 = arith.constant 0 : i32
    %c0_i32_0 = arith.constant 0 : i32
    %c0_i32_1 = arith.constant 0 : i32
    return %arg0, %arg1, %c0_i32, %c0_i32_0 : i32, i32, i32, i32
  }
}

module attributes {stable_mosaic.version = 11 : i64} {
  func.func @_conv3x3_relu_kernel(%arg0: i32, %arg1: i32, %arg2: memref<1x8x8x4xf32, #tpu.memory_space<vmem>>, %arg3: memref<1x1x8x4xf32, #tpu.memory_space<vmem>>, %arg4: memref<1x1x8x4xf32, #tpu.memory_space<vmem>>, %arg5: memref<3x3x4x4xbf16, #tpu.memory_space<vmem>>, %arg6: memref<1x4xf32, #tpu.memory_space<vmem>>, %arg7: memref<1x8x8x4xf32, #tpu.memory_space<vmem>>, %arg8: memref<12x16x4xbf16, #tpu.memory_space<vmem>>) attributes {dimension_semantics = [#tpu.dimension_semantics<parallel>, #tpu.dimension_semantics<parallel>], iteration_bounds = array<i64: 2, 1>, scalar_prefetch = 0 : i64, scratch_operands = 1 : i64, tpu.core_type = #tpu.core_type<tc>, window_params = [{transform_indices = @transform_0, window_bounds = array<i64: 1, 8, 8, 4>}, {transform_indices = @transform_1, window_bounds = array<i64: 1, 1, 8, 4>}, {transform_indices = @transform_2, window_bounds = array<i64: 1, 1, 8, 4>}, {pipeline_mode = #tpu.pipeline_mode<synchronous>, transform_indices = @transform_3, window_bounds = array<i64: 3, 3, 4, 4>}, {pipeline_mode = #tpu.pipeline_mode<synchronous>, transform_indices = @transform_4, window_bounds = array<i64: 1, 4>}, {transform_indices = @transform_5, window_bounds = array<i64: 1, 8, 8, 4>}]} {
    %cst = arith.constant 0.000000e+00 : bf16
    %0 = vector.broadcast %cst : bf16 to vector<12x8x4xbf16>
    %c0 = arith.constant 0 : index
    %c8 = arith.constant 8 : index
    %c0_0 = arith.constant 0 : index
    %1 = vector.load %arg8[%c0, %c8, %c0_0] : memref<12x16x4xbf16, #tpu.memory_space<vmem>>, vector<12x8x4xbf16>
    tpu.vector_store %arg8[%c0, %c8, %c0_0], %0 {strides = array<i32>} : memref<12x16x4xbf16, #tpu.memory_space<vmem>>, vector<12x8x4xbf16>,
    %c0_1 = arith.constant 0 : index
    %c0_2 = arith.constant 0 : index
    %c0_3 = arith.constant 0 : index
    %c0_4 = arith.constant 0 : index
    %2 = vector.load %arg2[%c0_1, %c0_2, %c0_3, %c0_4] : memref<1x8x8x4xf32, #tpu.memory_space<vmem>>, vector<1x8x8x4xf32>
    %3 = vector.shape_cast %2 : vector<1x8x8x4xf32> to vector<8x8x4xf32>
    %4 = tpu.iota {dimensions = array<i32: 0>} : vector<8x1x1xi32>
    %c8_i32 = arith.constant 8 : i32
    %5 = arith.muli %arg1, %c8_i32 : i32
    %6 = vector.broadcast %5 : i32 to vector<8x1x1xi32>
    %7 = arith.addi %6, %4 : vector<8x1x1xi32>
    %c8_i32_5 = arith.constant 8 : i32
    %8 = vector.broadcast %c8_i32_5 : i32 to vector<8x1x1xi32>
    %9 = arith.cmpi slt, %7, %8 : vector<8x1x1xi32>
    %cst_6 = arith.constant 0.000000e+00 : f32
    %10 = vector.shape_cast %9 : vector<8x1x1xi1> to vector<8x1x1xi1>
    %11 = vector.broadcast %10 : vector<8x1x1xi1> to vector<8x8x4xi1>
    %12 = vector.broadcast %cst_6 : f32 to vector<8x8x4xf32>
    %13 = arith.select %11, %3, %12 : vector<8x8x4xi1>, vector<8x8x4xf32>
    %14 = arith.truncf %13 : vector<8x8x4xf32> to vector<8x8x4xbf16>
    %c2 = arith.constant 2 : index
    %c0_7 = arith.constant 0 : index
    %c0_8 = arith.constant 0 : index
    %15 = vector.load %arg8[%c2, %c0_7, %c0_8] : memref<12x16x4xbf16, #tpu.memory_space<vmem>>, vector<8x8x4xbf16>
    tpu.vector_store %arg8[%c2, %c0_7, %c0_8], %14 {strides = array<i32>} : memref<12x16x4xbf16, #tpu.memory_space<vmem>>, vector<8x8x4xbf16>,
    %c0_i32 = arith.constant 0 : i32
    %16 = arith.cmpi sgt, %arg1, %c0_i32 : i32
    %c0_9 = arith.constant 0 : index
    %c0_10 = arith.constant 0 : index
    %c0_11 = arith.constant 0 : index
    %c0_12 = arith.constant 0 : index
    %17 = vector.load %arg3[%c0_9, %c0_10, %c0_11, %c0_12] : memref<1x1x8x4xf32, #tpu.memory_space<vmem>>, vector<1x1x8x4xf32>
    %18 = vector.shape_cast %17 : vector<1x1x8x4xf32> to vector<8x4xf32>
    %cst_13 = arith.constant 0.000000e+00 : f32
    %19 = vector.broadcast %cst_13 : f32 to vector<8x4xf32>
    %20 = arith.select %16, %18, %19 : vector<8x4xf32>
    %21 = arith.truncf %20 : vector<8x4xf32> to vector<8x4xbf16>
    %22 = vector.shape_cast %21 : vector<8x4xbf16> to vector<1x8x4xbf16>
    %c1 = arith.constant 1 : index
    %c0_14 = arith.constant 0 : index
    %c0_15 = arith.constant 0 : index
    %23 = vector.load %arg8[%c1, %c0_14, %c0_15] : memref<12x16x4xbf16, #tpu.memory_space<vmem>>, vector<1x8x4xbf16>
    tpu.vector_store %arg8[%c1, %c0_14, %c0_15], %22 {strides = array<i32>} : memref<12x16x4xbf16, #tpu.memory_space<vmem>>, vector<1x8x4xbf16>,
    %c8_i32_16 = arith.constant 8 : i32
    %24 = arith.muli %arg1, %c8_i32_16 : i32
    %c8_i32_17 = arith.constant 8 : i32
    %25 = arith.addi %24, %c8_i32_17 : i32
    %c8_i32_18 = arith.constant 8 : i32
    %26 = arith.cmpi slt, %25, %c8_i32_18 : i32
    %c0_19 = arith.constant 0 : index
    %c0_20 = arith.constant 0 : index
    %c0_21 = arith.constant 0 : index
    %c0_22 = arith.constant 0 : index
    %27 = vector.load %arg4[%c0_19, %c0_20, %c0_21, %c0_22] : memref<1x1x8x4xf32, #tpu.memory_space<vmem>>, vector<1x1x8x4xf32>
    %28 = vector.shape_cast %27 : vector<1x1x8x4xf32> to vector<8x4xf32>
    %cst_23 = arith.constant 0.000000e+00 : f32
    %29 = vector.broadcast %cst_23 : f32 to vector<8x4xf32>
    %30 = arith.select %26, %28, %29 : vector<8x4xf32>
    %31 = arith.truncf %30 : vector<8x4xf32> to vector<8x4xbf16>
    %32 = vector.shape_cast %31 : vector<8x4xbf16> to vector<1x8x4xbf16>
    %c10 = arith.constant 10 : index
    %c0_24 = arith.constant 0 : index
    %c0_25 = arith.constant 0 : index
    %33 = vector.load %arg8[%c10, %c0_24, %c0_25] : memref<12x16x4xbf16, #tpu.memory_space<vmem>>, vector<1x8x4xbf16>
    tpu.vector_store %arg8[%c10, %c0_24, %c0_25], %32 {strides = array<i32>} : memref<12x16x4xbf16, #tpu.memory_space<vmem>>, vector<1x8x4xbf16>,
    %c0_26 = arith.constant 0 : index
    %c0_27 = arith.constant 0 : index
    %c0_28 = arith.constant 0 : index
    %34 = vector.load %arg8[%c0_26, %c0_27, %c0_28] : memref<12x16x4xbf16, #tpu.memory_space<vmem>>, vector<12x16x4xbf16>
    %35 = vector.shape_cast %34 : vector<12x16x4xbf16> to vector<192x4xbf16>
    %c0_29 = arith.constant 0 : index
    %c0_30 = arith.constant 0 : index
    %36 = vector.load %arg6[%c0_29, %c0_30] : memref<1x4xf32, #tpu.memory_space<vmem>>, vector<1x4xf32>
    %cst_31 = arith.constant 0.000000e+00 : f32
    %37 = vector.broadcast %cst_31 : f32 to vector<128x4xf32>
    %38 = vector.extract_strided_slice %35 {offsets = [15, 0], sizes = [160, 4], strides = [1, 1]} : vector<192x4xbf16> to vector<160x4xbf16>
    %39 = vector.extract_strided_slice %38 {offsets = [0, 0], sizes = [128, 4], strides = [1, 1]} : vector<160x4xbf16> to vector<128x4xbf16>
    %c0_32 = arith.constant 0 : index
    %c0_33 = arith.constant 0 : index
    %c0_34 = arith.constant 0 : index
    %c0_35 = arith.constant 0 : index
    %40 = vector.load %arg5[%c0_32, %c0_33, %c0_34, %c0_35] : memref<3x3x4x4xbf16, #tpu.memory_space<vmem>>, vector<1x1x4x4xbf16>
    %41 = vector.shape_cast %40 : vector<1x1x4x4xbf16> to vector<4x4xbf16>
    %cst_36 = arith.constant dense<0.000000e+00> : vector<128x4xf32>
    %42 = tpu.matmul %39, %41, %cst_36 {dimension_numbers = #tpu.dot_dimension_numbers<[1], [0], [0], [1], [0, 0, 1, 1], [], []>} : vector<128x4xbf16>, vector<4x4xbf16>, vector<128x4xf32> -> vector<128x4xf32>
    %43 = arith.addf %37, %42 : vector<128x4xf32>
    %44 = vector.extract_strided_slice %38 {offsets = [16, 0], sizes = [128, 4], strides = [1, 1]} : vector<160x4xbf16> to vector<128x4xbf16>
    %c1_37 = arith.constant 1 : index
    %c0_38 = arith.constant 0 : index
    %c0_39 = arith.constant 0 : index
    %c0_40 = arith.constant 0 : index
    %45 = vector.load %arg5[%c1_37, %c0_38, %c0_39, %c0_40] : memref<3x3x4x4xbf16, #tpu.memory_space<vmem>>, vector<1x1x4x4xbf16>
    %46 = vector.shape_cast %45 : vector<1x1x4x4xbf16> to vector<4x4xbf16>
    %cst_41 = arith.constant dense<0.000000e+00> : vector<128x4xf32>
    %47 = tpu.matmul %44, %46, %cst_41 {dimension_numbers = #tpu.dot_dimension_numbers<[1], [0], [0], [1], [0, 0, 1, 1], [], []>} : vector<128x4xbf16>, vector<4x4xbf16>, vector<128x4xf32> -> vector<128x4xf32>
    %48 = arith.addf %43, %47 : vector<128x4xf32>
    %49 = vector.extract_strided_slice %38 {offsets = [32, 0], sizes = [128, 4], strides = [1, 1]} : vector<160x4xbf16> to vector<128x4xbf16>
    %c2_42 = arith.constant 2 : index
    %c0_43 = arith.constant 0 : index
    %c0_44 = arith.constant 0 : index
    %c0_45 = arith.constant 0 : index
    %50 = vector.load %arg5[%c2_42, %c0_43, %c0_44, %c0_45] : memref<3x3x4x4xbf16, #tpu.memory_space<vmem>>, vector<1x1x4x4xbf16>
    %51 = vector.shape_cast %50 : vector<1x1x4x4xbf16> to vector<4x4xbf16>
    %cst_46 = arith.constant dense<0.000000e+00> : vector<128x4xf32>
    %52 = tpu.matmul %49, %51, %cst_46 {dimension_numbers = #tpu.dot_dimension_numbers<[1], [0], [0], [1], [0, 0, 1, 1], [], []>} : vector<128x4xbf16>, vector<4x4xbf16>, vector<128x4xf32> -> vector<128x4xf32>
    %53 = arith.addf %48, %52 : vector<128x4xf32>
    %54 = vector.extract_strided_slice %35 {offsets = [16, 0], sizes = [160, 4], strides = [1, 1]} : vector<192x4xbf16> to vector<160x4xbf16>
    %55 = vector.extract_strided_slice %54 {offsets = [0, 0], sizes = [128, 4], strides = [1, 1]} : vector<160x4xbf16> to vector<128x4xbf16>
    %c0_47 = arith.constant 0 : index
    %c1_48 = arith.constant 1 : index
    %c0_49 = arith.constant 0 : index
    %c0_50 = arith.constant 0 : index
    %56 = vector.load %arg5[%c0_47, %c1_48, %c0_49, %c0_50] : memref<3x3x4x4xbf16, #tpu.memory_space<vmem>>, vector<1x1x4x4xbf16>
    %57 = vector.shape_cast %56 : vector<1x1x4x4xbf16> to vector<4x4xbf16>
    %cst_51 = arith.constant dense<0.000000e+00> : vector<128x4xf32>
    %58 = tpu.matmul %55, %57, %cst_51 {dimension_numbers = #tpu.dot_dimension_numbers<[1], [0], [0], [1], [0, 0, 1, 1], [], []>} : vector<128x4xbf16>, vector<4x4xbf16>, vector<128x4xf32> -> vector<128x4xf32>
    %59 = arith.addf %53, %58 : vector<128x4xf32>
    %60 = vector.extract_strided_slice %54 {offsets = [16, 0], sizes = [128, 4], strides = [1, 1]} : vector<160x4xbf16> to vector<128x4xbf16>
    %c1_52 = arith.constant 1 : index
    %c1_53 = arith.constant 1 : index
    %c0_54 = arith.constant 0 : index
    %c0_55 = arith.constant 0 : index
    %61 = vector.load %arg5[%c1_52, %c1_53, %c0_54, %c0_55] : memref<3x3x4x4xbf16, #tpu.memory_space<vmem>>, vector<1x1x4x4xbf16>
    %62 = vector.shape_cast %61 : vector<1x1x4x4xbf16> to vector<4x4xbf16>
    %cst_56 = arith.constant dense<0.000000e+00> : vector<128x4xf32>
    %63 = tpu.matmul %60, %62, %cst_56 {dimension_numbers = #tpu.dot_dimension_numbers<[1], [0], [0], [1], [0, 0, 1, 1], [], []>} : vector<128x4xbf16>, vector<4x4xbf16>, vector<128x4xf32> -> vector<128x4xf32>
    %64 = arith.addf %59, %63 : vector<128x4xf32>
    %65 = vector.extract_strided_slice %54 {offsets = [32, 0], sizes = [128, 4], strides = [1, 1]} : vector<160x4xbf16> to vector<128x4xbf16>
    %c2_57 = arith.constant 2 : index
    %c1_58 = arith.constant 1 : index
    %c0_59 = arith.constant 0 : index
    %c0_60 = arith.constant 0 : index
    %66 = vector.load %arg5[%c2_57, %c1_58, %c0_59, %c0_60] : memref<3x3x4x4xbf16, #tpu.memory_space<vmem>>, vector<1x1x4x4xbf16>
    %67 = vector.shape_cast %66 : vector<1x1x4x4xbf16> to vector<4x4xbf16>
    %cst_61 = arith.constant dense<0.000000e+00> : vector<128x4xf32>
    %68 = tpu.matmul %65, %67, %cst_61 {dimension_numbers = #tpu.dot_dimension_numbers<[1], [0], [0], [1], [0, 0, 1, 1], [], []>} : vector<128x4xbf16>, vector<4x4xbf16>, vector<128x4xf32> -> vector<128x4xf32>
    %69 = arith.addf %64, %68 : vector<128x4xf32>
    %70 = vector.extract_strided_slice %35 {offsets = [17, 0], sizes = [160, 4], strides = [1, 1]} : vector<192x4xbf16> to vector<160x4xbf16>
    %71 = vector.extract_strided_slice %70 {offsets = [0, 0], sizes = [128, 4], strides = [1, 1]} : vector<160x4xbf16> to vector<128x4xbf16>
    %c0_62 = arith.constant 0 : index
    %c2_63 = arith.constant 2 : index
    %c0_64 = arith.constant 0 : index
    %c0_65 = arith.constant 0 : index
    %72 = vector.load %arg5[%c0_62, %c2_63, %c0_64, %c0_65] : memref<3x3x4x4xbf16, #tpu.memory_space<vmem>>, vector<1x1x4x4xbf16>
    %73 = vector.shape_cast %72 : vector<1x1x4x4xbf16> to vector<4x4xbf16>
    %cst_66 = arith.constant dense<0.000000e+00> : vector<128x4xf32>
    %74 = tpu.matmul %71, %73, %cst_66 {dimension_numbers = #tpu.dot_dimension_numbers<[1], [0], [0], [1], [0, 0, 1, 1], [], []>} : vector<128x4xbf16>, vector<4x4xbf16>, vector<128x4xf32> -> vector<128x4xf32>
    %75 = arith.addf %69, %74 : vector<128x4xf32>
    %76 = vector.extract_strided_slice %70 {offsets = [16, 0], sizes = [128, 4], strides = [1, 1]} : vector<160x4xbf16> to vector<128x4xbf16>
    %c1_67 = arith.constant 1 : index
    %c2_68 = arith.constant 2 : index
    %c0_69 = arith.constant 0 : index
    %c0_70 = arith.constant 0 : index
    %77 = vector.load %arg5[%c1_67, %c2_68, %c0_69, %c0_70] : memref<3x3x4x4xbf16, #tpu.memory_space<vmem>>, vector<1x1x4x4xbf16>
    %78 = vector.shape_cast %77 : vector<1x1x4x4xbf16> to vector<4x4xbf16>
    %cst_71 = arith.constant dense<0.000000e+00> : vector<128x4xf32>
    %79 = tpu.matmul %76, %78, %cst_71 {dimension_numbers = #tpu.dot_dimension_numbers<[1], [0], [0], [1], [0, 0, 1, 1], [], []>} : vector<128x4xbf16>, vector<4x4xbf16>, vector<128x4xf32> -> vector<128x4xf32>
    %80 = arith.addf %75, %79 : vector<128x4xf32>
    %81 = vector.extract_strided_slice %70 {offsets = [32, 0], sizes = [128, 4], strides = [1, 1]} : vector<160x4xbf16> to vector<128x4xbf16>
    %c2_72 = arith.constant 2 : index
    %c2_73 = arith.constant 2 : index
    %c0_74 = arith.constant 0 : index
    %c0_75 = arith.constant 0 : index
    %82 = vector.load %arg5[%c2_72, %c2_73, %c0_74, %c0_75] : memref<3x3x4x4xbf16, #tpu.memory_space<vmem>>, vector<1x1x4x4xbf16>
    %83 = vector.shape_cast %82 : vector<1x1x4x4xbf16> to vector<4x4xbf16>
    %cst_76 = arith.constant dense<0.000000e+00> : vector<128x4xf32>
    %84 = tpu.matmul %81, %83, %cst_76 {dimension_numbers = #tpu.dot_dimension_numbers<[1], [0], [0], [1], [0, 0, 1, 1], [], []>} : vector<128x4xbf16>, vector<4x4xbf16>, vector<128x4xf32> -> vector<128x4xf32>
    %85 = arith.addf %80, %84 : vector<128x4xf32>
    %86 = vector.broadcast %36 : vector<1x4xf32> to vector<128x4xf32>
    %87 = arith.addf %85, %86 : vector<128x4xf32>
    %cst_77 = arith.constant 0.000000e+00 : f32
    %88 = vector.broadcast %cst_77 : f32 to vector<128x4xf32>
    %89 = arith.maximumf %87, %88 : vector<128x4xf32>
    %90 = vector.shape_cast %89 : vector<128x4xf32> to vector<8x16x4xf32>
    %91 = vector.extract_strided_slice %90 {offsets = [0, 0, 0], sizes = [8, 8, 4], strides = [1, 1, 1]} : vector<8x16x4xf32> to vector<8x8x4xf32>
    %c0_78 = arith.constant 0 : index
    %c0_79 = arith.constant 0 : index
    %c0_80 = arith.constant 0 : index
    %c0_81 = arith.constant 0 : index
    %92 = vector.load %arg7[%c0_78, %c0_79, %c0_80, %c0_81] : memref<1x8x8x4xf32, #tpu.memory_space<vmem>>, vector<1x8x8x4xf32>
    %93 = vector.shape_cast %92 : vector<1x8x8x4xf32> to vector<8x8x4xf32>
    %94 = vector.shape_cast %91 : vector<8x8x4xf32> to vector<1x8x8x4xf32>
    tpu.vector_store %arg7[%c0_78, %c0_79, %c0_80, %c0_81], %94 {strides = array<i32>} : memref<1x8x8x4xf32, #tpu.memory_space<vmem>>, vector<1x8x8x4xf32>,
    return
  }
  func.func @transform_0(%arg0: i32, %arg1: i32) -> (i32, i32, i32, i32) {
    %c0_i32 = arith.constant 0 : i32
    %c0_i32_0 = arith.constant 0 : i32
    %c0_i32_1 = arith.constant 0 : i32
    return %arg0, %arg1, %c0_i32, %c0_i32_0 : i32, i32, i32, i32
  }
  func.func @transform_1(%arg0: i32, %arg1: i32) -> (i32, i32, i32, i32) {
    %c8_i32 = arith.constant 8 : i32
    %0 = arith.muli %arg1, %c8_i32 : i32
    %c1_i32 = arith.constant 1 : i32
    %1 = arith.subi %0, %c1_i32 : i32
    %c0_i32 = arith.constant 0 : i32
    %2 = arith.maxsi %1, %c0_i32 : i32
    %c0_i32_0 = arith.constant 0 : i32
    %c0_i32_1 = arith.constant 0 : i32
    %c0_i32_2 = arith.constant 0 : i32
    return %arg0, %2, %c0_i32_0, %c0_i32_1 : i32, i32, i32, i32
  }
  func.func @transform_2(%arg0: i32, %arg1: i32) -> (i32, i32, i32, i32) {
    %c1_i32 = arith.constant 1 : i32
    %0 = arith.addi %arg1, %c1_i32 : i32
    %c8_i32 = arith.constant 8 : i32
    %1 = arith.muli %0, %c8_i32 : i32
    %c7_i32 = arith.constant 7 : i32
    %2 = arith.minsi %1, %c7_i32 : i32
    %c0_i32 = arith.constant 0 : i32
    %c0_i32_0 = arith.constant 0 : i32
    %c0_i32_1 = arith.constant 0 : i32
    return %arg0, %2, %c0_i32, %c0_i32_0 : i32, i32, i32, i32
  }
  func.func @transform_3(%arg0: i32, %arg1: i32) -> (i32, i32, i32, i32) {
    %c0_i32 = arith.constant 0 : i32
    %c0_i32_0 = arith.constant 0 : i32
    %c0_i32_1 = arith.constant 0 : i32
    %c0_i32_2 = arith.constant 0 : i32
    %c0_i32_3 = arith.constant 0 : i32
    return %c0_i32, %c0_i32_0, %c0_i32_1, %c0_i32_2 : i32, i32, i32, i32
  }
  func.func @transform_4(%arg0: i32, %arg1: i32) -> (i32, i32) {
    %c0_i32 = arith.constant 0 : i32
    %c0_i32_0 = arith.constant 0 : i32
    %c0_i32_1 = arith.constant 0 : i32
    return %c0_i32, %c0_i32_0 : i32, i32
  }
  func.func @transform_5(%arg0: i32, %arg1: i32) -> (i32, i32, i32, i32) {
    %c0_i32 = arith.constant 0 : i32
    %c0_i32_0 = arith.constant 0 : i32
    %c0_i32_1 = arith.constant 0 : i32
    return %arg0, %arg1, %c0_i32, %c0_i32_0 : i32, i32, i32, i32
  }
}

</mosaic_0001>

<llo_original>
// kernel: _forward_nchw.3
$region0: #{_forward_nchw.3}
  #allocation0 [shape = 'u32[]', space=smem, size = 0x4, offset = 0x4, fixed_abs, tag = 'smem constant byte address 0x4 - core index']
  #allocation1 [shape = 'u32[72,128]{1,0:T(1,128)}', space=vmem, size = 0x9000, scoped, tag = 'internal scratch']
  #allocation2 [shape = 'bf16[12,16,4]{2,1,0:T(8,128)(2,1)}', space=vmem, size = 0xc000, scoped, tag = 'scratch operand']
  %s0 = inlined_call_operand.vmem [shape: f32[2,8,8,4], index: 0, kind: input, shape index: {}, may-alias: {0,1,2}]
  %s1 = inlined_call_operand.vmem [shape: f32[2,8,8,4], index: 1, kind: input, shape index: {}, may-alias: {0,1,2}]
  %s2 = inlined_call_operand.vmem [shape: f32[2,8,8,4], index: 2, kind: input, shape index: {}, may-alias: {0,1,2}]
  %s3 = inlined_call_operand.vmem [shape: bf16[3,3,4,4], index: 3, kind: input, shape index: {}]
  %s4 = inlined_call_operand.vmem [shape: f32[1,4], index: 4, kind: input, shape index: {}]
  %s5 = inlined_call_operand.vmem [shape: f32[2,8,8,4], index: 5, kind: output, shape index: {}]
  %s6 = sld [smem:[#allocation0]]
  $region53: #{_forward_nchw.3} parent=0
    _
  %s8 = ssub.s32 1, %s6
  %s9 = scalar_select 0, %s8, %s6
  loop: start=0, step=1, limit=4
  $region2: #{_forward_nchw.3} parent=0 // loop_pre_header
    _
  $region3: #{_forward_nchw.3} parent=0 // loop_header
    %s11 = sphi 0, %s15
    %p12 = scmp.ge.s32.totalorder %s11, 4
    %s18 = sphi 0, %s30
    %s19 = sphi 0, %s26
    %s20 = sphi 0, %s18
    %s21 = sphi 0, %s19
    %s22 = sphi 0, %s20
    %s23 = sphi 0, %s21
    %s35 = sphi 0, %s37
    %s38 = sphi 0, %s35
    %s39 = sphi 0, %s38
    %s55 = sphi 0, %s39
    %s71 = sphi 0, %s73
    %s74 = sphi 0, %s71
    %s75 = sphi 0, %s74
    %s91 = sphi 0, %s75
    %s107 = sphi 0, %s109
    %s110 = sphi 0, %s107
    %s111 = sphi 0, %s110
    %s127 = sphi 0, %s111
    %s131 = sphi 0, %s131
    %s133 = sphi 0, %s131
    %s134 = sphi 0, %s133
    %s148 = sphi 0, %s134
    %s152 = sphi 0, %s152
    %s154 = sphi 0, %s152
    %s155 = sphi 0, %s154
    %s169 = sphi 0, %s155
    %s177 = sphi 0, %s179
    %s180 = sphi 0, %s177
    %s181 = sphi 0, %s180
    %s197 = sphi 0, %s181
  $region4: #{_forward_nchw.3} parent=0 // loop_header_branch
    %14 = sbr.rel (%p12) target = $region8
  $region5: #{_forward_nchw.3} parent=0 // loop_body
    %s16 = ssub.s32 %s11, 1
    %s17 = ssub.s32 %s11, 2
    %s24 = sadd.s32 1, %s19
    %p25 = scmp.ge.s32.totalorder %s24, 1
    %s26 = scalar_select %p25, 0, %s24
    %s27 = sadd.s32 1, %s18
    %s28 = scalar_select %p25, %s27, %s18
    %p29 = scmp.ge.s32.totalorder %s28, 2
    %s30 = scalar_select %p29, 0, %s28
    %s31 = ssub.s32 %s18, %s30
    %s32 = ssub.s32 %s19, %s26
    %s33 = sor.u32 %s31, %s32
    %p34 = scmp.eq.s32.totalorder %s33, 0
    %s36 = sadd.s32 %s35, 1
    %s37 = scalar_select %p34, %s35, %s36
    %p40 = pneg %p34
    %p41 = scmp.eq.s32.totalorder %s11, 1
    %p42 = por %p40, %p41
    %p43 = scmp.ne.s32.totalorder %s35, %s38
    %p44 = scmp.eq.s32.totalorder %s11, 0
    %p45 = por %p43, %p44
    %p46 = scmp.ne.s32.totalorder %s35, %s38
    %p47 = scmp.eq.s32.totalorder %s16, 1
    %p48 = por %p46, %p47
    %p49 = scmp.ne.s32.totalorder %s38, %s39
    %p50 = scmp.eq.s32.totalorder %s16, 0
    %p51 = por %p49, %p50
    %p52 = scmp.ne.s32.totalorder %s38, %s39
    %p53 = scmp.eq.s32.totalorder %s17, 1
    %p54 = por %p52, %p53
    %p56 = scmp.ne.s32.totalorder %s39, %s55
    %p57 = scmp.eq.s32.totalorder %s17, 0
    %p58 = por %p56, %p57
    %s59 = smul.u32 %s19, 8
    %s60 = ssub.s32 %s59, 1
    %p61 = scmp.gt.s32.totalorder %s60, 0
    %s62 = scalar_select %p61, %s60, 0
    %s63 = smul.u32 %s26, 8
    %s64 = ssub.s32 %s63, 1
    %p65 = scmp.gt.s32.totalorder %s64, 0
    %s66 = scalar_select %p65, %s64, 0
    %s67 = ssub.s32 %s18, %s30
    %s68 = ssub.s32 %s62, %s66
    %s69 = sor.u32 %s67, %s68
    %p70 = scmp.eq.s32.totalorder %s69, 0
    %s72 = sadd.s32 %s71, 1
    %s73 = scalar_select %p70, %s71, %s72
    %p76 = pneg %p70
    %p77 = scmp.eq.s32.totalorder %s11, 1
    %p78 = por %p76, %p77
    %p79 = scmp.ne.s32.totalorder %s71, %s74
    %p80 = scmp.eq.s32.totalorder %s11, 0
    %p81 = por %p79, %p80
    %p82 = scmp.ne.s32.totalorder %s71, %s74
    %p83 = scmp.eq.s32.totalorder %s16, 1
    %p84 = por %p82, %p83
    %p85 = scmp.ne.s32.totalorder %s74, %s75
    %p86 = scmp.eq.s32.totalorder %s16, 0
    %p87 = por %p85, %p86
    %p88 = scmp.ne.s32.totalorder %s74, %s75
    %p89 = scmp.eq.s32.totalorder %s17, 1
    %p90 = por %p88, %p89
    %p92 = scmp.ne.s32.totalorder %s75, %s91
    %p93 = scmp.eq.s32.totalorder %s17, 0
    %p94 = por %p92, %p93
    %s95 = sadd.s32 %s19, 1
    %s96 = smul.u32 %s95, 8
    %p97 = scmp.lt.s32.totalorder %s96, 7
    %s98 = scalar_select %p97, %s96, 7
    %s99 = sadd.s32 %s26, 1
    %s100 = smul.u32 %s99, 8
    %p101 = scmp.lt.s32.totalorder %s100, 7
    %s102 = scalar_select %p101, %s100, 7
    %s103 = ssub.s32 %s18, %s30
    %s104 = ssub.s32 %s98, %s102
    %s105 = sor.u32 %s103, %s104
    %p106 = scmp.eq.s32.totalorder %s105, 0
    %s108 = sadd.s32 %s107, 1
    %s109 = scalar_select %p106, %s107, %s108
    %p112 = pneg %p106
    %p113 = scmp.eq.s32.totalorder %s11, 1
    %p114 = por %p112, %p113
    %p115 = scmp.ne.s32.totalorder %s107, %s110
    %p116 = scmp.eq.s32.totalorder %s11, 0
    %p117 = por %p115, %p116
    %p118 = scmp.ne.s32.totalorder %s107, %s110
    %p119 = scmp.eq.s32.totalorder %s16, 1
    %p120 = por %p118, %p119
    %p121 = scmp.ne.s32.totalorder %s110, %s111
    %p122 = scmp.eq.s32.totalorder %s16, 0
    %p123 = por %p121, %p122
    %p124 = scmp.ne.s32.totalorder %s110, %s111
    %p125 = scmp.eq.s32.totalorder %s17, 1
    %p126 = por %p124, %p125
    %p128 = scmp.ne.s32.totalorder %s111, %s127
    %p129 = scmp.eq.s32.totalorder %s17, 0
    %p130 = por %p128, %p129
    %s132 = sadd.s32 %s131, 1
    %p135 = scmp.eq.s32.totalorder %s11, 1
    %p136 = scmp.ne.s32.totalorder %s131, %s133
    %p137 = scmp.eq.s32.totalorder %s11, 0
    %p138 = por %p136, %p137
    %p139 = scmp.ne.s32.totalorder %s131, %s133
    %p140 = scmp.eq.s32.totalorder %s16, 1
    %p141 = por %p139, %p140
    %p142 = scmp.ne.s32.totalorder %s133, %s134
    %p143 = scmp.eq.s32.totalorder %s16, 0
    %p144 = por %p142, %p143
    %p145 = scmp.ne.s32.totalorder %s133, %s134
    %p146 = scmp.eq.s32.totalorder %s17, 1
    %p147 = por %p145, %p146
    %p149 = scmp.ne.s32.totalorder %s134, %s148
    %p150 = scmp.eq.s32.totalorder %s17, 0
    %p151 = por %p149, %p150
    %s153 = sadd.s32 %s152, 1
    %p156 = scmp.eq.s32.totalorder %s11, 1
    %p157 = scmp.ne.s32.totalorder %s152, %s154
    %p158 = scmp.eq.s32.totalorder %s11, 0
    %p159 = por %p157, %p158
    %p160 = scmp.ne.s32.totalorder %s152, %s154
    %p161 = scmp.eq.s32.totalorder %s16, 1
    %p162 = por %p160, %p161
    %p163 = scmp.ne.s32.totalorder %s154, %s155
    %p164 = scmp.eq.s32.totalorder %s16, 0
    %p165 = por %p163, %p164
    %p166 = scmp.ne.s32.totalorder %s154, %s155
    %p167 = scmp.eq.s32.totalorder %s17, 1
    %p168 = por %p166, %p167
    %p170 = scmp.ne.s32.totalorder %s155, %s169
    %p171 = scmp.eq.s32.totalorder %s17, 0
    %p172 = por %p170, %p171
    %s173 = ssub.s32 %s18, %s30
    %s174 = ssub.s32 %s19, %s26
    %s175 = sor.u32 %s173, %s174
    %p176 = scmp.eq.s32.totalorder %s175, 0
    %s178 = sadd.s32 %s177, 1
    %s179 = scalar_select %p176, %s177, %s178
    %p182 = pneg %p176
    %p183 = scmp.eq.s32.totalorder %s11, 1
    %p184 = por %p182, %p183
    %p185 = scmp.ne.s32.totalorder %s177, %s180
    %p186 = scmp.eq.s32.totalorder %s11, 0
    %p187 = por %p185, %p186
    %p188 = scmp.ne.s32.totalorder %s177, %s180
    %p189 = scmp.eq.s32.totalorder %s16, 1
    %p190 = por %p188, %p189
    %p191 = scmp.ne.s32.totalorder %s180, %s181
    %p192 = scmp.eq.s32.totalorder %s16, 0
    %p193 = por %p191, %p192
    %p194 = scmp.ne.s32.totalorder %s180, %s181
    %p195 = scmp.eq.s32.totalorder %s17, 1
    %p196 = por %p194, %p195
    %p198 = scmp.ne.s32.totalorder %s181, %s197
    %p199 = scmp.eq.s32.totalorder %s17, 0
    %p200 = por %p198, %p199
    %p201 = scmp.le.s32.totalorder 1, %s11
    %p202 = scmp.lt.s32.totalorder %s11, 3
    %p203 = pnand %p201, %p202
    %p204 = pneg %p203
    // Predicated region
    $region9: #{_forward_nchw.3} parent=5 // pred_check
      _
    $region10: #{_forward_nchw.3} parent=5 // pred_check_branch
      %206 = sbr.rel (%p203) target = $region12
    $region11: #{_forward_nchw.3} parent=5 // pred_region
      %s207 = ssub.s32 %s11, 1
      // Predicated region
      $region13: #{_forward_nchw.3} parent=11 // pred_check
        %p208 = pneg %p144
      $region14: #{_forward_nchw.3} parent=11 // pred_check_branch
        %210 = sbr.rel (%p208) target = $region16
      $region15: #{_forward_nchw.3} parent=11 // pred_region
        _
      $region16: #{_forward_nchw.3} parent=11 // pred_fallthru
        _
      // Predicated region
      $region17: #{_forward_nchw.3} parent=11 // pred_check
        %p211 = pneg %p165
      $region18: #{_forward_nchw.3} parent=11 // pred_check_branch
        %213 = sbr.rel (%p211) target = $region20
      $region19: #{_forward_nchw.3} parent=11 // pred_region
        _
      $region20: #{_forward_nchw.3} parent=11 // pred_fallthru
        _
    $region12: #{_forward_nchw.3} parent=5 // pred_fallthru
      _
    %p214 = scmp.lt.s32.totalorder %s11, 2
    // Predicated region
    $region21: #{_forward_nchw.3} parent=5 // pred_check
      %p215 = pneg %p214
    $region22: #{_forward_nchw.3} parent=5 // pred_check_branch
      %217 = sbr.rel (%p215) target = $region24
    $region23: #{_forward_nchw.3} parent=5 // pred_region
      // Predicated region
      $region25: #{_forward_nchw.3} parent=23 // pred_check
        %p218 = pneg %p45
      $region26: #{_forward_nchw.3} parent=23 // pred_check_branch
        %220 = sbr.rel (%p218) target = $region28
      $region27: #{_forward_nchw.3} parent=23 // pred_region
        %s221 = smul.u32 8, %s19
        %p222 = scmp.lt.s32.totalorder %s18, 1
        %s223 = scalar_select %p222, %s18, 1
        %p224 = scmp.lt.s32.totalorder %s221, 7
        %s225 = scalar_select %p224, %s221, 7
        %s226 = smul.addr %s223, 8
        %s227 = sadd.s32 %s225, %s226
        %s228 = smul.addr %s227, 8
        %s229 = scalar_lea.vmem %s0, %s228
        %s230 = smul.u32 8, %s19
      $region28: #{_forward_nchw.3} parent=23 // pred_fallthru
        _
      // Predicated region
      $region29: #{_forward_nchw.3} parent=23 // pred_check
        %p231 = pneg %p81
      $region30: #{_forward_nchw.3} parent=23 // pred_check_branch
        %233 = sbr.rel (%p231) target = $region32
      $region31: #{_forward_nchw.3} parent=23 // pred_region
        %s234 = smul.u32 %s19, 8
        %s235 = ssub.s32 %s234, 1
        %p236 = scmp.gt.s32.totalorder %s235, 0
        %s237 = scalar_select %p236, %s235, 0
        %p238 = scmp.lt.s32.totalorder %s18, 1
        %s239 = scalar_select %p238, %s18, 1
        %p240 = scmp.lt.s32.totalorder %s237, 7
        %s241 = scalar_select %p240, %s237, 7
        %s242 = smul.addr %s239, 8
        %s243 = sadd.s32 %s241, %s242
        %s244 = smul.addr %s243, 8
        %s245 = scalar_lea.vmem %s1, %s244
        %s246 = smul.u32 %s19, 8
        %s247 = ssub.s32 %s246, 1
        %p248 = scmp.gt.s32.totalorder %s247, 0
        %s249 = scalar_select %p248, %s247, 0
      $region32: #{_forward_nchw.3} parent=23 // pred_fallthru
        _
      // Predicated region
      $region33: #{_forward_nchw.3} parent=23 // pred_check
        %p250 = pneg %p117
      $region34: #{_forward_nchw.3} parent=23 // pred_check_branch
        %252 = sbr.rel (%p250) target = $region36
      $region35: #{_forward_nchw.3} parent=23 // pred_region
        %s253 = sadd.s32 %s19, 1
        %s254 = smul.u32 %s253, 8
        %p255 = scmp.lt.s32.totalorder %s254, 7
        %s256 = scalar_select %p255, %s254, 7
        %p257 = scmp.lt.s32.totalorder %s18, 1
        %s258 = scalar_select %p257, %s18, 1
        %p259 = scmp.lt.s32.totalorder %s256, 7
        %s260 = scalar_select %p259, %s256, 7
        %s261 = smul.addr %s258, 8
        %s262 = sadd.s32 %s260, %s261
        %s263 = smul.addr %s262, 8
        %s264 = scalar_lea.vmem %s2, %s263
        %s265 = sadd.s32 %s19, 1
        %s266 = smul.u32 %s265, 8
        %p267 = scmp.lt.s32.totalorder %s266, 7
        %s268 = scalar_select %p267, %s266, 7
      $region36: #{_forward_nchw.3} parent=23 // pred_fallthru
        _
    $region24: #{_forward_nchw.3} parent=5 // pred_fallthru
      _
    %p269 = scmp.le.s32.totalorder 1, %s11
    %p270 = scmp.lt.s32.totalorder %s11, 3
    %p271 = pnand %p269, %p270
    %p272 = pneg %p271
    // Predicated region
    $region37: #{_forward_nchw.3} parent=5 // pred_check
      _
    $region38: #{_forward_nchw.3} parent=5 // pred_check_branch
      %274 = sbr.rel (%p271) target = $region40
    $region39: #{_forward_nchw.3} parent=5 // pred_region
      %s275 = ssub.s32 %s11, 1
      %s276 = smul.u32 8, %s21
      %p277 = scmp.lt.s32.totalorder %s20, 1
      %s278 = scalar_select %p277, %s20, 1
      %p279 = scmp.lt.s32.totalorder %s276, 7
      %s280 = scalar_select %p279, %s276, 7
      %s281 = smul.addr %s278, 8
      %s282 = sadd.s32 %s280, %s281
      %s283 = smul.addr %s282, 8
      %s284 = scalar_lea.vmem %s0, %s283
      %p285 = pneg %p51
      %p286 = pneg %p48
      %s287 = smul.u32 %s21, 8
      %s288 = ssub.s32 %s287, 1
      %p289 = scmp.gt.s32.totalorder %s288, 0
      %s290 = scalar_select %p289, %s288, 0
      %p291 = scmp.lt.s32.totalorder %s20, 1
      %s292 = scalar_select %p291, %s20, 1
      %p293 = scmp.lt.s32.totalorder %s290, 7
      %s294 = scalar_select %p293, %s290, 7
      %s295 = smul.addr %s292, 8
      %s296 = sadd.s32 %s294, %s295
      %s297 = smul.addr %s296, 8
      %s298 = scalar_lea.vmem %s1, %s297
      %p299 = pneg %p87
      %p300 = pneg %p84
      %s301 = sadd.s32 %s21, 1
      %s302 = smul.u32 %s301, 8
      %p303 = scmp.lt.s32.totalorder %s302, 7
      %s304 = scalar_select %p303, %s302, 7
      %p305 = scmp.lt.s32.totalorder %s20, 1
      %s306 = scalar_select %p305, %s20, 1
      %p307 = scmp.lt.s32.totalorder %s304, 7
      %s308 = scalar_select %p307, %s304, 7
      %s309 = smul.addr %s306, 8
      %s310 = sadd.s32 %s308, %s309
      %s311 = smul.addr %s310, 8
      %s312 = scalar_lea.vmem %s2, %s311
      %p313 = pneg %p123
      %p314 = pneg %p120
      %p315 = pneg %p144
      %p316 = pneg %p141
      %p317 = pneg %p165
      %p318 = pneg %p162
      %p319 = pneg %p193
      %p320 = pneg %p190
      %s321 = smul.u32 8, %s21
      %p322 = scmp.lt.s32.totalorder %s20, 1
      %s323 = scalar_select %p322, %s20, 1
      %p324 = scmp.lt.s32.totalorder %s321, 7
      %s325 = scalar_select %p324, %s321, 7
      %s326 = smul.addr %s323, 8
      %s327 = sadd.s32 %s325, %s326
      %s328 = smul.addr %s327, 8
      %s329 = scalar_lea.vmem %s5, %s328
      %s330 = smul.u32 8, %s21
      %p331 = scmp.lt.s32.totalorder %s20, 1
      %s332 = scalar_select %p331, %s20, 1
      %p333 = scmp.lt.s32.totalorder %s330, 7
      %s334 = scalar_select %p333, %s330, 7
      %s335 = smul.addr %s332, 8
      %s336 = sadd.s32 %s334, %s335
      %s337 = smul.addr %s336, 8
      %s338 = scalar_lea.vmem %s0, %s337
      %s339 = smul.u32 8, %s21
      %s340 = smul.u32 %s21, 8
      %s341 = ssub.s32 %s340, 1
      %p342 = scmp.gt.s32.totalorder %s341, 0
      %s343 = scalar_select %p342, %s341, 0
      %p344 = scmp.lt.s32.totalorder %s20, 1
      %s345 = scalar_select %p344, %s20, 1
      %p346 = scmp.lt.s32.totalorder %s343, 7
      %s347 = scalar_select %p346, %s343, 7
      %s348 = smul.addr %s345, 8
      %s349 = sadd.s32 %s347, %s348
      %s350 = smul.addr %s349, 8
      %s351 = scalar_lea.vmem %s1, %s350
      %s352 = smul.u32 %s21, 8
      %s353 = ssub.s32 %s352, 1
      %p354 = scmp.gt.s32.totalorder %s353, 0
      %s355 = scalar_select %p354, %s353, 0
      %s356 = sadd.s32 %s21, 1
      %s357 = smul.u32 %s356, 8
      %p358 = scmp.lt.s32.totalorder %s357, 7
      %s359 = scalar_select %p358, %s357, 7
      %p360 = scmp.lt.s32.totalorder %s20, 1
      %s361 = scalar_select %p360, %s20, 1
      %p362 = scmp.lt.s32.totalorder %s359, 7
      %s363 = scalar_select %p362, %s359, 7
      %s364 = smul.addr %s361, 8
      %s365 = sadd.s32 %s363, %s364
      %s366 = smul.addr %s365, 8
      %s367 = scalar_lea.vmem %s2, %s366
      %s368 = sadd.s32 %s21, 1
      %s369 = smul.u32 %s368, 8
      %p370 = scmp.lt.s32.totalorder %s369, 7
      %s371 = scalar_select %p370, %s369, 7
      %s372 = smul.u32 8, %s21
      %p373 = scmp.lt.s32.totalorder %s20, 1
      %s374 = scalar_select %p373, %s20, 1
      %p375 = scmp.lt.s32.totalorder %s372, 7
      %s376 = scalar_select %p375, %s372, 7
      %s377 = smul.addr %s374, 8
      %s378 = sadd.s32 %s376, %s377
      %s379 = smul.addr %s378, 8
      %s380 = scalar_lea.vmem %s5, %s379
      %s381 = smul.u32 8, %s21
      %vm383 = vcmask 27648
      %384 = vst.msk [vmem:[#allocation2 + $0x4] sm:$0xf] %vm383, 0
      %385 = vst.msk [vmem:[#allocation2 + $0xc] sm:$0xf] %vm383, 0
      %386 = vst.msk [vmem:[#allocation2 + $0x14] sm:$0xf] %vm383, 0
      %387 = vst.msk [vmem:[#allocation2 + $0x1c] sm:$0xf] %vm383, 0
      %388 = vst.msk [vmem:[#allocation2 + $0x24] sm:$0xf] %vm383, 0
      %389 = vst.msk [vmem:[#allocation2 + $0x2c] sm:$0xf] %vm383, 0
      %390 = vst.msk [vmem:[#allocation2 + $0x34] sm:$0xf] %vm383, 0
      %391 = vst.msk [vmem:[#allocation2 + $0x3c] sm:$0xf] %vm383, 0
      %392 = vst.msk [vmem:[#allocation2 + $0x44] sm:$0xf] %vm383, 0
      %393 = vst.msk [vmem:[#allocation2 + $0x4c] sm:$0xf] %vm383, 0
      %394 = vst.msk [vmem:[#allocation2 + $0x54] sm:$0xf] %vm383, 0
      %395 = vst.msk [vmem:[#allocation2 + $0x5c] sm:$0xf] %vm383, 0
      %v396 = vld [vmem:[%s338] sm:$0xff]
      %v397 = vld [vmem:[%s338 + $0x8] sm:$0xff]
      %v398 = vld [vmem:[%s338 + $0x10] sm:$0xff]
      %v399 = vld [vmem:[%s338 + $0x18] sm:$0xff]
      %v400 = vld [vmem:[%s338 + $0x20] sm:$0xff]
      %v401 = vld [vmem:[%s338 + $0x28] sm:$0xff]
      %v402 = vld [vmem:[%s338 + $0x30] sm:$0xff]
      %v403 = vld [vmem:[%s338 + $0x38] sm:$0xff]
      %s404 = smul.u32 %s21, 8
      %v405 = vstv %s404
      %v406 = vadd.s32 %v405, 1
      %v407 = vadd.s32 %v405, 2
      %v408 = vadd.s32 %v405, 3
      %v409 = vadd.s32 %v405, 4
      %v410 = vadd.s32 %v405, 5
      %v411 = vadd.s32 %v405, 6
      %v412 = vadd.s32 %v405, 7
      %vm413 = vcmp.lt.s32.totalorder %v405, 8
      %vm414 = vcmp.lt.s32.totalorder %v406, 8
      %vm415 = vcmp.lt.s32.totalorder %v407, 8
      %vm416 = vcmp.lt.s32.totalorder %v408, 8
      %vm417 = vcmp.lt.s32.totalorder %v409, 8
      %vm418 = vcmp.lt.s32.totalorder %v410, 8
      %vm419 = vcmp.lt.s32.totalorder %v411, 8
      %vm420 = vcmp.lt.s32.totalorder %v412, 8
      %v421 = vsel %vm413, 1, 0
      %v422 = vsel %vm414, 1, 0
      %v423 = vsel %vm415, 1, 0
      %v424 = vsel %vm416, 1, 0
      %v425 = vsel %vm417, 1, 0
      %v426 = vsel %vm418, 1, 0
      %v427 = vsel %vm419, 1, 0
      %v428 = vsel %vm420, 1, 0
      %vm429 = vcmp.eq.s32.totalorder %v421, 1
      %vm430 = vcmp.eq.s32.totalorder %v422, 1
      %vm431 = vcmp.eq.s32.totalorder %v423, 1
      %vm432 = vcmp.eq.s32.totalorder %v424, 1
      %vm433 = vcmp.eq.s32.totalorder %v425, 1
      %vm434 = vcmp.eq.s32.totalorder %v426, 1
      %vm435 = vcmp.eq.s32.totalorder %v427, 1
      %vm436 = vcmp.eq.s32.totalorder %v428, 1
      %v437 = vsel %vm429, %v396, 0.0
      %v438 = vsel %vm430, %v397, 0.0
      %v439 = vsel %vm431, %v398, 0.0
      %v440 = vsel %vm432, %v399, 0.0
      %v441 = vsel %vm433, %v400, 0.0
      %v442 = vsel %vm434, %v401, 0.0
      %v443 = vsel %vm435, %v402, 0.0
      %v444 = vsel %vm436, %v403, 0.0
      %v445 = vpack.c.bf16 %v437, %v437
      %v446 = vpack.c.bf16 %v438, %v438
      %v447 = vpack.c.bf16 %v439, %v439
      %v448 = vpack.c.bf16 %v440, %v440
      %v449 = vpack.c.bf16 %v441, %v441
      %v450 = vpack.c.bf16 %v442, %v442
      %v451 = vpack.c.bf16 %v443, %v443
      %v452 = vpack.c.bf16 %v444, %v444
      %s453 = scalar_lea.vmem [#allocation2], 16
      %454 = vst.msk [vmem:[%s453] sm:$0xf] %vm383, %v445
      %455 = vst.msk [vmem:[%s453 + $0x8] sm:$0xf] %vm383, %v446
      %456 = vst.msk [vmem:[%s453 + $0x10] sm:$0xf] %vm383, %v447
      %457 = vst.msk [vmem:[%s453 + $0x18] sm:$0xf] %vm383, %v448
      %458 = vst.msk [vmem:[%s453 + $0x20] sm:$0xf] %vm383, %v449
      %459 = vst.msk [vmem:[%s453 + $0x28] sm:$0xf] %vm383, %v450
      %460 = vst.msk [vmem:[%s453 + $0x30] sm:$0xf] %vm383, %v451
      %461 = vst.msk [vmem:[%s453 + $0x38] sm:$0xf] %vm383, %v452
      %p462 = scmp.gt.s32.totalorder %s21, 0
      %v463 = vld [vmem:[%s351] sm:$0xff]
      %s464 = scalar_select %p462, 1, 0
      %v465 = vstv %s464
      %vm466 = vcmp.eq.s32.totalorder %v465, 1
      %v467 = vsel %vm466, %v463, 0.0
      %v468 = vpack.c.bf16 %v467, %v467
      %s469 = scalar_lea.vmem [#allocation2], 8
      %470 = vst.msk [vmem:[%s469] sm:$0xf] %vm383, %v468
      %s471 = sadd.s32 %s404, 8
      %p472 = scmp.lt.s32.totalorder %s471, 8
      %v473 = vld [vmem:[%s367] sm:$0xff]
      %s474 = scalar_select %p472, 1, 0
      %v475 = vstv %s474
      %vm476 = vcmp.eq.s32.totalorder %v475, 1
      %v477 = vsel %vm476, %v473, 0.0
      %v478 = vpack.c.bf16 %v477, %v477
      %s479 = scalar_lea.vmem [#allocation2], 80
      %480 = vst.msk [vmem:[%s479] sm:$0xf] %vm383, %v478
      %v481 = vld [vmem:[#allocation2 + $0x4] sm:$0xf]
      %v482 = vld [vmem:[#allocation2 + $0x8] sm:$0xf]
      %v483 = vld [vmem:[#allocation2 + $0xc] sm:$0xf]
      %v484 = vld [vmem:[#allocation2 + $0x10] sm:$0xf]
      %v485 = vld [vmem:[#allocation2 + $0x14] sm:$0xf]
      %v486 = vld [vmem:[#allocation2 + $0x18] sm:$0xf]
      %v487 = vld [vmem:[#allocation2 + $0x1c] sm:$0xf]
      %v488 = vld [vmem:[#allocation2 + $0x20] sm:$0xf]
      %v489 = vld [vmem:[#allocation2 + $0x24] sm:$0xf]
      %v490 = vld [vmem:[#allocation2 + $0x28] sm:$0xf]
      %v491 = vld [vmem:[#allocation2 + $0x2c] sm:$0xf]
      %v492 = vld [vmem:[#allocation2 + $0x30] sm:$0xf]
      %v493 = vld [vmem:[#allocation2 + $0x34] sm:$0xf]
      %v494 = vld [vmem:[#allocation2 + $0x38] sm:$0xf]
      %v495 = vld [vmem:[#allocation2 + $0x3c] sm:$0xf]
      %v496 = vld [vmem:[#allocation2 + $0x40] sm:$0xf]
      %v497 = vld [vmem:[#allocation2 + $0x44] sm:$0xf]
      %v498 = vld [vmem:[#allocation2 + $0x48] sm:$0xf]
      %v499 = vld [vmem:[#allocation2 + $0x4c] sm:$0xf]
      %v500 = vld [vmem:[#allocation2 + $0x50] sm:$0xf]
      %v501 = vld [vmem:[#allocation2 + $0x54] sm:$0xf]
      %v502 = vld [vmem:[#allocation2 + $0x58] sm:$0xf]
      %v503 = vld [vmem:[%s4] sm:$0x1]
      %v504 = vld [vmem:[%s3] sm:$0x3]
      %s505 = scalar_lea.vmem %s3, 6
      %v506 = vld [vmem:[%s505] sm:$0x3]
      %v524 = vunpack.c.l.b16 %v483
      %v525 = vunpack.c.l.b16 %v484
      %v526 = vunpack.c.l.b16 %v485
      %v527 = vunpack.c.l.b16 %v486
      %v528 = vunpack.c.l.b16 %v487
      %v529 = vunpack.c.l.b16 %v488
      %v530 = vunpack.c.l.b16 %v489
      %v531 = vunpack.c.l.b16 %v490
      %v532 = vunpack.c.l.b16 %v491
      %v533 = vunpack.c.l.b16 %v492
      %v534 = vunpack.c.l.b16 %v493
      %v535 = vunpack.c.l.b16 %v494
      %v536 = vunpack.c.l.b16 %v495
      %v537 = vunpack.c.l.b16 %v496
      %v538 = vunpack.c.l.b16 %v497
      %v539 = vunpack.c.l.b16 %v498
      %v540 = vunpack.c.l.b16 %v499
      %v541 = vpack.c.b16 %v525, %v524
      %v542 = vpack.c.b16 %v527, %v526
      %v543 = vpack.c.b16 %v529, %v528
      %v544 = vpack.c.b16 %v531, %v530
      %v545 = vpack.c.b16 %v533, %v532
      %v546 = vpack.c.b16 %v535, %v534
      %v547 = vpack.c.b16 %v537, %v536
      %v548 = vpack.c.b16 %v539, %v538
      %v549 = vpack.c.b16 %v540, %v540
      %vm550 = vsmask.f32 4352
      %v552 = vshrl.u32 %v541, 16
      %v554 = vrot.slane %v552, 3
      %v555 = vshll.u32 %v541, 16
      %v557 = vrot.slane %v555, 4
      %v558 = vor.u32 %v554, %v557
      %v560 = vshrl.u32 %v542, 16
      %v562 = vrot.slane %v560, 3
      %v563 = vshll.u32 %v542, 16
      %v565 = vrot.slane %v563, 4
      %v566 = vor.u32 %v562, %v565
      %v567 = vsel %vm550, %v558, %v566
      %v569 = vshrl.u32 %v543, 16
      %v571 = vrot.slane %v569, 3
      %v572 = vshll.u32 %v543, 16
      %v574 = vrot.slane %v572, 4
      %v575 = vor.u32 %v571, %v574
      %v576 = vsel %vm550, %v566, %v575
      %v578 = vshrl.u32 %v544, 16
      %v580 = vrot.slane %v578, 3
      %v581 = vshll.u32 %v544, 16
      %v583 = vrot.slane %v581, 4
      %v584 = vor.u32 %v580, %v583
      %v585 = vsel %vm550, %v575, %v584
      %v587 = vshrl.u32 %v545, 16
      %v589 = vrot.slane %v587, 3
      %v590 = vshll.u32 %v545, 16
      %v592 = vrot.slane %v590, 4
      %v593 = vor.u32 %v589, %v592
      %v594 = vsel %vm550, %v584, %v593
      %v596 = vshrl.u32 %v546, 16
      %v598 = vrot.slane %v596, 3
      %v599 = vshll.u32 %v546, 16
      %v601 = vrot.slane %v599, 4
      %v602 = vor.u32 %v598, %v601
      %v603 = vsel %vm550, %v593, %v602
      %v605 = vshrl.u32 %v547, 16
      %v607 = vrot.slane %v605, 3
      %v608 = vshll.u32 %v547, 16
      %v610 = vrot.slane %v608, 4
      %v611 = vor.u32 %v607, %v610
      %v612 = vsel %vm550, %v602, %v611
      %v614 = vshrl.u32 %v548, 16
      %v616 = vrot.slane %v614, 3
      %v617 = vshll.u32 %v548, 16
      %v619 = vrot.slane %v617, 4
      %v620 = vor.u32 %v616, %v619
      %v621 = vsel %vm550, %v611, %v620
      %v623 = vshrl.u32 %v549, 16
      %v625 = vrot.slane %v623, 3
      %v626 = vshll.u32 %v549, 16
      %v628 = vrot.slane %v626, 4
      %v629 = vor.u32 %v625, %v628
      %v630 = vsel %vm550, %v620, %v629
      %vm631 = vcmask 31744
      %v633 = vsel %vm631, %v567, 0
      %v636 = vsel %vm631, %v576, 0
      %v639 = vsel %vm631, %v585, 0
      %v642 = vsel %vm631, %v594, 0
      %v645 = vsel %vm631, %v603, 0
      %v648 = vsel %vm631, %v612, 0
      %v651 = vsel %vm631, %v621, 0
      %v654 = vsel %vm631, %v630, 0
      %vm656 = vcmask 1041408
      %v658 = vsel %vm656, %v506, 0
      %660 = vmatpush.bf16.msra.mxu0 0
      %661 = vmatpush.bf16.msra.mxu0 0
      %662 = vmatpush.bf16.msra.mxu0 0
      %663 = vmatpush.bf16.msra.mxu0 0
      %664 = vmatpush.bf16.msra.mxu0 0
      %665 = vmatpush.bf16.msra.mxu0 0
      %666 = vmatpush.bf16.msra.mxu0 0
      %667 = vmatpush.bf16.msra.mxu0 %v658
      %668 = vmatmul.bf16.gmra.mxu0 %v633
      %v669 = vpop.f32.mrf.mxu0
      %v670 = vadd.f32 0.0, %v669
      %v671 = vpop.f32.mrf.mxu0
      %672 = vmatmul.bf16.gmra.mxu0 %v636
      %v673 = vpop.f32.mrf.mxu0
      %v674 = vadd.f32 0.0, %v673
      %v675 = vpop.f32.mrf.mxu0
      %676 = vmatmul.bf16.gmra.mxu0 %v639
      %v677 = vpop.f32.mrf.mxu0
      %v678 = vadd.f32 0.0, %v677
      %v679 = vpop.f32.mrf.mxu0
      %680 = vmatmul.bf16.gmra.mxu0 %v642
      %v681 = vpop.f32.mrf.mxu0
      %v682 = vadd.f32 0.0, %v681
      %v683 = vpop.f32.mrf.mxu0
      %684 = vmatmul.bf16.gmra.mxu0 %v645
      %v685 = vpop.f32.mrf.mxu0
      %v686 = vadd.f32 0.0, %v685
      %v687 = vpop.f32.mrf.mxu0
      %688 = vmatmul.bf16.gmra.mxu0 %v648
      %v689 = vpop.f32.mrf.mxu0
      %v690 = vadd.f32 0.0, %v689
      %v691 = vpop.f32.mrf.mxu0
      %692 = vmatmul.bf16.gmra.mxu0 %v651
      %v693 = vpop.f32.mrf.mxu0
      %v694 = vadd.f32 0.0, %v693
      %v695 = vpop.f32.mrf.mxu0
      %696 = vmatmul.bf16.gmra.mxu0 %v654
      %v697 = vpop.f32.mrf.mxu0
      %v698 = vadd.f32 0.0, %v697
      %v699 = vpop.f32.mrf.mxu0
      %700 = vdwg.mxu0
      %v703 = vunpack.c.l.b16 %v481
      %v704 = vunpack.c.l.b16 %v482
      %v705 = vpack.c.b16 %v704, %v703
      %v706 = vpack.c.b16 %v538, %v538
      %v708 = vshrl.u32 %v705, 16
      %v710 = vrot.slane %v708, 3
      %v711 = vshll.u32 %v705, 16
      %v713 = vrot.slane %v711, 4
      %v714 = vor.u32 %v710, %v713
      %v715 = vsel %vm550, %v714, %v558
      %v717 = vshrl.u32 %v706, 16
      %v719 = vrot.slane %v717, 3
      %v720 = vshll.u32 %v706, 16
      %v722 = vrot.slane %v720, 4
      %v723 = vor.u32 %v719, %v722
      %v724 = vsel %vm550, %v611, %v723
      %v726 = vsel %vm631, %v715, 0
      %v729 = vsel %vm631, %v724, 0
      %v732 = vsel %vm656, %v504, 0
      %734 = vmatpush.bf16.msra.mxu0 0
      %735 = vmatpush.bf16.msra.mxu0 0
      %736 = vmatpush.bf16.msra.mxu0 0
      %737 = vmatpush.bf16.msra.mxu0 0
      %738 = vmatpush.bf16.msra.mxu0 0
      %739 = vmatpush.bf16.msra.mxu0 0
      %740 = vmatpush.bf16.msra.mxu0 0
      %741 = vmatpush.bf16.msra.mxu0 %v732
      %742 = vmatmul.bf16.gmra.mxu0 %v726
      %v743 = vpop.f32.mrf.mxu0
      %v744 = vadd.f32 %v670, %v743
      %v745 = vpop.f32.mrf.mxu0
      %746 = vmatmul.bf16.gmra.mxu0 %v633
      %v747 = vpop.f32.mrf.mxu0
      %v748 = vadd.f32 %v674, %v747
      %v749 = vpop.f32.mrf.mxu0
      %750 = vmatmul.bf16.gmra.mxu0 %v636
      %v751 = vpop.f32.mrf.mxu0
      %v752 = vadd.f32 %v678, %v751
      %v753 = vpop.f32.mrf.mxu0
      %754 = vmatmul.bf16.gmra.mxu0 %v639
      %v755 = vpop.f32.mrf.mxu0
      %v756 = vadd.f32 %v682, %v755
      %v757 = vpop.f32.mrf.mxu0
      %758 = vmatmul.bf16.gmra.mxu0 %v642
      %v759 = vpop.f32.mrf.mxu0
      %v760 = vadd.f32 %v686, %v759
      %v761 = vpop.f32.mrf.mxu0
      %762 = vmatmul.bf16.gmra.mxu0 %v645
      %v763 = vpop.f32.mrf.mxu0
      %v764 = vadd.f32 %v690, %v763
      %v765 = vpop.f32.mrf.mxu0
      %766 = vmatmul.bf16.gmra.mxu0 %v648
      %v767 = vpop.f32.mrf.mxu0
      %v768 = vadd.f32 %v694, %v767
      %v769 = vpop.f32.mrf.mxu0
      %770 = vmatmul.bf16.gmra.mxu0 %v729
      %v771 = vpop.f32.mrf.mxu0
      %v772 = vadd.f32 %v698, %v771
      %v773 = vpop.f32.mrf.mxu0
      %774 = vdwg.mxu0
      %s775 = scalar_lea.vmem %s3, 12
      %v776 = vld [vmem:[%s775] sm:$0x3]
      %v779 = vunpack.c.l.b16 %v500
      %v780 = vunpack.c.l.b16 %v501
      %v781 = vpack.c.b16 %v779, %v540
      %v782 = vpack.c.b16 %v780, %v780
      %v784 = vshrl.u32 %v781, 16
      %v786 = vrot.slane %v784, 3
      %v787 = vshll.u32 %v781, 16
      %v789 = vrot.slane %v787, 4
      %v790 = vor.u32 %v786, %v789
      %v791 = vsel %vm550, %v620, %v790
      %v793 = vshrl.u32 %v782, 16
      %v795 = vrot.slane %v793, 3
      %v796 = vshll.u32 %v782, 16
      %v798 = vrot.slane %v796, 4
      %v799 = vor.u32 %v795, %v798
      %v800 = vsel %vm550, %v790, %v799
      %v802 = vsel %vm631, %v791, 0
      %v805 = vsel %vm631, %v800, 0
      %v808 = vsel %vm656, %v776, 0
      %810 = vmatpush.bf16.msra.mxu0 0
      %811 = vmatpush.bf16.msra.mxu0 0
      %812 = vmatpush.bf16.msra.mxu0 0
      %813 = vmatpush.bf16.msra.mxu0 0
      %814 = vmatpush.bf16.msra.mxu0 0
      %815 = vmatpush.bf16.msra.mxu0 0
      %816 = vmatpush.bf16.msra.mxu0 0
      %817 = vmatpush.bf16.msra.mxu0 %v808
      %818 = vmatmul.bf16.gmra.mxu0 %v636
      %v819 = vpop.f32.mrf.mxu0
      %v820 = vadd.f32 0.0, %v819
      %v821 = vpop.f32.mrf.mxu0
      %822 = vmatmul.bf16.gmra.mxu0 %v639
      %v823 = vpop.f32.mrf.mxu0
      %v824 = vadd.f32 0.0, %v823
      %v825 = vpop.f32.mrf.mxu0
      %826 = vmatmul.bf16.gmra.mxu0 %v642
      %v827 = vpop.f32.mrf.mxu0
      %v828 = vadd.f32 0.0, %v827
      %v829 = vpop.f32.mrf.mxu0
      %830 = vmatmul.bf16.gmra.mxu0 %v645
      %v831 = vpop.f32.mrf.mxu0
      %v832 = vadd.f32 0.0, %v831
      %v833 = vpop.f32.mrf.mxu0
      %834 = vmatmul.bf16.gmra.mxu0 %v648
      %v835 = vpop.f32.mrf.mxu0
      %v836 = vadd.f32 0.0, %v835
      %v837 = vpop.f32.mrf.mxu0
      %838 = vmatmul.bf16.gmra.mxu0 %v651
      %v839 = vpop.f32.mrf.mxu0
      %v840 = vadd.f32 0.0, %v839
      %v841 = vpop.f32.mrf.mxu0
      %842 = vmatmul.bf16.gmra.mxu0 %v802
      %v843 = vpop.f32.mrf.mxu0
      %v844 = vadd.f32 0.0, %v843
      %v845 = vpop.f32.mrf.mxu0
      %846 = vmatmul.bf16.gmra.mxu0 %v805
      %v847 = vpop.f32.mrf.mxu0
      %v848 = vadd.f32 0.0, %v847
      %v849 = vpop.f32.mrf.mxu0
      %850 = vdwg.mxu0
      %v851 = vadd.f32 %v744, %v820
      %v852 = vadd.f32 %v748, %v824
      %v853 = vadd.f32 %v752, %v828
      %v854 = vadd.f32 %v756, %v832
      %v855 = vadd.f32 %v760, %v836
      %v856 = vadd.f32 %v764, %v840
      %v857 = vadd.f32 %v768, %v844
      %v858 = vadd.f32 %v772, %v848
      %s859 = scalar_lea.vmem %s3, 2
      %v860 = vld [vmem:[%s859] sm:$0x3]
      %v861 = vpack.c.b16 %v524, %v704
      %v862 = vpack.c.b16 %v526, %v525
      %v863 = vpack.c.b16 %v528, %v527
      %v864 = vpack.c.b16 %v530, %v529
      %v865 = vpack.c.b16 %v532, %v531
      %v866 = vpack.c.b16 %v534, %v533
      %v867 = vpack.c.b16 %v536, %v535
      %v868 = vpack.c.b16 %v538, %v537
      %v870 = vsel %vm631, %v861, 0
      %v873 = vsel %vm631, %v862, 0
      %v876 = vsel %vm631, %v863, 0
      %v879 = vsel %vm631, %v864, 0
      %v882 = vsel %vm631, %v865, 0
      %v885 = vsel %vm631, %v866, 0
      %v888 = vsel %vm631, %v867, 0
      %v891 = vsel %vm631, %v868, 0
      %v894 = vsel %vm656, %v860, 0
      %896 = vmatpush.bf16.msra.mxu0 0
      %897 = vmatpush.bf16.msra.mxu0 0
      %898 = vmatpush.bf16.msra.mxu0 0
      %899 = vmatpush.bf16.msra.mxu0 0
      %900 = vmatpush.bf16.msra.mxu0 0
      %901 = vmatpush.bf16.msra.mxu0 0
      %902 = vmatpush.bf16.msra.mxu0 0
      %903 = vmatpush.bf16.msra.mxu0 %v894
      %904 = vmatmul.bf16.gmra.mxu0 %v870
      %v905 = vpop.f32.mrf.mxu0
      %v906 = vadd.f32 0.0, %v905
      %v907 = vpop.f32.mrf.mxu0
      %908 = vmatmul.bf16.gmra.mxu0 %v873
      %v909 = vpop.f32.mrf.mxu0
      %v910 = vadd.f32 0.0, %v909
      %v911 = vpop.f32.mrf.mxu0
      %912 = vmatmul.bf16.gmra.mxu0 %v876
      %v913 = vpop.f32.mrf.mxu0
      %v914 = vadd.f32 0.0, %v913
      %v915 = vpop.f32.mrf.mxu0
      %916 = vmatmul.bf16.gmra.mxu0 %v879
      %v917 = vpop.f32.mrf.mxu0
      %v918 = vadd.f32 0.0, %v917
      %v919 = vpop.f32.mrf.mxu0
      %920 = vmatmul.bf16.gmra.mxu0 %v882
      %v921 = vpop.f32.mrf.mxu0
      %v922 = vadd.f32 0.0, %v921
      %v923 = vpop.f32.mrf.mxu0
      %924 = vmatmul.bf16.gmra.mxu0 %v885
      %v925 = vpop.f32.mrf.mxu0
      %v926 = vadd.f32 0.0, %v925
      %v927 = vpop.f32.mrf.mxu0
      %928 = vmatmul.bf16.gmra.mxu0 %v888
      %v929 = vpop.f32.mrf.mxu0
      %v930 = vadd.f32 0.0, %v929
      %v931 = vpop.f32.mrf.mxu0
      %932 = vmatmul.bf16.gmra.mxu0 %v891
      %v933 = vpop.f32.mrf.mxu0
      %v934 = vadd.f32 0.0, %v933
      %v935 = vpop.f32.mrf.mxu0
      %936 = vdwg.mxu0
      %v937 = vadd.f32 %v851, %v906
      %v938 = vadd.f32 %v852, %v910
      %v939 = vadd.f32 %v853, %v914
      %v940 = vadd.f32 %v854, %v918
      %v941 = vadd.f32 %v855, %v922
      %v942 = vadd.f32 %v856, %v926
      %v943 = vadd.f32 %v857, %v930
      %v944 = vadd.f32 %v858, %v934
      %s945 = scalar_lea.vmem %s3, 8
      %v946 = vld [vmem:[%s945] sm:$0x3]
      %v947 = vpack.c.b16 %v540, %v539
      %v949 = vsel %vm631, %v947, 0
      %v952 = vsel %vm656, %v946, 0
      %954 = vmatpush.bf16.msra.mxu0 0
      %955 = vmatpush.bf16.msra.mxu0 0
      %956 = vmatpush.bf16.msra.mxu0 0
      %957 = vmatpush.bf16.msra.mxu0 0
      %958 = vmatpush.bf16.msra.mxu0 0
      %959 = vmatpush.bf16.msra.mxu0 0
      %960 = vmatpush.bf16.msra.mxu0 0
      %961 = vmatpush.bf16.msra.mxu0 %v952
      %962 = vmatmul.bf16.gmra.mxu0 %v873
      %v963 = vpop.f32.mrf.mxu0
      %v964 = vadd.f32 0.0, %v963
      %v965 = vpop.f32.mrf.mxu0
      %966 = vmatmul.bf16.gmra.mxu0 %v876
      %v967 = vpop.f32.mrf.mxu0
      %v968 = vadd.f32 0.0, %v967
      %v969 = vpop.f32.mrf.mxu0
      %970 = vmatmul.bf16.gmra.mxu0 %v879
      %v971 = vpop.f32.mrf.mxu0
      %v972 = vadd.f32 0.0, %v971
      %v973 = vpop.f32.mrf.mxu0
      %974 = vmatmul.bf16.gmra.mxu0 %v882
      %v975 = vpop.f32.mrf.mxu0
      %v976 = vadd.f32 0.0, %v975
      %v977 = vpop.f32.mrf.mxu0
      %978 = vmatmul.bf16.gmra.mxu0 %v885
      %v979 = vpop.f32.mrf.mxu0
      %v980 = vadd.f32 0.0, %v979
      %v981 = vpop.f32.mrf.mxu0
      %982 = vmatmul.bf16.gmra.mxu0 %v888
      %v983 = vpop.f32.mrf.mxu0
      %v984 = vadd.f32 0.0, %v983
      %v985 = vpop.f32.mrf.mxu0
      %986 = vmatmul.bf16.gmra.mxu0 %v891
      %v987 = vpop.f32.mrf.mxu0
      %v988 = vadd.f32 0.0, %v987
      %v989 = vpop.f32.mrf.mxu0
      %990 = vmatmul.bf16.gmra.mxu0 %v949
      %v991 = vpop.f32.mrf.mxu0
      %v992 = vadd.f32 0.0, %v991
      %v993 = vpop.f32.mrf.mxu0
      %994 = vdwg.mxu0
      %v995 = vadd.f32 %v937, %v964
      %v996 = vadd.f32 %v938, %v968
      %v997 = vadd.f32 %v939, %v972
      %v998 = vadd.f32 %v940, %v976
      %v999 = vadd.f32 %v941, %v980
      %v1000 = vadd.f32 %v942, %v984
      %v1001 = vadd.f32 %v943, %v988
      %v1002 = vadd.f32 %v944, %v992
      %s1003 = scalar_lea.vmem %s3, 14
      %v1004 = vld [vmem:[%s1003] sm:$0x3]
      %v1005 = vpack.c.b16 %v780, %v779
      %v1007 = vsel %vm631, %v1005, 0
      %v1010 = vsel %vm656, %v1004, 0
      %1012 = vmatpush.bf16.msra.mxu0 0
      %1013 = vmatpush.bf16.msra.mxu0 0
      %1014 = vmatpush.bf16.msra.mxu0 0
      %1015 = vmatpush.bf16.msra.mxu0 0
      %1016 = vmatpush.bf16.msra.mxu0 0
      %1017 = vmatpush.bf16.msra.mxu0 0
      %1018 = vmatpush.bf16.msra.mxu0 0
      %1019 = vmatpush.bf16.msra.mxu0 %v1010
      %1020 = vmatmul.bf16.gmra.mxu0 %v876
      %v1021 = vpop.f32.mrf.mxu0
      %v1022 = vadd.f32 0.0, %v1021
      %v1023 = vpop.f32.mrf.mxu0
      %1024 = vmatmul.bf16.gmra.mxu0 %v879
      %v1025 = vpop.f32.mrf.mxu0
      %v1026 = vadd.f32 0.0, %v1025
      %v1027 = vpop.f32.mrf.mxu0
      %1028 = vmatmul.bf16.gmra.mxu0 %v882
      %v1029 = vpop.f32.mrf.mxu0
      %v1030 = vadd.f32 0.0, %v1029
      %v1031 = vpop.f32.mrf.mxu0
      %1032 = vmatmul.bf16.gmra.mxu0 %v885
      %v1033 = vpop.f32.mrf.mxu0
      %v1034 = vadd.f32 0.0, %v1033
      %v1035 = vpop.f32.mrf.mxu0
      %1036 = vmatmul.bf16.gmra.mxu0 %v888
      %v1037 = vpop.f32.mrf.mxu0
      %v1038 = vadd.f32 0.0, %v1037
      %v1039 = vpop.f32.mrf.mxu0
      %1040 = vmatmul.bf16.gmra.mxu0 %v891
      %v1041 = vpop.f32.mrf.mxu0
      %v1042 = vadd.f32 0.0, %v1041
      %v1043 = vpop.f32.mrf.mxu0
      %1044 = vmatmul.bf16.gmra.mxu0 %v949
      %v1045 = vpop.f32.mrf.mxu0
      %v1046 = vadd.f32 0.0, %v1045
      %v1047 = vpop.f32.mrf.mxu0
      %1048 = vmatmul.bf16.gmra.mxu0 %v1007
      %v1049 = vpop.f32.mrf.mxu0
      %v1050 = vadd.f32 0.0, %v1049
      %v1051 = vpop.f32.mrf.mxu0
      %1052 = vdwg.mxu0
      %v1053 = vadd.f32 %v995, %v1022
      %v1054 = vadd.f32 %v996, %v1026
      %v1055 = vadd.f32 %v997, %v1030
      %v1056 = vadd.f32 %v998, %v1034
      %v1057 = vadd.f32 %v999, %v1038
      %v1058 = vadd.f32 %v1000, %v1042
      %v1059 = vadd.f32 %v1001, %v1046
      %v1060 = vadd.f32 %v1002, %v1050
      %s1061 = scalar_lea.vmem %s3, 4
      %v1062 = vld [vmem:[%s1061] sm:$0x3]
      %v1063 = vpack.c.b16 %v539, %v539
      %vm1064 = vsmask.f32 7424
      %v1065 = vshrl.u32 %v861, 16
      %v1067 = vshll.u32 %v861, 16
      %v1069 = vrot.slane %v1067, 1
      %v1070 = vor.u32 %v1065, %v1069
      %v1071 = vshll.u32 %v862, 16
      %v1073 = vrot.slane %v1071, 1
      %v1074 = vsel %vm1064, %v1070, %v1073
      %v1075 = vshrl.u32 %v862, 16
      %v1077 = vor.u32 %v1075, %v1073
      %v1078 = vshll.u32 %v863, 16
      %v1080 = vrot.slane %v1078, 1
      %v1081 = vsel %vm1064, %v1077, %v1080
      %v1082 = vshrl.u32 %v863, 16
      %v1084 = vor.u32 %v1082, %v1080
      %v1085 = vshll.u32 %v864, 16
      %v1087 = vrot.slane %v1085, 1
      %v1088 = vsel %vm1064, %v1084, %v1087
      %v1089 = vshrl.u32 %v864, 16
      %v1091 = vor.u32 %v1089, %v1087
      %v1092 = vshll.u32 %v865, 16
      %v1094 = vrot.slane %v1092, 1
      %v1095 = vsel %vm1064, %v1091, %v1094
      %v1096 = vshrl.u32 %v865, 16
      %v1098 = vor.u32 %v1096, %v1094
      %v1099 = vshll.u32 %v866, 16
      %v1101 = vrot.slane %v1099, 1
      %v1102 = vsel %vm1064, %v1098, %v1101
      %v1103 = vshrl.u32 %v866, 16
      %v1105 = vor.u32 %v1103, %v1101
      %v1106 = vshll.u32 %v867, 16
      %v1108 = vrot.slane %v1106, 1
      %v1109 = vsel %vm1064, %v1105, %v1108
      %v1110 = vshrl.u32 %v867, 16
      %v1112 = vor.u32 %v1110, %v1108
      %v1113 = vshll.u32 %v868, 16
      %v1115 = vrot.slane %v1113, 1
      %v1116 = vsel %vm1064, %v1112, %v1115
      %v1117 = vshrl.u32 %v868, 16
      %v1119 = vor.u32 %v1117, %v1115
      %v1121 = vshll.u32 %v1063, 16
      %v1123 = vrot.slane %v1121, 1
      %v1124 = vsel %vm1064, %v1119, %v1123
      %v1126 = vsel %vm631, %v1074, 0
      %v1129 = vsel %vm631, %v1081, 0
      %v1132 = vsel %vm631, %v1088, 0
      %v1135 = vsel %vm631, %v1095, 0
      %v1138 = vsel %vm631, %v1102, 0
      %v1141 = vsel %vm631, %v1109, 0
      %v1144 = vsel %vm631, %v1116, 0
      %v1147 = vsel %vm631, %v1124, 0
      %v1150 = vsel %vm656, %v1062, 0
      %1152 = vmatpush.bf16.msra.mxu0 0
      %1153 = vmatpush.bf16.msra.mxu0 0
      %1154 = vmatpush.bf16.msra.mxu0 0
      %1155 = vmatpush.bf16.msra.mxu0 0
      %1156 = vmatpush.bf16.msra.mxu0 0
      %1157 = vmatpush.bf16.msra.mxu0 0
      %1158 = vmatpush.bf16.msra.mxu0 0
      %1159 = vmatpush.bf16.msra.mxu0 %v1150
      %1160 = vmatmul.bf16.gmra.mxu0 %v1126
      %v1161 = vpop.f32.mrf.mxu0
      %v1162 = vadd.f32 0.0, %v1161
      %v1163 = vpop.f32.mrf.mxu0
      %1164 = vmatmul.bf16.gmra.mxu0 %v1129
      %v1165 = vpop.f32.mrf.mxu0
      %v1166 = vadd.f32 0.0, %v1165
      %v1167 = vpop.f32.mrf.mxu0
      %1168 = vmatmul.bf16.gmra.mxu0 %v1132
      %v1169 = vpop.f32.mrf.mxu0
      %v1170 = vadd.f32 0.0, %v1169
      %v1171 = vpop.f32.mrf.mxu0
      %1172 = vmatmul.bf16.gmra.mxu0 %v1135
      %v1173 = vpop.f32.mrf.mxu0
      %v1174 = vadd.f32 0.0, %v1173
      %v1175 = vpop.f32.mrf.mxu0
      %1176 = vmatmul.bf16.gmra.mxu0 %v1138
      %v1177 = vpop.f32.mrf.mxu0
      %v1178 = vadd.f32 0.0, %v1177
      %v1179 = vpop.f32.mrf.mxu0
      %1180 = vmatmul.bf16.gmra.mxu0 %v1141
      %v1181 = vpop.f32.mrf.mxu0
      %v1182 = vadd.f32 0.0, %v1181
      %v1183 = vpop.f32.mrf.mxu0
      %1184 = vmatmul.bf16.gmra.mxu0 %v1144
      %v1185 = vpop.f32.mrf.mxu0
      %v1186 = vadd.f32 0.0, %v1185
      %v1187 = vpop.f32.mrf.mxu0
      %1188 = vmatmul.bf16.gmra.mxu0 %v1147
      %v1189 = vpop.f32.mrf.mxu0
      %v1190 = vadd.f32 0.0, %v1189
      %v1191 = vpop.f32.mrf.mxu0
      %1192 = vdwg.mxu0
      %v1193 = vadd.f32 %v1053, %v1162
      %v1194 = vadd.f32 %v1054, %v1166
      %v1195 = vadd.f32 %v1055, %v1170
      %v1196 = vadd.f32 %v1056, %v1174
      %v1197 = vadd.f32 %v1057, %v1178
      %v1198 = vadd.f32 %v1058, %v1182
      %v1199 = vadd.f32 %v1059, %v1186
      %v1200 = vadd.f32 %v1060, %v1190
      %s1201 = scalar_lea.vmem %s3, 10
      %v1202 = vld [vmem:[%s1201] sm:$0x3]
      %v1203 = vpack.c.b16 %v779, %v779
      %v1204 = vshll.u32 %v947, 16
      %v1206 = vrot.slane %v1204, 1
      %v1207 = vsel %vm1064, %v1119, %v1206
      %v1208 = vshrl.u32 %v947, 16
      %v1210 = vor.u32 %v1208, %v1206
      %v1212 = vshll.u32 %v1203, 16
      %v1214 = vrot.slane %v1212, 1
      %v1215 = vsel %vm1064, %v1210, %v1214
      %v1217 = vsel %vm631, %v1207, 0
      %v1220 = vsel %vm631, %v1215, 0
      %v1223 = vsel %vm656, %v1202, 0
      %1225 = vmatpush.bf16.msra.mxu0 0
      %1226 = vmatpush.bf16.msra.mxu0 0
      %1227 = vmatpush.bf16.msra.mxu0 0
      %1228 = vmatpush.bf16.msra.mxu0 0
      %1229 = vmatpush.bf16.msra.mxu0 0
      %1230 = vmatpush.bf16.msra.mxu0 0
      %1231 = vmatpush.bf16.msra.mxu0 0
      %1232 = vmatpush.bf16.msra.mxu0 %v1223
      %1233 = vmatmul.bf16.gmra.mxu0 %v1129
      %v1234 = vpop.f32.mrf.mxu0
      %v1235 = vadd.f32 0.0, %v1234
      %v1236 = vpop.f32.mrf.mxu0
      %1237 = vmatmul.bf16.gmra.mxu0 %v1132
      %v1238 = vpop.f32.mrf.mxu0
      %v1239 = vadd.f32 0.0, %v1238
      %v1240 = vpop.f32.mrf.mxu0
      %1241 = vmatmul.bf16.gmra.mxu0 %v1135
      %v1242 = vpop.f32.mrf.mxu0
      %v1243 = vadd.f32 0.0, %v1242
      %v1244 = vpop.f32.mrf.mxu0
      %1245 = vmatmul.bf16.gmra.mxu0 %v1138
      %v1246 = vpop.f32.mrf.mxu0
      %v1247 = vadd.f32 0.0, %v1246
      %v1248 = vpop.f32.mrf.mxu0
      %1249 = vmatmul.bf16.gmra.mxu0 %v1141
      %v1250 = vpop.f32.mrf.mxu0
      %v1251 = vadd.f32 0.0, %v1250
      %v1252 = vpop.f32.mrf.mxu0
      %1253 = vmatmul.bf16.gmra.mxu0 %v1144
      %v1254 = vpop.f32.mrf.mxu0
      %v1255 = vadd.f32 0.0, %v1254
      %v1256 = vpop.f32.mrf.mxu0
      %1257 = vmatmul.bf16.gmra.mxu0 %v1217
      %v1258 = vpop.f32.mrf.mxu0
      %v1259 = vadd.f32 0.0, %v1258
      %v1260 = vpop.f32.mrf.mxu0
      %1261 = vmatmul.bf16.gmra.mxu0 %v1220
      %v1262 = vpop.f32.mrf.mxu0
      %v1263 = vadd.f32 0.0, %v1262
      %v1264 = vpop.f32.mrf.mxu0
      %1265 = vdwg.mxu0
      %v1266 = vadd.f32 %v1193, %v1235
      %v1267 = vadd.f32 %v1194, %v1239
      %v1268 = vadd.f32 %v1195, %v1243
      %v1269 = vadd.f32 %v1196, %v1247
      %v1270 = vadd.f32 %v1197, %v1251
      %v1271 = vadd.f32 %v1198, %v1255
      %v1272 = vadd.f32 %v1199, %v1259
      %v1273 = vadd.f32 %v1200, %v1263
      %s1274 = scalar_lea.vmem %s3, 16
      %v1275 = vld [vmem:[%s1274] sm:$0x3]
      %v1277 = vunpack.c.l.b16 %v502
      %v1278 = vpack.c.b16 %v1277, %v1277
      %v1279 = vshll.u32 %v1005, 16
      %v1281 = vrot.slane %v1279, 1
      %v1282 = vsel %vm1064, %v1210, %v1281
      %v1283 = vshrl.u32 %v1005, 16
      %v1285 = vor.u32 %v1283, %v1281
      %v1287 = vshll.u32 %v1278, 16
      %v1289 = vrot.slane %v1287, 1
      %v1290 = vsel %vm1064, %v1285, %v1289
      %v1292 = vsel %vm631, %v1282, 0
      %v1295 = vsel %vm631, %v1290, 0
      %v1298 = vsel %vm656, %v1275, 0
      %1300 = vmatpush.bf16.msra.mxu0 0
      %1301 = vmatpush.bf16.msra.mxu0 0
      %1302 = vmatpush.bf16.msra.mxu0 0
      %1303 = vmatpush.bf16.msra.mxu0 0
      %1304 = vmatpush.bf16.msra.mxu0 0
      %1305 = vmatpush.bf16.msra.mxu0 0
      %1306 = vmatpush.bf16.msra.mxu0 0
      %1307 = vmatpush.bf16.msra.mxu0 %v1298
      %1308 = vmatmul.bf16.gmra.mxu0 %v1132
      %v1309 = vpop.f32.mrf.mxu0
      %v1310 = vadd.f32 0.0, %v1309
      %v1311 = vpop.f32.mrf.mxu0
      %1312 = vmatmul.bf16.gmra.mxu0 %v1135
      %v1313 = vpop.f32.mrf.mxu0
      %v1314 = vadd.f32 0.0, %v1313
      %v1315 = vpop.f32.mrf.mxu0
      %1316 = vmatmul.bf16.gmra.mxu0 %v1138
      %v1317 = vpop.f32.mrf.mxu0
      %v1318 = vadd.f32 0.0, %v1317
      %v1319 = vpop.f32.mrf.mxu0
      %1320 = vmatmul.bf16.gmra.mxu0 %v1141
      %v1321 = vpop.f32.mrf.mxu0
      %v1322 = vadd.f32 0.0, %v1321
      %v1323 = vpop.f32.mrf.mxu0
      %1324 = vmatmul.bf16.gmra.mxu0 %v1144
      %v1325 = vpop.f32.mrf.mxu0
      %v1326 = vadd.f32 0.0, %v1325
      %v1327 = vpop.f32.mrf.mxu0
      %1328 = vmatmul.bf16.gmra.mxu0 %v1217
      %v1329 = vpop.f32.mrf.mxu0
      %v1330 = vadd.f32 0.0, %v1329
      %v1331 = vpop.f32.mrf.mxu0
      %1332 = vmatmul.bf16.gmra.mxu0 %v1292
      %v1333 = vpop.f32.mrf.mxu0
      %v1334 = vadd.f32 0.0, %v1333
      %v1335 = vpop.f32.mrf.mxu0
      %1336 = vmatmul.bf16.gmra.mxu0 %v1295
      %v1337 = vpop.f32.mrf.mxu0
      %v1338 = vadd.f32 0.0, %v1337
      %v1339 = vpop.f32.mrf.mxu0
      %1340 = vdwg.mxu0
      %v1341 = vadd.f32 %v1266, %v1310
      %v1342 = vadd.f32 %v1267, %v1314
      %v1343 = vadd.f32 %v1268, %v1318
      %v1344 = vadd.f32 %v1269, %v1322
      %v1345 = vadd.f32 %v1270, %v1326
      %v1346 = vadd.f32 %v1271, %v1330
      %v1347 = vadd.f32 %v1272, %v1334
      %v1348 = vadd.f32 %v1273, %v1338
      %v1350 = vperm.slane %v503, 0
      %v1352 = vadd.f32 %v1341, %v1350
      %v1353 = vadd.f32 %v1342, %v1350
      %v1354 = vadd.f32 %v1343, %v1350
      %v1355 = vadd.f32 %v1344, %v1350
      %v1356 = vadd.f32 %v1345, %v1350
      %v1357 = vadd.f32 %v1346, %v1350
      %v1358 = vadd.f32 %v1347, %v1350
      %v1359 = vadd.f32 %v1348, %v1350
      %v1360 = vmax.f32 %v1352, 0.0
      %v1361 = vmax.f32 %v1353, 0.0
      %v1362 = vmax.f32 %v1354, 0.0
      %v1363 = vmax.f32 %v1355, 0.0
      %v1364 = vmax.f32 %v1356, 0.0
      %v1365 = vmax.f32 %v1357, 0.0
      %v1366 = vmax.f32 %v1358, 0.0
      %v1367 = vmax.f32 %v1359, 0.0
      %1368 = vst.msk [vmem:[%s380] sm:$0xff] %vm631, %v1360
      %1369 = vst.msk [vmem:[%s380 + $0x8] sm:$0xff] %vm631, %v1361
      %1370 = vst.msk [vmem:[%s380 + $0x10] sm:$0xff] %vm631, %v1362
      %1371 = vst.msk [vmem:[%s380 + $0x18] sm:$0xff] %vm631, %v1363
      %1372 = vst.msk [vmem:[%s380 + $0x20] sm:$0xff] %vm631, %v1364
      %1373 = vst.msk [vmem:[%s380 + $0x28] sm:$0xff] %vm631, %v1365
      %1374 = vst.msk [vmem:[%s380 + $0x30] sm:$0xff] %vm631, %v1366
      %1375 = vst.msk [vmem:[%s380 + $0x38] sm:$0xff] %vm631, %v1367
      %s1376 = smul.u32 8, %s21
      %p1377 = scmp.lt.s32.totalorder %s20, 1
      %s1378 = scalar_select %p1377, %s20, 1
      %p1379 = scmp.lt.s32.totalorder %s1376, 7
      %s1380 = scalar_select %p1379, %s1376, 7
      %s1381 = smul.addr %s1378, 8
      %s1382 = sadd.s32 %s1380, %s1381
      %s1383 = smul.addr %s1382, 8
      %s1384 = scalar_lea.vmem %s5, %s1383
      // Predicated region
      $region41: #{_forward_nchw.3} parent=39 // pred_check
        %p1385 = pneg %p190
      $region42: #{_forward_nchw.3} parent=39 // pred_check_branch
        %1387 = sbr.rel (%p1385) target = $region44
      $region43: #{_forward_nchw.3} parent=39 // pred_region
        %s1388 = smul.u32 8, %s21
      $region44: #{_forward_nchw.3} parent=39 // pred_fallthru
        _
    $region40: #{_forward_nchw.3} parent=5 // pred_fallthru
      _
    %p1389 = scmp.le.s32.totalorder 2, %s11
    // Predicated region
    $region45: #{_forward_nchw.3} parent=5 // pred_check
      %p1390 = pneg %p1389
    $region46: #{_forward_nchw.3} parent=5 // pred_check_branch
      %1392 = sbr.rel (%p1390) target = $region48
    $region47: #{_forward_nchw.3} parent=5 // pred_region
      %s1393 = ssub.s32 %s11, 2
      // Predicated region
      $region49: #{_forward_nchw.3} parent=47 // pred_check
        %p1394 = pneg %p196
      $region50: #{_forward_nchw.3} parent=47 // pred_check_branch
        %1396 = sbr.rel (%p1394) target = $region52
      $region51: #{_forward_nchw.3} parent=47 // pred_region
        %s1397 = smul.u32 8, %s23
        %p1398 = scmp.lt.s32.totalorder %s22, 1
        %s1399 = scalar_select %p1398, %s22, 1
        %p1400 = scmp.lt.s32.totalorder %s1397, 7
        %s1401 = scalar_select %p1400, %s1397, 7
        %s1402 = smul.addr %s1399, 8
        %s1403 = sadd.s32 %s1401, %s1402
        %s1404 = smul.addr %s1403, 8
        %s1405 = scalar_lea.vmem %s5, %s1404
      $region52: #{_forward_nchw.3} parent=47 // pred_fallthru
        _
    $region48: #{_forward_nchw.3} parent=5 // pred_fallthru
      _
  $region6: #{_forward_nchw.3} parent=0 // loop_footer
    %s15 = sadd.s32 1, %s11
  $region7: #{_forward_nchw.3} parent=0 // loop_footer_branch
    %10 = sbr.rel target = $region3
  $region8: #{_forward_nchw.3} parent=0 // loop_exit
    _

// kernel: _forward_nchw.2
$region0: #{_forward_nchw.2}
  #allocation0 [shape = 'u32[]', space=smem, size = 0x4, offset = 0x4, fixed_abs, tag = 'smem constant byte address 0x4 - core index']
  #allocation1 [shape = 'u32[72,128]{1,0:T(1,128)}', space=vmem, size = 0x9000, scoped, tag = 'internal scratch']
  #allocation2 [shape = 'bf16[20,32,4]{2,1,0:T(8,128)(2,1)}', space=vmem, size = 0x28000, scoped, tag = 'scratch operand']
  %s0 = inlined_call_operand.vmem [shape: f32[2,16,16,4], index: 0, kind: input, shape index: {}, may-alias: {0,1,2}]
  %s1 = inlined_call_operand.vmem [shape: f32[2,16,16,4], index: 1, kind: input, shape index: {}, may-alias: {0,1,2}]
  %s2 = inlined_call_operand.vmem [shape: f32[2,16,16,4], index: 2, kind: input, shape index: {}, may-alias: {0,1,2}]
  %s3 = inlined_call_operand.vmem [shape: bf16[3,3,4,4], index: 3, kind: input, shape index: {}]
  %s4 = inlined_call_operand.vmem [shape: f32[1,4], index: 4, kind: input, shape index: {}]
  %s5 = inlined_call_operand.vmem [shape: f32[2,16,16,4], index: 5, kind: output, shape index: {}]
  %s6 = sld [smem:[#allocation0]]
  $region53: #{_forward_nchw.2} parent=0
    _
  %s8 = ssub.s32 1, %s6
  %s9 = scalar_select 0, %s8, %s6
  loop: start=0, step=1, limit=4
  $region2: #{_forward_nchw.2} parent=0 // loop_pre_header
    _
  $region3: #{_forward_nchw.2} parent=0 // loop_header
    %s11 = sphi 0, %s15
    %p12 = scmp.ge.s32.totalorder %s11, 4
    %s18 = sphi 0, %s30
    %s19 = sphi 0, %s26
    %s20 = sphi 0, %s18
    %s21 = sphi 0, %s19
    %s22 = sphi 0, %s20
    %s23 = sphi 0, %s21
    %s35 = sphi 0, %s37
    %s38 = sphi 0, %s35
    %s39 = sphi 0, %s38
    %s55 = sphi 0, %s39
    %s71 = sphi 0, %s73
    %s74 = sphi 0, %s71
    %s75 = sphi 0, %s74
    %s91 = sphi 0, %s75
    %s107 = sphi 0, %s109
    %s110 = sphi 0, %s107
    %s111 = sphi 0, %s110
    %s127 = sphi 0, %s111
    %s131 = sphi 0, %s131
    %s133 = sphi 0, %s131
    %s134 = sphi 0, %s133
    %s148 = sphi 0, %s134
    %s152 = sphi 0, %s152
    %s154 = sphi 0, %s152
    %s155 = sphi 0, %s154
    %s169 = sphi 0, %s155
    %s177 = sphi 0, %s179
    %s180 = sphi 0, %s177
    %s181 = sphi 0, %s180
    %s197 = sphi 0, %s181
  $region4: #{_forward_nchw.2} parent=0 // loop_header_branch
    %14 = sbr.rel (%p12) target = $region8
  $region5: #{_forward_nchw.2} parent=0 // loop_body
    %s16 = ssub.s32 %s11, 1
    %s17 = ssub.s32 %s11, 2
    %s24 = sadd.s32 1, %s19
    %p25 = scmp.ge.s32.totalorder %s24, 1
    %s26 = scalar_select %p25, 0, %s24
    %s27 = sadd.s32 1, %s18
    %s28 = scalar_select %p25, %s27, %s18
    %p29 = scmp.ge.s32.totalorder %s28, 2
    %s30 = scalar_select %p29, 0, %s28
    %s31 = ssub.s32 %s18, %s30
    %s32 = ssub.s32 %s19, %s26
    %s33 = sor.u32 %s31, %s32
    %p34 = scmp.eq.s32.totalorder %s33, 0
    %s36 = sadd.s32 %s35, 1
    %s37 = scalar_select %p34, %s35, %s36
    %p40 = pneg %p34
    %p41 = scmp.eq.s32.totalorder %s11, 1
    %p42 = por %p40, %p41
    %p43 = scmp.ne.s32.totalorder %s35, %s38
    %p44 = scmp.eq.s32.totalorder %s11, 0
    %p45 = por %p43, %p44
    %p46 = scmp.ne.s32.totalorder %s35, %s38
    %p47 = scmp.eq.s32.totalorder %s16, 1
    %p48 = por %p46, %p47
    %p49 = scmp.ne.s32.totalorder %s38, %s39
    %p50 = scmp.eq.s32.totalorder %s16, 0
    %p51 = por %p49, %p50
    %p52 = scmp.ne.s32.totalorder %s38, %s39
    %p53 = scmp.eq.s32.totalorder %s17, 1
    %p54 = por %p52, %p53
    %p56 = scmp.ne.s32.totalorder %s39, %s55
    %p57 = scmp.eq.s32.totalorder %s17, 0
    %p58 = por %p56, %p57
    %s59 = smul.u32 %s19, 16
    %s60 = ssub.s32 %s59, 1
    %p61 = scmp.gt.s32.totalorder %s60, 0
    %s62 = scalar_select %p61, %s60, 0
    %s63 = smul.u32 %s26, 16
    %s64 = ssub.s32 %s63, 1
    %p65 = scmp.gt.s32.totalorder %s64, 0
    %s66 = scalar_select %p65, %s64, 0
    %s67 = ssub.s32 %s18, %s30
    %s68 = ssub.s32 %s62, %s66
    %s69 = sor.u32 %s67, %s68
    %p70 = scmp.eq.s32.totalorder %s69, 0
    %s72 = sadd.s32 %s71, 1
    %s73 = scalar_select %p70, %s71, %s72
    %p76 = pneg %p70
    %p77 = scmp.eq.s32.totalorder %s11, 1
    %p78 = por %p76, %p77
    %p79 = scmp.ne.s32.totalorder %s71, %s74
    %p80 = scmp.eq.s32.totalorder %s11, 0
    %p81 = por %p79, %p80
    %p82 = scmp.ne.s32.totalorder %s71, %s74
    %p83 = scmp.eq.s32.totalorder %s16, 1
    %p84 = por %p82, %p83
    %p85 = scmp.ne.s32.totalorder %s74, %s75
    %p86 = scmp.eq.s32.totalorder %s16, 0
    %p87 = por %p85, %p86
    %p88 = scmp.ne.s32.totalorder %s74, %s75
    %p89 = scmp.eq.s32.totalorder %s17, 1
    %p90 = por %p88, %p89
    %p92 = scmp.ne.s32.totalorder %s75, %s91
    %p93 = scmp.eq.s32.totalorder %s17, 0
    %p94 = por %p92, %p93
    %s95 = sadd.s32 %s19, 1
    %s96 = smul.u32 %s95, 16
    %p97 = scmp.lt.s32.totalorder %s96, 15
    %s98 = scalar_select %p97, %s96, 15
    %s99 = sadd.s32 %s26, 1
    %s100 = smul.u32 %s99, 16
    %p101 = scmp.lt.s32.totalorder %s100, 15
    %s102 = scalar_select %p101, %s100, 15
    %s103 = ssub.s32 %s18, %s30
    %s104 = ssub.s32 %s98, %s102
    %s105 = sor.u32 %s103, %s104
    %p106 = scmp.eq.s32.totalorder %s105, 0
    %s108 = sadd.s32 %s107, 1
    %s109 = scalar_select %p106, %s107, %s108
    %p112 = pneg %p106
    %p113 = scmp.eq.s32.totalorder %s11, 1
    %p114 = por %p112, %p113
    %p115 = scmp.ne.s32.totalorder %s107, %s110
    %p116 = scmp.eq.s32.totalorder %s11, 0
    %p117 = por %p115, %p116
    %p118 = scmp.ne.s32.totalorder %s107, %s110
    %p119 = scmp.eq.s32.totalorder %s16, 1
    %p120 = por %p118, %p119
    %p121 = scmp.ne.s32.totalorder %s110, %s111
    %p122 = scmp.eq.s32.totalorder %s16, 0
    %p123 = por %p121, %p122
    %p124 = scmp.ne.s32.totalorder %s110, %s111
    %p125 = scmp.eq.s32.totalorder %s17, 1
    %p126 = por %p124, %p125
    %p128 = scmp.ne.s32.totalorder %s111, %s127
    %p129 = scmp.eq.s32.totalorder %s17, 0
    %p130 = por %p128, %p129
    %s132 = sadd.s32 %s131, 1
    %p135 = scmp.eq.s32.totalorder %s11, 1
    %p136 = scmp.ne.s32.totalorder %s131, %s133
    %p137 = scmp.eq.s32.totalorder %s11, 0
    %p138 = por %p136, %p137
    %p139 = scmp.ne.s32.totalorder %s131, %s133
    %p140 = scmp.eq.s32.totalorder %s16, 1
    %p141 = por %p139, %p140
    %p142 = scmp.ne.s32.totalorder %s133, %s134
    %p143 = scmp.eq.s32.totalorder %s16, 0
    %p144 = por %p142, %p143
    %p145 = scmp.ne.s32.totalorder %s133, %s134
    %p146 = scmp.eq.s32.totalorder %s17, 1
    %p147 = por %p145, %p146
    %p149 = scmp.ne.s32.totalorder %s134, %s148
    %p150 = scmp.eq.s32.totalorder %s17, 0
    %p151 = por %p149, %p150
    %s153 = sadd.s32 %s152, 1
    %p156 = scmp.eq.s32.totalorder %s11, 1
    %p157 = scmp.ne.s32.totalorder %s152, %s154
    %p158 = scmp.eq.s32.totalorder %s11, 0
    %p159 = por %p157, %p158
    %p160 = scmp.ne.s32.totalorder %s152, %s154
    %p161 = scmp.eq.s32.totalorder %s16, 1
    %p162 = por %p160, %p161
    %p163 = scmp.ne.s32.totalorder %s154, %s155
    %p164 = scmp.eq.s32.totalorder %s16, 0
    %p165 = por %p163, %p164
    %p166 = scmp.ne.s32.totalorder %s154, %s155
    %p167 = scmp.eq.s32.totalorder %s17, 1
    %p168 = por %p166, %p167
    %p170 = scmp.ne.s32.totalorder %s155, %s169
    %p171 = scmp.eq.s32.totalorder %s17, 0
    %p172 = por %p170, %p171
    %s173 = ssub.s32 %s18, %s30
    %s174 = ssub.s32 %s19, %s26
    %s175 = sor.u32 %s173, %s174
    %p176 = scmp.eq.s32.totalorder %s175, 0
    %s178 = sadd.s32 %s177, 1
    %s179 = scalar_select %p176, %s177, %s178
    %p182 = pneg %p176
    %p183 = scmp.eq.s32.totalorder %s11, 1
    %p184 = por %p182, %p183
    %p185 = scmp.ne.s32.totalorder %s177, %s180
    %p186 = scmp.eq.s32.totalorder %s11, 0
    %p187 = por %p185, %p186
    %p188 = scmp.ne.s32.totalorder %s177, %s180
    %p189 = scmp.eq.s32.totalorder %s16, 1
    %p190 = por %p188, %p189
    %p191 = scmp.ne.s32.totalorder %s180, %s181
    %p192 = scmp.eq.s32.totalorder %s16, 0
    %p193 = por %p191, %p192
    %p194 = scmp.ne.s32.totalorder %s180, %s181
    %p195 = scmp.eq.s32.totalorder %s17, 1
    %p196 = por %p194, %p195
    %p198 = scmp.ne.s32.totalorder %s181, %s197
    %p199 = scmp.eq.s32.totalorder %s17, 0
    %p200 = por %p198, %p199
    %p201 = scmp.le.s32.totalorder 1, %s11
    %p202 = scmp.lt.s32.totalorder %s11, 3
    %p203 = pnand %p201, %p202
    %p204 = pneg %p203
    // Predicated region
    $region9: #{_forward_nchw.2} parent=5 // pred_check
      _
    $region10: #{_forward_nchw.2} parent=5 // pred_check_branch
      %206 = sbr.rel (%p203) target = $region12
    $region11: #{_forward_nchw.2} parent=5 // pred_region
      %s207 = ssub.s32 %s11, 1
      // Predicated region
      $region13: #{_forward_nchw.2} parent=11 // pred_check
        %p208 = pneg %p144
      $region14: #{_forward_nchw.2} parent=11 // pred_check_branch
        %210 = sbr.rel (%p208) target = $region16
      $region15: #{_forward_nchw.2} parent=11 // pred_region
        _
      $region16: #{_forward_nchw.2} parent=11 // pred_fallthru
        _
      // Predicated region
      $region17: #{_forward_nchw.2} parent=11 // pred_check
        %p211 = pneg %p165
      $region18: #{_forward_nchw.2} parent=11 // pred_check_branch
        %213 = sbr.rel (%p211) target = $region20
      $region19: #{_forward_nchw.2} parent=11 // pred_region
        _
      $region20: #{_forward_nchw.2} parent=11 // pred_fallthru
        _
    $region12: #{_forward_nchw.2} parent=5 // pred_fallthru
      _
    %p214 = scmp.lt.s32.totalorder %s11, 2
    // Predicated region
    $region21: #{_forward_nchw.2} parent=5 // pred_check
      %p215 = pneg %p214
    $region22: #{_forward_nchw.2} parent=5 // pred_check_branch
      %217 = sbr.rel (%p215) target = $region24
    $region23: #{_forward_nchw.2} parent=5 // pred_region
      // Predicated region
      $region25: #{_forward_nchw.2} parent=23 // pred_check
        %p218 = pneg %p45
      $region26: #{_forward_nchw.2} parent=23 // pred_check_branch
        %220 = sbr.rel (%p218) target = $region28
      $region27: #{_forward_nchw.2} parent=23 // pred_region
        %s221 = smul.u32 16, %s19
        %p222 = scmp.lt.s32.totalorder %s18, 1
        %s223 = scalar_select %p222, %s18, 1
        %p224 = scmp.lt.s32.totalorder %s221, 15
        %s225 = scalar_select %p224, %s221, 15
        %s226 = smul.addr %s225, 2
        %s227 = smul.addr %s223, 32
        %s228 = sadd.s32 %s226, %s227
        %s229 = smul.addr %s228, 8
        %s230 = scalar_lea.vmem %s0, %s229
        %s231 = smul.u32 16, %s19
      $region28: #{_forward_nchw.2} parent=23 // pred_fallthru
        _
      // Predicated region
      $region29: #{_forward_nchw.2} parent=23 // pred_check
        %p232 = pneg %p81
      $region30: #{_forward_nchw.2} parent=23 // pred_check_branch
        %234 = sbr.rel (%p232) target = $region32
      $region31: #{_forward_nchw.2} parent=23 // pred_region
        %s235 = smul.u32 %s19, 16
        %s236 = ssub.s32 %s235, 1
        %p237 = scmp.gt.s32.totalorder %s236, 0
        %s238 = scalar_select %p237, %s236, 0
        %p239 = scmp.lt.s32.totalorder %s18, 1
        %s240 = scalar_select %p239, %s18, 1
        %p241 = scmp.lt.s32.totalorder %s238, 15
        %s242 = scalar_select %p241, %s238, 15
        %s243 = smul.addr %s242, 2
        %s244 = smul.addr %s240, 32
        %s245 = sadd.s32 %s243, %s244
        %s246 = smul.addr %s245, 8
        %s247 = scalar_lea.vmem %s1, %s246
        %s248 = smul.u32 %s19, 16
        %s249 = ssub.s32 %s248, 1
        %p250 = scmp.gt.s32.totalorder %s249, 0
        %s251 = scalar_select %p250, %s249, 0
      $region32: #{_forward_nchw.2} parent=23 // pred_fallthru
        _
      // Predicated region
      $region33: #{_forward_nchw.2} parent=23 // pred_check
        %p252 = pneg %p117
      $region34: #{_forward_nchw.2} parent=23 // pred_check_branch
        %254 = sbr.rel (%p252) target = $region36
      $region35: #{_forward_nchw.2} parent=23 // pred_region
        %s255 = sadd.s32 %s19, 1
        %s256 = smul.u32 %s255, 16
        %p257 = scmp.lt.s32.totalorder %s256, 15
        %s258 = scalar_select %p257, %s256, 15
        %p259 = scmp.lt.s32.totalorder %s18, 1
        %s260 = scalar_select %p259, %s18, 1
        %p261 = scmp.lt.s32.totalorder %s258, 15
        %s262 = scalar_select %p261, %s258, 15
        %s263 = smul.addr %s262, 2
        %s264 = smul.addr %s260, 32
        %s265 = sadd.s32 %s263, %s264
        %s266 = smul.addr %s265, 8
        %s267 = scalar_lea.vmem %s2, %s266
        %s268 = sadd.s32 %s19, 1
        %s269 = smul.u32 %s268, 16
        %p270 = scmp.lt.s32.totalorder %s269, 15
        %s271 = scalar_select %p270, %s269, 15
      $region36: #{_forward_nchw.2} parent=23 // pred_fallthru
        _
    $region24: #{_forward_nchw.2} parent=5 // pred_fallthru
      _
    %p272 = scmp.le.s32.totalorder 1, %s11
    %p273 = scmp.lt.s32.totalorder %s11, 3
    %p274 = pnand %p272, %p273
    %p275 = pneg %p274
    // Predicated region
    $region37: #{_forward_nchw.2} parent=5 // pred_check
      _
    $region38: #{_forward_nchw.2} parent=5 // pred_check_branch
      %277 = sbr.rel (%p274) target = $region40
    $region39: #{_forward_nchw.2} parent=5 // pred_region
      %s278 = ssub.s32 %s11, 1
      %s279 = smul.u32 16, %s21
      %p280 = scmp.lt.s32.totalorder %s20, 1
      %s281 = scalar_select %p280, %s20, 1
      %p282 = scmp.lt.s32.totalorder %s279, 15
      %s283 = scalar_select %p282, %s279, 15
      %s284 = smul.addr %s283, 2
      %s285 = smul.addr %s281, 32
      %s286 = sadd.s32 %s284, %s285
      %s287 = smul.addr %s286, 8
      %s288 = scalar_lea.vmem %s0, %s287
      %p289 = pneg %p51
      %p290 = pneg %p48
      %s291 = smul.u32 %s21, 16
      %s292 = ssub.s32 %s291, 1
      %p293 = scmp.gt.s32.totalorder %s292, 0
      %s294 = scalar_select %p293, %s292, 0
      %p295 = scmp.lt.s32.totalorder %s20, 1
      %s296 = scalar_select %p295, %s20, 1
      %p297 = scmp.lt.s32.totalorder %s294, 15
      %s298 = scalar_select %p297, %s294, 15
      %s299 = smul.addr %s298, 2
      %s300 = smul.addr %s296, 32
      %s301 = sadd.s32 %s299, %s300
      %s302 = smul.addr %s301, 8
      %s303 = scalar_lea.vmem %s1, %s302
      %p304 = pneg %p87
      %p305 = pneg %p84
      %s306 = sadd.s32 %s21, 1
      %s307 = smul.u32 %s306, 16
      %p308 = scmp.lt.s32.totalorder %s307, 15
      %s309 = scalar_select %p308, %s307, 15
      %p310 = scmp.lt.s32.totalorder %s20, 1
      %s311 = scalar_select %p310, %s20, 1
      %p312 = scmp.lt.s32.totalorder %s309, 15
      %s313 = scalar_select %p312, %s309, 15
      %s314 = smul.addr %s313, 2
      %s315 = smul.addr %s311, 32
      %s316 = sadd.s32 %s314, %s315
      %s317 = smul.addr %s316, 8
      %s318 = scalar_lea.vmem %s2, %s317
      %p319 = pneg %p123
      %p320 = pneg %p120
      %p321 = pneg %p144
      %p322 = pneg %p141
      %p323 = pneg %p165
      %p324 = pneg %p162
      %p325 = pneg %p193
      %p326 = pneg %p190
      %s327 = smul.u32 16, %s21
      %p328 = scmp.lt.s32.totalorder %s20, 1
      %s329 = scalar_select %p328, %s20, 1
      %p330 = scmp.lt.s32.totalorder %s327, 15
      %s331 = scalar_select %p330, %s327, 15
      %s332 = smul.addr %s331, 2
      %s333 = smul.addr %s329, 32
      %s334 = sadd.s32 %s332, %s333
      %s335 = smul.addr %s334, 8
      %s336 = scalar_lea.vmem %s5, %s335
      %s337 = smul.u32 16, %s21
      %p338 = scmp.lt.s32.totalorder %s20, 1
      %s339 = scalar_select %p338, %s20, 1
      %p340 = scmp.lt.s32.totalorder %s337, 15
      %s341 = scalar_select %p340, %s337, 15
      %s342 = smul.addr %s341, 2
      %s343 = smul.addr %s339, 32
      %s344 = sadd.s32 %s342, %s343
      %s345 = smul.addr %s344, 8
      %s346 = scalar_lea.vmem %s0, %s345
      %s347 = smul.u32 16, %s21
      %s348 = smul.u32 %s21, 16
      %s349 = ssub.s32 %s348, 1
      %p350 = scmp.gt.s32.totalorder %s349, 0
      %s351 = scalar_select %p350, %s349, 0
      %p352 = scmp.lt.s32.totalorder %s20, 1
      %s353 = scalar_select %p352, %s20, 1
      %p354 = scmp.lt.s32.totalorder %s351, 15
      %s355 = scalar_select %p354, %s351, 15
      %s356 = smul.addr %s355, 2
      %s357 = smul.addr %s353, 32
      %s358 = sadd.s32 %s356, %s357
      %s359 = smul.addr %s358, 8
      %s360 = scalar_lea.vmem %s1, %s359
      %s361 = smul.u32 %s21, 16
      %s362 = ssub.s32 %s361, 1
      %p363 = scmp.gt.s32.totalorder %s362, 0
      %s364 = scalar_select %p363, %s362, 0
      %s365 = sadd.s32 %s21, 1
      %s366 = smul.u32 %s365, 16
      %p367 = scmp.lt.s32.totalorder %s366, 15
      %s368 = scalar_select %p367, %s366, 15
      %p369 = scmp.lt.s32.totalorder %s20, 1
      %s370 = scalar_select %p369, %s20, 1
      %p371 = scmp.lt.s32.totalorder %s368, 15
      %s372 = scalar_select %p371, %s368, 15
      %s373 = smul.addr %s372, 2
      %s374 = smul.addr %s370, 32
      %s375 = sadd.s32 %s373, %s374
      %s376 = smul.addr %s375, 8
      %s377 = scalar_lea.vmem %s2, %s376
      %s378 = sadd.s32 %s21, 1
      %s379 = smul.u32 %s378, 16
      %p380 = scmp.lt.s32.totalorder %s379, 15
      %s381 = scalar_select %p380, %s379, 15
      %s382 = smul.u32 16, %s21
      %p383 = scmp.lt.s32.totalorder %s20, 1
      %s384 = scalar_select %p383, %s20, 1
      %p385 = scmp.lt.s32.totalorder %s382, 15
      %s386 = scalar_select %p385, %s382, 15
      %s387 = smul.addr %s386, 2
      %s388 = smul.addr %s384, 32
      %s389 = sadd.s32 %s387, %s388
      %s390 = smul.addr %s389, 8
      %s391 = scalar_lea.vmem %s5, %s390
      %s392 = smul.u32 16, %s21
      %vm394 = vcmask 27648
      %395 = vst.msk [vmem:[#allocation2 + $0x8] sm:$0xf] %vm394, 0
      %396 = vst.msk [vmem:[#allocation2 + $0xc] sm:$0xf] %vm394, 0
      %397 = vst.msk [vmem:[#allocation2 + $0x18] sm:$0xf] %vm394, 0
      %398 = vst.msk [vmem:[#allocation2 + $0x1c] sm:$0xf] %vm394, 0
      %399 = vst.msk [vmem:[#allocation2 + $0x28] sm:$0xf] %vm394, 0
      %400 = vst.msk [vmem:[#allocation2 + $0x2c] sm:$0xf] %vm394, 0
      %401 = vst.msk [vmem:[#allocation2 + $0x38] sm:$0xf] %vm394, 0
      %402 = vst.msk [vmem:[#allocation2 + $0x3c] sm:$0xf] %vm394, 0
      %403 = vst.msk [vmem:[#allocation2 + $0x48] sm:$0xf] %vm394, 0
      %404 = vst.msk [vmem:[#allocation2 + $0x4c] sm:$0xf] %vm394, 0
      %405 = vst.msk [vmem:[#allocation2 + $0x58] sm:$0xf] %vm394, 0
      %406 = vst.msk [vmem:[#allocation2 + $0x5c] sm:$0xf] %vm394, 0
      %407 = vst.msk [vmem:[#allocation2 + $0x68] sm:$0xf] %vm394, 0
      %408 = vst.msk [vmem:[#allocation2 + $0x6c] sm:$0xf] %vm394, 0
      %409 = vst.msk [vmem:[#allocation2 + $0x78] sm:$0xf] %vm394, 0
      %410 = vst.msk [vmem:[#allocation2 + $0x7c] sm:$0xf] %vm394, 0
      %411 = vst.msk [vmem:[#allocation2 + $0x88] sm:$0xf] %vm394, 0
      %412 = vst.msk [vmem:[#allocation2 + $0x8c] sm:$0xf] %vm394, 0
      %413 = vst.msk [vmem:[#allocation2 + $0x98] sm:$0xf] %vm394, 0
      %414 = vst.msk [vmem:[#allocation2 + $0x9c] sm:$0xf] %vm394, 0
      %415 = vst.msk [vmem:[#allocation2 + $0xa8] sm:$0xf] %vm394, 0
      %416 = vst.msk [vmem:[#allocation2 + $0xac] sm:$0xf] %vm394, 0
      %417 = vst.msk [vmem:[#allocation2 + $0xb8] sm:$0xf] %vm394, 0
      %418 = vst.msk [vmem:[#allocation2 + $0xbc] sm:$0xf] %vm394, 0
      %419 = vst.msk [vmem:[#allocation2 + $0xc8] sm:$0xf] %vm394, 0
      %420 = vst.msk [vmem:[#allocation2 + $0xcc] sm:$0xf] %vm394, 0
      %421 = vst.msk [vmem:[#allocation2 + $0xd8] sm:$0xf] %vm394, 0
      %422 = vst.msk [vmem:[#allocation2 + $0xdc] sm:$0xf] %vm394, 0
      %423 = vst.msk [vmem:[#allocation2 + $0xe8] sm:$0xf] %vm394, 0
      %424 = vst.msk [vmem:[#allocation2 + $0xec] sm:$0xf] %vm394, 0
      %425 = vst.msk [vmem:[#allocation2 + $0xf8] sm:$0xf] %vm394, 0
      %426 = vst.msk [vmem:[#allocation2 + $0xfc] sm:$0xf] %vm394, 0
      %427 = vst.msk [vmem:[#allocation2 + $0x108] sm:$0xf] %vm394, 0
      %428 = vst.msk [vmem:[#allocation2 + $0x10c] sm:$0xf] %vm394, 0
      %429 = vst.msk [vmem:[#allocation2 + $0x118] sm:$0xf] %vm394, 0
      %430 = vst.msk [vmem:[#allocation2 + $0x11c] sm:$0xf] %vm394, 0
      %431 = vst.msk [vmem:[#allocation2 + $0x128] sm:$0xf] %vm394, 0
      %432 = vst.msk [vmem:[#allocation2 + $0x12c] sm:$0xf] %vm394, 0
      %433 = vst.msk [vmem:[#allocation2 + $0x138] sm:$0xf] %vm394, 0
      %434 = vst.msk [vmem:[#allocation2 + $0x13c] sm:$0xf] %vm394, 0
      %v435 = vld [vmem:[%s346] sm:$0xff]
      %v436 = vld [vmem:[%s346 + $0x8] sm:$0xff]
      %v437 = vld [vmem:[%s346 + $0x10] sm:$0xff]
      %v438 = vld [vmem:[%s346 + $0x18] sm:$0xff]
      %v439 = vld [vmem:[%s346 + $0x20] sm:$0xff]
      %v440 = vld [vmem:[%s346 + $0x28] sm:$0xff]
      %v441 = vld [vmem:[%s346 + $0x30] sm:$0xff]
      %v442 = vld [vmem:[%s346 + $0x38] sm:$0xff]
      %v443 = vld [vmem:[%s346 + $0x40] sm:$0xff]
      %v444 = vld [vmem:[%s346 + $0x48] sm:$0xff]
      %v445 = vld [vmem:[%s346 + $0x50] sm:$0xff]
      %v446 = vld [vmem:[%s346 + $0x58] sm:$0xff]
      %v447 = vld [vmem:[%s346 + $0x60] sm:$0xff]
      %v448 = vld [vmem:[%s346 + $0x68] sm:$0xff]
      %v449 = vld [vmem:[%s346 + $0x70] sm:$0xff]
      %v450 = vld [vmem:[%s346 + $0x78] sm:$0xff]
      %v451 = vld [vmem:[%s346 + $0x80] sm:$0xff]
      %v452 = vld [vmem:[%s346 + $0x88] sm:$0xff]
      %v453 = vld [vmem:[%s346 + $0x90] sm:$0xff]
      %v454 = vld [vmem:[%s346 + $0x98] sm:$0xff]
      %v455 = vld [vmem:[%s346 + $0xa0] sm:$0xff]
      %v456 = vld [vmem:[%s346 + $0xa8] sm:$0xff]
      %v457 = vld [vmem:[%s346 + $0xb0] sm:$0xff]
      %v458 = vld [vmem:[%s346 + $0xb8] sm:$0xff]
      %v459 = vld [vmem:[%s346 + $0xc0] sm:$0xff]
      %v460 = vld [vmem:[%s346 + $0xc8] sm:$0xff]
      %v461 = vld [vmem:[%s346 + $0xd0] sm:$0xff]
      %v462 = vld [vmem:[%s346 + $0xd8] sm:$0xff]
      %v463 = vld [vmem:[%s346 + $0xe0] sm:$0xff]
      %v464 = vld [vmem:[%s346 + $0xe8] sm:$0xff]
      %v465 = vld [vmem:[%s346 + $0xf0] sm:$0xff]
      %v466 = vld [vmem:[%s346 + $0xf8] sm:$0xff]
      %s467 = smul.u32 %s21, 16
      %v468 = vstv %s467
      %v469 = vadd.s32 %v468, 1
      %v470 = vadd.s32 %v468, 2
      %v471 = vadd.s32 %v468, 3
      %v472 = vadd.s32 %v468, 4
      %v473 = vadd.s32 %v468, 5
      %v474 = vadd.s32 %v468, 6
      %v475 = vadd.s32 %v468, 7
      %v476 = vadd.s32 %v468, 8
      %v477 = vadd.s32 %v468, 9
      %v478 = vadd.s32 %v468, 10
      %v479 = vadd.s32 %v468, 11
      %v480 = vadd.s32 %v468, 12
      %v481 = vadd.s32 %v468, 13
      %v482 = vadd.s32 %v468, 14
      %v483 = vadd.s32 %v468, 15
      %vm484 = vcmp.lt.s32.totalorder %v468, 16
      %vm485 = vcmp.lt.s32.totalorder %v469, 16
      %vm486 = vcmp.lt.s32.totalorder %v470, 16
      %vm487 = vcmp.lt.s32.totalorder %v471, 16
      %vm488 = vcmp.lt.s32.totalorder %v472, 16
      %vm489 = vcmp.lt.s32.totalorder %v473, 16
      %vm490 = vcmp.lt.s32.totalorder %v474, 16
      %vm491 = vcmp.lt.s32.totalorder %v475, 16
      %vm492 = vcmp.lt.s32.totalorder %v476, 16
      %vm493 = vcmp.lt.s32.totalorder %v477, 16
      %vm494 = vcmp.lt.s32.totalorder %v478, 16
      %vm495 = vcmp.lt.s32.totalorder %v479, 16
      %vm496 = vcmp.lt.s32.totalorder %v480, 16
      %vm497 = vcmp.lt.s32.totalorder %v481, 16
      %vm498 = vcmp.lt.s32.totalorder %v482, 16
      %vm499 = vcmp.lt.s32.totalorder %v483, 16
      %v500 = vsel %vm484, 1, 0
      %v501 = vsel %vm485, 1, 0
      %v502 = vsel %vm486, 1, 0
      %v503 = vsel %vm487, 1, 0
      %v504 = vsel %vm488, 1, 0
      %v505 = vsel %vm489, 1, 0
      %v506 = vsel %vm490, 1, 0
      %v507 = vsel %vm491, 1, 0
      %v508 = vsel %vm492, 1, 0
      %v509 = vsel %vm493, 1, 0
      %v510 = vsel %vm494, 1, 0
      %v511 = vsel %vm495, 1, 0
      %v512 = vsel %vm496, 1, 0
      %v513 = vsel %vm497, 1, 0
      %v514 = vsel %vm498, 1, 0
      %v515 = vsel %vm499, 1, 0
      %vm516 = vcmp.eq.s32.totalorder %v500, 1
      %vm517 = vcmp.eq.s32.totalorder %v501, 1
      %vm518 = vcmp.eq.s32.totalorder %v502, 1
      %vm519 = vcmp.eq.s32.totalorder %v503, 1
      %vm520 = vcmp.eq.s32.totalorder %v504, 1
      %vm521 = vcmp.eq.s32.totalorder %v505, 1
      %vm522 = vcmp.eq.s32.totalorder %v506, 1
      %vm523 = vcmp.eq.s32.totalorder %v507, 1
      %vm524 = vcmp.eq.s32.totalorder %v508, 1
      %vm525 = vcmp.eq.s32.totalorder %v509, 1
      %vm526 = vcmp.eq.s32.totalorder %v510, 1
      %vm527 = vcmp.eq.s32.totalorder %v511, 1
      %vm528 = vcmp.eq.s32.totalorder %v512, 1
      %vm529 = vcmp.eq.s32.totalorder %v513, 1
      %vm530 = vcmp.eq.s32.totalorder %v514, 1
      %vm531 = vcmp.eq.s32.totalorder %v515, 1
      %v532 = vsel %vm516, %v435, 0.0
      %v533 = vsel %vm516, %v436, 0.0
      %v534 = vsel %vm517, %v437, 0.0
      %v535 = vsel %vm517, %v438, 0.0
      %v536 = vsel %vm518, %v439, 0.0
      %v537 = vsel %vm518, %v440, 0.0
      %v538 = vsel %vm519, %v441, 0.0
      %v539 = vsel %vm519, %v442, 0.0
      %v540 = vsel %vm520, %v443, 0.0
      %v541 = vsel %vm520, %v444, 0.0
      %v542 = vsel %vm521, %v445, 0.0
      %v543 = vsel %vm521, %v446, 0.0
      %v544 = vsel %vm522, %v447, 0.0
      %v545 = vsel %vm522, %v448, 0.0
      %v546 = vsel %vm523, %v449, 0.0
      %v547 = vsel %vm523, %v450, 0.0
      %v548 = vsel %vm524, %v451, 0.0
      %v549 = vsel %vm524, %v452, 0.0
      %v550 = vsel %vm525, %v453, 0.0
      %v551 = vsel %vm525, %v454, 0.0
      %v552 = vsel %vm526, %v455, 0.0
      %v553 = vsel %vm526, %v456, 0.0
      %v554 = vsel %vm527, %v457, 0.0
      %v555 = vsel %vm527, %v458, 0.0
      %v556 = vsel %vm528, %v459, 0.0
      %v557 = vsel %vm528, %v460, 0.0
      %v558 = vsel %vm529, %v461, 0.0
      %v559 = vsel %vm529, %v462, 0.0
      %v560 = vsel %vm530, %v463, 0.0
      %v561 = vsel %vm530, %v464, 0.0
      %v562 = vsel %vm531, %v465, 0.0
      %v563 = vsel %vm531, %v466, 0.0
      %v564 = vpack.c.bf16 %v532, %v532
      %v565 = vpack.c.bf16 %v533, %v533
      %v566 = vpack.c.bf16 %v534, %v534
      %v567 = vpack.c.bf16 %v535, %v535
      %v568 = vpack.c.bf16 %v536, %v536
      %v569 = vpack.c.bf16 %v537, %v537
      %v570 = vpack.c.bf16 %v538, %v538
      %v571 = vpack.c.bf16 %v539, %v539
      %v572 = vpack.c.bf16 %v540, %v540
      %v573 = vpack.c.bf16 %v541, %v541
      %v574 = vpack.c.bf16 %v542, %v542
      %v575 = vpack.c.bf16 %v543, %v543
      %v576 = vpack.c.bf16 %v544, %v544
      %v577 = vpack.c.bf16 %v545, %v545
      %v578 = vpack.c.bf16 %v546, %v546
      %v579 = vpack.c.bf16 %v547, %v547
      %v580 = vpack.c.bf16 %v548, %v548
      %v581 = vpack.c.bf16 %v549, %v549
      %v582 = vpack.c.bf16 %v550, %v550
      %v583 = vpack.c.bf16 %v551, %v551
      %v584 = vpack.c.bf16 %v552, %v552
      %v585 = vpack.c.bf16 %v553, %v553
      %v586 = vpack.c.bf16 %v554, %v554
      %v587 = vpack.c.bf16 %v555, %v555
      %v588 = vpack.c.bf16 %v556, %v556
      %v589 = vpack.c.bf16 %v557, %v557
      %v590 = vpack.c.bf16 %v558, %v558
      %v591 = vpack.c.bf16 %v559, %v559
      %v592 = vpack.c.bf16 %v560, %v560
      %v593 = vpack.c.bf16 %v561, %v561
      %v594 = vpack.c.bf16 %v562, %v562
      %v595 = vpack.c.bf16 %v563, %v563
      %s596 = scalar_lea.vmem [#allocation2], 32
      %597 = vst.msk [vmem:[%s596] sm:$0xf] %vm394, %v564
      %598 = vst.msk [vmem:[%s596 + $0x4] sm:$0xf] %vm394, %v565
      %599 = vst.msk [vmem:[%s596 + $0x10] sm:$0xf] %vm394, %v566
      %600 = vst.msk [vmem:[%s596 + $0x14] sm:$0xf] %vm394, %v567
      %601 = vst.msk [vmem:[%s596 + $0x20] sm:$0xf] %vm394, %v568
      %602 = vst.msk [vmem:[%s596 + $0x24] sm:$0xf] %vm394, %v569
      %603 = vst.msk [vmem:[%s596 + $0x30] sm:$0xf] %vm394, %v570
      %604 = vst.msk [vmem:[%s596 + $0x34] sm:$0xf] %vm394, %v571
      %605 = vst.msk [vmem:[%s596 + $0x40] sm:$0xf] %vm394, %v572
      %606 = vst.msk [vmem:[%s596 + $0x44] sm:$0xf] %vm394, %v573
      %607 = vst.msk [vmem:[%s596 + $0x50] sm:$0xf] %vm394, %v574
      %608 = vst.msk [vmem:[%s596 + $0x54] sm:$0xf] %vm394, %v575
      %609 = vst.msk [vmem:[%s596 + $0x60] sm:$0xf] %vm394, %v576
      %610 = vst.msk [vmem:[%s596 + $0x64] sm:$0xf] %vm394, %v577
      %611 = vst.msk [vmem:[%s596 + $0x70] sm:$0xf] %vm394, %v578
      %612 = vst.msk [vmem:[%s596 + $0x74] sm:$0xf] %vm394, %v579
      %613 = vst.msk [vmem:[%s596 + $0x80] sm:$0xf] %vm394, %v580
      %614 = vst.msk [vmem:[%s596 + $0x84] sm:$0xf] %vm394, %v581
      %615 = vst.msk [vmem:[%s596 + $0x90] sm:$0xf] %vm394, %v582
      %616 = vst.msk [vmem:[%s596 + $0x94] sm:$0xf] %vm394, %v583
      %617 = vst.msk [vmem:[%s596 + $0xa0] sm:$0xf] %vm394, %v584
      %618 = vst.msk [vmem:[%s596 + $0xa4] sm:$0xf] %vm394, %v585
      %619 = vst.msk [vmem:[%s596 + $0xb0] sm:$0xf] %vm394, %v586
      %620 = vst.msk [vmem:[%s596 + $0xb4] sm:$0xf] %vm394, %v587
      %621 = vst.msk [vmem:[%s596 + $0xc0] sm:$0xf] %vm394, %v588
      %622 = vst.msk [vmem:[%s596 + $0xc4] sm:$0xf] %vm394, %v589
      %623 = vst.msk [vmem:[%s596 + $0xd0] sm:$0xf] %vm394, %v590
      %624 = vst.msk [vmem:[%s596 + $0xd4] sm:$0xf] %vm394, %v591
      %625 = vst.msk [vmem:[%s596 + $0xe0] sm:$0xf] %vm394, %v592
      %626 = vst.msk [vmem:[%s596 + $0xe4] sm:$0xf] %vm394, %v593
      %627 = vst.msk [vmem:[%s596 + $0xf0] sm:$0xf] %vm394, %v594
      %628 = vst.msk [vmem:[%s596 + $0xf4] sm:$0xf] %vm394, %v595
      %p629 = scmp.gt.s32.totalorder %s21, 0
      %v630 = vld [vmem:[%s360] sm:$0xff]
      %v631 = vld [vmem:[%s360 + $0x8] sm:$0xff]
      %s632 = scalar_select %p629, 1, 0
      %v633 = vstv %s632
      %vm634 = vcmp.eq.s32.totalorder %v633, 1
      %v635 = vsel %vm634, %v630, 0.0
      %v636 = vsel %vm634, %v631, 0.0
      %v637 = vpack.c.bf16 %v635, %v635
      %v638 = vpack.c.bf16 %v636, %v636
      %s639 = scalar_lea.vmem [#allocation2], 16
      %640 = vst.msk [vmem:[%s639] sm:$0xf] %vm394, %v637
      %641 = vst.msk [vmem:[%s639 + $0x4] sm:$0xf] %vm394, %v638
      %s642 = sadd.s32 %s467, 16
      %p643 = scmp.lt.s32.totalorder %s642, 16
      %v644 = vld [vmem:[%s377] sm:$0xff]
      %v645 = vld [vmem:[%s377 + $0x8] sm:$0xff]
      %s646 = scalar_select %p643, 1, 0
      %v647 = vstv %s646
      %vm648 = vcmp.eq.s32.totalorder %v647, 1
      %v649 = vsel %vm648, %v644, 0.0
      %v650 = vsel %vm648, %v645, 0.0
      %v651 = vpack.c.bf16 %v649, %v649
      %v652 = vpack.c.bf16 %v650, %v650
      %s653 = scalar_lea.vmem [#allocation2], 288
      %654 = vst.msk [vmem:[%s653] sm:$0xf] %vm394, %v651
      %655 = vst.msk [vmem:[%s653 + $0x4] sm:$0xf] %vm394, %v652
      %v656 = vld [vmem:[#allocation2 + $0xc] sm:$0xf]
      %v657 = vld [vmem:[#allocation2 + $0x10] sm:$0xf]
      %v658 = vld [vmem:[#allocation2 + $0x14] sm:$0xf]
      %v659 = vld [vmem:[#allocation2 + $0x18] sm:$0xf]
      %v660 = vld [vmem:[#allocation2 + $0x1c] sm:$0xf]
      %v661 = vld [vmem:[#allocation2 + $0x20] sm:$0xf]
      %v662 = vld [vmem:[#allocation2 + $0x24] sm:$0xf]
      %v663 = vld [vmem:[#allocation2 + $0x28] sm:$0xf]
      %v664 = vld [vmem:[#allocation2 + $0x2c] sm:$0xf]
      %v665 = vld [vmem:[#allocation2 + $0x30] sm:$0xf]
      %v666 = vld [vmem:[#allocation2 + $0x34] sm:$0xf]
      %v667 = vld [vmem:[#allocation2 + $0x38] sm:$0xf]
      %v668 = vld [vmem:[#allocation2 + $0x3c] sm:$0xf]
      %v669 = vld [vmem:[#allocation2 + $0x40] sm:$0xf]
      %v670 = vld [vmem:[#allocation2 + $0x44] sm:$0xf]
      %v671 = vld [vmem:[#allocation2 + $0x48] sm:$0xf]
      %v672 = vld [vmem:[#allocation2 + $0x4c] sm:$0xf]
      %v673 = vld [vmem:[#allocation2 + $0x50] sm:$0xf]
      %v674 = vld [vmem:[#allocation2 + $0x54] sm:$0xf]
      %v675 = vld [vmem:[#allocation2 + $0x58] sm:$0xf]
      %v676 = vld [vmem:[#allocation2 + $0x5c] sm:$0xf]
      %v677 = vld [vmem:[#allocation2 + $0x60] sm:$0xf]
      %v678 = vld [vmem:[#allocation2 + $0x64] sm:$0xf]
      %v679 = vld [vmem:[#allocation2 + $0x68] sm:$0xf]
      %v680 = vld [vmem:[#allocation2 + $0x6c] sm:$0xf]
      %v681 = vld [vmem:[#allocation2 + $0x70] sm:$0xf]
      %v682 = vld [vmem:[#allocation2 + $0x74] sm:$0xf]
      %v683 = vld [vmem:[#allocation2 + $0x78] sm:$0xf]
      %v684 = vld [vmem:[#allocation2 + $0x7c] sm:$0xf]
      %v685 = vld [vmem:[#allocation2 + $0x80] sm:$0xf]
      %v686 = vld [vmem:[#allocation2 + $0x84] sm:$0xf]
      %v687 = vld [vmem:[#allocation2 + $0x88] sm:$0xf]
      %v688 = vld [vmem:[#allocation2 + $0x8c] sm:$0xf]
      %v689 = vld [vmem:[#allocation2 + $0x90] sm:$0xf]
      %v690 = vld [vmem:[#allocation2 + $0x94] sm:$0xf]
      %v691 = vld [vmem:[#allocation2 + $0x98] sm:$0xf]
      %v692 = vld [vmem:[#allocation2 + $0x9c] sm:$0xf]
      %v693 = vld [vmem:[#allocation2 + $0xa0] sm:$0xf]
      %v694 = vld [vmem:[#allocation2 + $0xa4] sm:$0xf]
      %v695 = vld [vmem:[#allocation2 + $0xa8] sm:$0xf]
      %v696 = vld [vmem:[#allocation2 + $0xac] sm:$0xf]
      %v697 = vld [vmem:[#allocation2 + $0xb0] sm:$0xf]
      %v698 = vld [vmem:[#allocation2 + $0xb4] sm:$0xf]
      %v699 = vld [vmem:[#allocation2 + $0xb8] sm:$0xf]
      %v700 = vld [vmem:[#allocation2 + $0xbc] sm:$0xf]
      %v701 = vld [vmem:[#allocation2 + $0xc0] sm:$0xf]
      %v702 = vld [vmem:[#allocation2 + $0xc4] sm:$0xf]
      %v703 = vld [vmem:[#allocation2 + $0xc8] sm:$0xf]
      %v704 = vld [vmem:[#allocation2 + $0xcc] sm:$0xf]
      %v705 = vld [vmem:[#allocation2 + $0xd0] sm:$0xf]
      %v706 = vld [vmem:[#allocation2 + $0xd4] sm:$0xf]
      %v707 = vld [vmem:[#allocation2 + $0xd8] sm:$0xf]
      %v708 = vld [vmem:[#allocation2 + $0xdc] sm:$0xf]
      %v709 = vld [vmem:[#allocation2 + $0xe0] sm:$0xf]
      %v710 = vld [vmem:[#allocation2 + $0xe4] sm:$0xf]
      %v711 = vld [vmem:[#allocation2 + $0xe8] sm:$0xf]
      %v712 = vld [vmem:[#allocation2 + $0xec] sm:$0xf]
      %v713 = vld [vmem:[#allocation2 + $0xf0] sm:$0xf]
      %v714 = vld [vmem:[#allocation2 + $0xf4] sm:$0xf]
      %v715 = vld [vmem:[#allocation2 + $0xf8] sm:$0xf]
      %v716 = vld [vmem:[#allocation2 + $0xfc] sm:$0xf]
      %v717 = vld [vmem:[#allocation2 + $0x100] sm:$0xf]
      %v718 = vld [vmem:[#allocation2 + $0x104] sm:$0xf]
      %v719 = vld [vmem:[#allocation2 + $0x108] sm:$0xf]
      %v720 = vld [vmem:[#allocation2 + $0x10c] sm:$0xf]
      %v721 = vld [vmem:[#allocation2 + $0x110] sm:$0xf]
      %v722 = vld [vmem:[#allocation2 + $0x114] sm:$0xf]
      %v723 = vld [vmem:[#allocation2 + $0x118] sm:$0xf]
      %v724 = vld [vmem:[#allocation2 + $0x11c] sm:$0xf]
      %v725 = vld [vmem:[#allocation2 + $0x120] sm:$0xf]
      %v726 = vld [vmem:[#allocation2 + $0x124] sm:$0xf]
      %v727 = vld [vmem:[#allocation2 + $0x128] sm:$0xf]
      %v728 = vld [vmem:[#allocation2 + $0x12c] sm:$0xf]
      %v729 = vld [vmem:[#allocation2 + $0x130] sm:$0xf]
      %v730 = vld [vmem:[%s4] sm:$0x1]
      %v731 = vld [vmem:[%s3] sm:$0x3]
      %s732 = scalar_lea.vmem %s3, 6
      %v733 = vld [vmem:[%s732] sm:$0x3]
      %v799 = vunpack.c.l.b16 %v660
      %v800 = vunpack.c.l.b16 %v661
      %v801 = vunpack.c.l.b16 %v662
      %v802 = vunpack.c.l.b16 %v663
      %v803 = vunpack.c.l.b16 %v664
      %v804 = vunpack.c.l.b16 %v665
      %v805 = vunpack.c.l.b16 %v666
      %v806 = vunpack.c.l.b16 %v667
      %v807 = vunpack.c.l.b16 %v668
      %v808 = vunpack.c.l.b16 %v669
      %v809 = vunpack.c.l.b16 %v670
      %v810 = vunpack.c.l.b16 %v671
      %v811 = vunpack.c.l.b16 %v672
      %v812 = vunpack.c.l.b16 %v673
      %v813 = vunpack.c.l.b16 %v674
      %v814 = vunpack.c.l.b16 %v675
      %v815 = vunpack.c.l.b16 %v676
      %v816 = vunpack.c.l.b16 %v677
      %v817 = vunpack.c.l.b16 %v678
      %v818 = vunpack.c.l.b16 %v679
      %v819 = vunpack.c.l.b16 %v680
      %v820 = vunpack.c.l.b16 %v681
      %v821 = vunpack.c.l.b16 %v682
      %v822 = vunpack.c.l.b16 %v683
      %v823 = vunpack.c.l.b16 %v684
      %v824 = vunpack.c.l.b16 %v685
      %v825 = vunpack.c.l.b16 %v686
      %v826 = vunpack.c.l.b16 %v687
      %v827 = vunpack.c.l.b16 %v688
      %v828 = vunpack.c.l.b16 %v689
      %v829 = vunpack.c.l.b16 %v690
      %v830 = vunpack.c.l.b16 %v691
      %v831 = vunpack.c.l.b16 %v692
      %v832 = vunpack.c.l.b16 %v693
      %v833 = vunpack.c.l.b16 %v694
      %v834 = vunpack.c.l.b16 %v695
      %v835 = vunpack.c.l.b16 %v696
      %v836 = vunpack.c.l.b16 %v697
      %v837 = vunpack.c.l.b16 %v698
      %v838 = vunpack.c.l.b16 %v699
      %v839 = vunpack.c.l.b16 %v700
      %v840 = vunpack.c.l.b16 %v701
      %v841 = vunpack.c.l.b16 %v702
      %v842 = vunpack.c.l.b16 %v703
      %v843 = vunpack.c.l.b16 %v704
      %v844 = vunpack.c.l.b16 %v705
      %v845 = vunpack.c.l.b16 %v706
      %v846 = vunpack.c.l.b16 %v707
      %v847 = vunpack.c.l.b16 %v708
      %v848 = vunpack.c.l.b16 %v709
      %v849 = vunpack.c.l.b16 %v710
      %v850 = vunpack.c.l.b16 %v711
      %v851 = vunpack.c.l.b16 %v712
      %v852 = vunpack.c.l.b16 %v713
      %v853 = vunpack.c.l.b16 %v714
      %v854 = vunpack.c.l.b16 %v715
      %v855 = vunpack.c.l.b16 %v716
      %v856 = vunpack.c.l.b16 %v717
      %v857 = vunpack.c.l.b16 %v718
      %v858 = vunpack.c.l.b16 %v719
      %v859 = vunpack.c.l.b16 %v720
      %v860 = vunpack.c.l.b16 %v721
      %v861 = vunpack.c.l.b16 %v722
      %v862 = vunpack.c.l.b16 %v723
      %v863 = vunpack.c.l.b16 %v724
      %v864 = vpack.c.b16 %v800, %v799
      %v865 = vpack.c.b16 %v802, %v801
      %v866 = vpack.c.b16 %v804, %v803
      %v867 = vpack.c.b16 %v806, %v805
      %v868 = vpack.c.b16 %v808, %v807
      %v869 = vpack.c.b16 %v810, %v809
      %v870 = vpack.c.b16 %v812, %v811
      %v871 = vpack.c.b16 %v814, %v813
      %v872 = vpack.c.b16 %v816, %v815
      %v873 = vpack.c.b16 %v818, %v817
      %v874 = vpack.c.b16 %v820, %v819
      %v875 = vpack.c.b16 %v822, %v821
      %v876 = vpack.c.b16 %v824, %v823
      %v877 = vpack.c.b16 %v826, %v825
      %v878 = vpack.c.b16 %v828, %v827
      %v879 = vpack.c.b16 %v830, %v829
      %v880 = vpack.c.b16 %v832, %v831
      %v881 = vpack.c.b16 %v834, %v833
      %v882 = vpack.c.b16 %v836, %v835
      %v883 = vpack.c.b16 %v838, %v837
      %v884 = vpack.c.b16 %v840, %v839
      %v885 = vpack.c.b16 %v842, %v841
      %v886 = vpack.c.b16 %v844, %v843
      %v887 = vpack.c.b16 %v846, %v845
      %v888 = vpack.c.b16 %v848, %v847
      %v889 = vpack.c.b16 %v850, %v849
      %v890 = vpack.c.b16 %v852, %v851
      %v891 = vpack.c.b16 %v854, %v853
      %v892 = vpack.c.b16 %v856, %v855
      %v893 = vpack.c.b16 %v858, %v857
      %v894 = vpack.c.b16 %v860, %v859
      %v895 = vpack.c.b16 %v862, %v861
      %v896 = vpack.c.b16 %v863, %v863
      %vm897 = vsmask.f32 4352
      %v899 = vshrl.u32 %v864, 16
      %v901 = vrot.slane %v899, 3
      %v902 = vshll.u32 %v864, 16
      %v904 = vrot.slane %v902, 4
      %v905 = vor.u32 %v901, %v904
      %v907 = vshrl.u32 %v865, 16
      %v909 = vrot.slane %v907, 3
      %v910 = vshll.u32 %v865, 16
      %v912 = vrot.slane %v910, 4
      %v913 = vor.u32 %v909, %v912
      %v914 = vsel %vm897, %v905, %v913
      %v916 = vshrl.u32 %v866, 16
      %v918 = vrot.slane %v916, 3
      %v919 = vshll.u32 %v866, 16
      %v921 = vrot.slane %v919, 4
      %v922 = vor.u32 %v918, %v921
      %v923 = vsel %vm897, %v913, %v922
      %v925 = vshrl.u32 %v867, 16
      %v927 = vrot.slane %v925, 3
      %v928 = vshll.u32 %v867, 16
      %v930 = vrot.slane %v928, 4
      %v931 = vor.u32 %v927, %v930
      %v932 = vsel %vm897, %v922, %v931
      %v934 = vshrl.u32 %v868, 16
      %v936 = vrot.slane %v934, 3
      %v937 = vshll.u32 %v868, 16
      %v939 = vrot.slane %v937, 4
      %v940 = vor.u32 %v936, %v939
      %v941 = vsel %vm897, %v931, %v940
      %v943 = vshrl.u32 %v869, 16
      %v945 = vrot.slane %v943, 3
      %v946 = vshll.u32 %v869, 16
      %v948 = vrot.slane %v946, 4
      %v949 = vor.u32 %v945, %v948
      %v950 = vsel %vm897, %v940, %v949
      %v952 = vshrl.u32 %v870, 16
      %v954 = vrot.slane %v952, 3
      %v955 = vshll.u32 %v870, 16
      %v957 = vrot.slane %v955, 4
      %v958 = vor.u32 %v954, %v957
      %v959 = vsel %vm897, %v949, %v958
      %v961 = vshrl.u32 %v871, 16
      %v963 = vrot.slane %v961, 3
      %v964 = vshll.u32 %v871, 16
      %v966 = vrot.slane %v964, 4
      %v967 = vor.u32 %v963, %v966
      %v968 = vsel %vm897, %v958, %v967
      %v970 = vshrl.u32 %v872, 16
      %v972 = vrot.slane %v970, 3
      %v973 = vshll.u32 %v872, 16
      %v975 = vrot.slane %v973, 4
      %v976 = vor.u32 %v972, %v975
      %v977 = vsel %vm897, %v967, %v976
      %v979 = vshrl.u32 %v873, 16
      %v981 = vrot.slane %v979, 3
      %v982 = vshll.u32 %v873, 16
      %v984 = vrot.slane %v982, 4
      %v985 = vor.u32 %v981, %v984
      %v986 = vsel %vm897, %v976, %v985
      %v988 = vshrl.u32 %v874, 16
      %v990 = vrot.slane %v988, 3
      %v991 = vshll.u32 %v874, 16
      %v993 = vrot.slane %v991, 4
      %v994 = vor.u32 %v990, %v993
      %v995 = vsel %vm897, %v985, %v994
      %v997 = vshrl.u32 %v875, 16
      %v999 = vrot.slane %v997, 3
      %v1000 = vshll.u32 %v875, 16
      %v1002 = vrot.slane %v1000, 4
      %v1003 = vor.u32 %v999, %v1002
      %v1004 = vsel %vm897, %v994, %v1003
      %v1006 = vshrl.u32 %v876, 16
      %v1008 = vrot.slane %v1006, 3
      %v1009 = vshll.u32 %v876, 16
      %v1011 = vrot.slane %v1009, 4
      %v1012 = vor.u32 %v1008, %v1011
      %v1013 = vsel %vm897, %v1003, %v1012
      %v1015 = vshrl.u32 %v877, 16
      %v1017 = vrot.slane %v1015, 3
      %v1018 = vshll.u32 %v877, 16
      %v1020 = vrot.slane %v1018, 4
      %v1021 = vor.u32 %v1017, %v1020
      %v1022 = vsel %vm897, %v1012, %v1021
      %v1024 = vshrl.u32 %v878, 16
      %v1026 = vrot.slane %v1024, 3
      %v1027 = vshll.u32 %v878, 16
      %v1029 = vrot.slane %v1027, 4
      %v1030 = vor.u32 %v1026, %v1029
      %v1031 = vsel %vm897, %v1021, %v1030
      %v1033 = vshrl.u32 %v879, 16
      %v1035 = vrot.slane %v1033, 3
      %v1036 = vshll.u32 %v879, 16
      %v1038 = vrot.slane %v1036, 4
      %v1039 = vor.u32 %v1035, %v1038
      %v1040 = vsel %vm897, %v1030, %v1039
      %v1042 = vshrl.u32 %v880, 16
      %v1044 = vrot.slane %v1042, 3
      %v1045 = vshll.u32 %v880, 16
      %v1047 = vrot.slane %v1045, 4
      %v1048 = vor.u32 %v1044, %v1047
      %v1049 = vsel %vm897, %v1039, %v1048
      %v1051 = vshrl.u32 %v881, 16
      %v1053 = vrot.slane %v1051, 3
      %v1054 = vshll.u32 %v881, 16
      %v1056 = vrot.slane %v1054, 4
      %v1057 = vor.u32 %v1053, %v1056
      %v1058 = vsel %vm897, %v1048, %v1057
      %v1060 = vshrl.u32 %v882, 16
      %v1062 = vrot.slane %v1060, 3
      %v1063 = vshll.u32 %v882, 16
      %v1065 = vrot.slane %v1063, 4
      %v1066 = vor.u32 %v1062, %v1065
      %v1067 = vsel %vm897, %v1057, %v1066
      %v1069 = vshrl.u32 %v883, 16
      %v1071 = vrot.slane %v1069, 3
      %v1072 = vshll.u32 %v883, 16
      %v1074 = vrot.slane %v1072, 4
      %v1075 = vor.u32 %v1071, %v1074
      %v1076 = vsel %vm897, %v1066, %v1075
      %v1078 = vshrl.u32 %v884, 16
      %v1080 = vrot.slane %v1078, 3
      %v1081 = vshll.u32 %v884, 16
      %v1083 = vrot.slane %v1081, 4
      %v1084 = vor.u32 %v1080, %v1083
      %v1085 = vsel %vm897, %v1075, %v1084
      %v1087 = vshrl.u32 %v885, 16
      %v1089 = vrot.slane %v1087, 3
      %v1090 = vshll.u32 %v885, 16
      %v1092 = vrot.slane %v1090, 4
      %v1093 = vor.u32 %v1089, %v1092
      %v1094 = vsel %vm897, %v1084, %v1093
      %v1096 = vshrl.u32 %v886, 16
      %v1098 = vrot.slane %v1096, 3
      %v1099 = vshll.u32 %v886, 16
      %v1101 = vrot.slane %v1099, 4
      %v1102 = vor.u32 %v1098, %v1101
      %v1103 = vsel %vm897, %v1093, %v1102
      %v1105 = vshrl.u32 %v887, 16
      %v1107 = vrot.slane %v1105, 3
      %v1108 = vshll.u32 %v887, 16
      %v1110 = vrot.slane %v1108, 4
      %v1111 = vor.u32 %v1107, %v1110
      %v1112 = vsel %vm897, %v1102, %v1111
      %v1114 = vshrl.u32 %v888, 16
      %v1116 = vrot.slane %v1114, 3
      %v1117 = vshll.u32 %v888, 16
      %v1119 = vrot.slane %v1117, 4
      %v1120 = vor.u32 %v1116, %v1119
      %v1121 = vsel %vm897, %v1111, %v1120
      %v1123 = vshrl.u32 %v889, 16
      %v1125 = vrot.slane %v1123, 3
      %v1126 = vshll.u32 %v889, 16
      %v1128 = vrot.slane %v1126, 4
      %v1129 = vor.u32 %v1125, %v1128
      %v1130 = vsel %vm897, %v1120, %v1129
      %v1132 = vshrl.u32 %v890, 16
      %v1134 = vrot.slane %v1132, 3
      %v1135 = vshll.u32 %v890, 16
      %v1137 = vrot.slane %v1135, 4
      %v1138 = vor.u32 %v1134, %v1137
      %v1139 = vsel %vm897, %v1129, %v1138
      %v1141 = vshrl.u32 %v891, 16
      %v1143 = vrot.slane %v1141, 3
      %v1144 = vshll.u32 %v891, 16
      %v1146 = vrot.slane %v1144, 4
      %v1147 = vor.u32 %v1143, %v1146
      %v1148 = vsel %vm897, %v1138, %v1147
      %v1150 = vshrl.u32 %v892, 16
      %v1152 = vrot.slane %v1150, 3
      %v1153 = vshll.u32 %v892, 16
      %v1155 = vrot.slane %v1153, 4
      %v1156 = vor.u32 %v1152, %v1155
      %v1157 = vsel %vm897, %v1147, %v1156
      %v1159 = vshrl.u32 %v893, 16
      %v1161 = vrot.slane %v1159, 3
      %v1162 = vshll.u32 %v893, 16
      %v1164 = vrot.slane %v1162, 4
      %v1165 = vor.u32 %v1161, %v1164
      %v1166 = vsel %vm897, %v1156, %v1165
      %v1168 = vshrl.u32 %v894, 16
      %v1170 = vrot.slane %v1168, 3
      %v1171 = vshll.u32 %v894, 16
      %v1173 = vrot.slane %v1171, 4
      %v1174 = vor.u32 %v1170, %v1173
      %v1175 = vsel %vm897, %v1165, %v1174
      %v1177 = vshrl.u32 %v895, 16
      %v1179 = vrot.slane %v1177, 3
      %v1180 = vshll.u32 %v895, 16
      %v1182 = vrot.slane %v1180, 4
      %v1183 = vor.u32 %v1179, %v1182
      %v1184 = vsel %vm897, %v1174, %v1183
      %v1186 = vshrl.u32 %v896, 16
      %v1188 = vrot.slane %v1186, 3
      %v1189 = vshll.u32 %v896, 16
      %v1191 = vrot.slane %v1189, 4
      %v1192 = vor.u32 %v1188, %v1191
      %v1193 = vsel %vm897, %v1183, %v1192
      %vm1194 = vcmask 31744
      %v1196 = vsel %vm1194, %v914, 0
      %v1199 = vsel %vm1194, %v923, 0
      %v1202 = vsel %vm1194, %v932, 0
      %v1205 = vsel %vm1194, %v941, 0
      %v1208 = vsel %vm1194, %v950, 0
      %v1211 = vsel %vm1194, %v959, 0
      %v1214 = vsel %vm1194, %v968, 0
      %v1217 = vsel %vm1194, %v977, 0
      %v1220 = vsel %vm1194, %v986, 0
      %v1223 = vsel %vm1194, %v995, 0
      %v1226 = vsel %vm1194, %v1004, 0
      %v1229 = vsel %vm1194, %v1013, 0
      %v1232 = vsel %vm1194, %v1022, 0
      %v1235 = vsel %vm1194, %v1031, 0
      %v1238 = vsel %vm1194, %v1040, 0
      %v1241 = vsel %vm1194, %v1049, 0
      %v1244 = vsel %vm1194, %v1058, 0
      %v1247 = vsel %vm1194, %v1067, 0
      %v1250 = vsel %vm1194, %v1076, 0
      %v1253 = vsel %vm1194, %v1085, 0
      %v1256 = vsel %vm1194, %v1094, 0
      %v1259 = vsel %vm1194, %v1103, 0
      %v1262 = vsel %vm1194, %v1112, 0
      %v1265 = vsel %vm1194, %v1121, 0
      %v1268 = vsel %vm1194, %v1130, 0
      %v1271 = vsel %vm1194, %v1139, 0
      %v1274 = vsel %vm1194, %v1148, 0
      %v1277 = vsel %vm1194, %v1157, 0
      %v1280 = vsel %vm1194, %v1166, 0
      %v1283 = vsel %vm1194, %v1175, 0
      %v1286 = vsel %vm1194, %v1184, 0
      %v1289 = vsel %vm1194, %v1193, 0
      %vm1291 = vcmask 1041408
      %v1293 = vsel %vm1291, %v733, 0
      %1295 = vmatpush.bf16.msra.mxu0 0
      %1296 = vmatpush.bf16.msra.mxu0 0
      %1297 = vmatpush.bf16.msra.mxu0 0
      %1298 = vmatpush.bf16.msra.mxu0 0
      %1299 = vmatpush.bf16.msra.mxu0 0
      %1300 = vmatpush.bf16.msra.mxu0 0
      %1301 = vmatpush.bf16.msra.mxu0 0
      %1302 = vmatpush.bf16.msra.mxu0 %v1293
      %1303 = vmatmul.bf16.gmra.mxu0 %v1196
      %v1304 = vpop.f32.mrf.mxu0
      %v1305 = vadd.f32 0.0, %v1304
      %v1306 = vpop.f32.mrf.mxu0
      %v1307 = vadd.f32 0.0, %v1306
      %1308 = vmatmul.bf16.gmra.mxu0 %v1199
      %v1309 = vpop.f32.mrf.mxu0
      %v1310 = vpop.f32.mrf.mxu0
      %1311 = vmatmul.bf16.gmra.mxu0 %v1202
      %v1312 = vpop.f32.mrf.mxu0
      %v1313 = vadd.f32 0.0, %v1312
      %v1314 = vpop.f32.mrf.mxu0
      %v1315 = vadd.f32 0.0, %v1314
      %1316 = vmatmul.bf16.gmra.mxu0 %v1205
      %v1317 = vpop.f32.mrf.mxu0
      %v1318 = vpop.f32.mrf.mxu0
      %1319 = vmatmul.bf16.gmra.mxu0 %v1208
      %v1320 = vpop.f32.mrf.mxu0
      %v1321 = vadd.f32 0.0, %v1320
      %v1322 = vpop.f32.mrf.mxu0
      %v1323 = vadd.f32 0.0, %v1322
      %1324 = vmatmul.bf16.gmra.mxu0 %v1211
      %v1325 = vpop.f32.mrf.mxu0
      %v1326 = vpop.f32.mrf.mxu0
      %1327 = vmatmul.bf16.gmra.mxu0 %v1214
      %v1328 = vpop.f32.mrf.mxu0
      %v1329 = vadd.f32 0.0, %v1328
      %v1330 = vpop.f32.mrf.mxu0
      %v1331 = vadd.f32 0.0, %v1330
      %1332 = vmatmul.bf16.gmra.mxu0 %v1217
      %v1333 = vpop.f32.mrf.mxu0
      %v1334 = vpop.f32.mrf.mxu0
      %1335 = vmatmul.bf16.gmra.mxu0 %v1220
      %v1336 = vpop.f32.mrf.mxu0
      %v1337 = vadd.f32 0.0, %v1336
      %v1338 = vpop.f32.mrf.mxu0
      %v1339 = vadd.f32 0.0, %v1338
      %1340 = vmatmul.bf16.gmra.mxu0 %v1223
      %v1341 = vpop.f32.mrf.mxu0
      %v1342 = vpop.f32.mrf.mxu0
      %1343 = vmatmul.bf16.gmra.mxu0 %v1226
      %v1344 = vpop.f32.mrf.mxu0
      %v1345 = vadd.f32 0.0, %v1344
      %v1346 = vpop.f32.mrf.mxu0
      %v1347 = vadd.f32 0.0, %v1346
      %1348 = vmatmul.bf16.gmra.mxu0 %v1229
      %v1349 = vpop.f32.mrf.mxu0
      %v1350 = vpop.f32.mrf.mxu0
      %1351 = vmatmul.bf16.gmra.mxu0 %v1232
      %v1352 = vpop.f32.mrf.mxu0
      %v1353 = vadd.f32 0.0, %v1352
      %v1354 = vpop.f32.mrf.mxu0
      %v1355 = vadd.f32 0.0, %v1354
      %1356 = vmatmul.bf16.gmra.mxu0 %v1235
      %v1357 = vpop.f32.mrf.mxu0
      %v1358 = vpop.f32.mrf.mxu0
      %1359 = vmatmul.bf16.gmra.mxu0 %v1238
      %v1360 = vpop.f32.mrf.mxu0
      %v1361 = vadd.f32 0.0, %v1360
      %v1362 = vpop.f32.mrf.mxu0
      %v1363 = vadd.f32 0.0, %v1362
      %1364 = vmatmul.bf16.gmra.mxu0 %v1241
      %v1365 = vpop.f32.mrf.mxu0
      %v1366 = vpop.f32.mrf.mxu0
      %1367 = vmatmul.bf16.gmra.mxu0 %v1244
      %v1368 = vpop.f32.mrf.mxu0
      %v1369 = vadd.f32 0.0, %v1368
      %v1370 = vpop.f32.mrf.mxu0
      %v1371 = vadd.f32 0.0, %v1370
      %1372 = vmatmul.bf16.gmra.mxu0 %v1247
      %v1373 = vpop.f32.mrf.mxu0
      %v1374 = vpop.f32.mrf.mxu0
      %1375 = vmatmul.bf16.gmra.mxu0 %v1250
      %v1376 = vpop.f32.mrf.mxu0
      %v1377 = vadd.f32 0.0, %v1376
      %v1378 = vpop.f32.mrf.mxu0
      %v1379 = vadd.f32 0.0, %v1378
      %1380 = vmatmul.bf16.gmra.mxu0 %v1253
      %v1381 = vpop.f32.mrf.mxu0
      %v1382 = vpop.f32.mrf.mxu0
      %1383 = vmatmul.bf16.gmra.mxu0 %v1256
      %v1384 = vpop.f32.mrf.mxu0
      %v1385 = vadd.f32 0.0, %v1384
      %v1386 = vpop.f32.mrf.mxu0
      %v1387 = vadd.f32 0.0, %v1386
      %1388 = vmatmul.bf16.gmra.mxu0 %v1259
      %v1389 = vpop.f32.mrf.mxu0
      %v1390 = vpop.f32.mrf.mxu0
      %1391 = vmatmul.bf16.gmra.mxu0 %v1262
      %v1392 = vpop.f32.mrf.mxu0
      %v1393 = vadd.f32 0.0, %v1392
      %v1394 = vpop.f32.mrf.mxu0
      %v1395 = vadd.f32 0.0, %v1394
      %1396 = vmatmul.bf16.gmra.mxu0 %v1265
      %v1397 = vpop.f32.mrf.mxu0
      %v1398 = vpop.f32.mrf.mxu0
      %1399 = vmatmul.bf16.gmra.mxu0 %v1268
      %v1400 = vpop.f32.mrf.mxu0
      %v1401 = vadd.f32 0.0, %v1400
      %v1402 = vpop.f32.mrf.mxu0
      %v1403 = vadd.f32 0.0, %v1402
      %1404 = vmatmul.bf16.gmra.mxu0 %v1271
      %v1405 = vpop.f32.mrf.mxu0
      %v1406 = vpop.f32.mrf.mxu0
      %1407 = vmatmul.bf16.gmra.mxu0 %v1274
      %v1408 = vpop.f32.mrf.mxu0
      %v1409 = vadd.f32 0.0, %v1408
      %v1410 = vpop.f32.mrf.mxu0
      %v1411 = vadd.f32 0.0, %v1410
      %1412 = vmatmul.bf16.gmra.mxu0 %v1277
      %v1413 = vpop.f32.mrf.mxu0
      %v1414 = vpop.f32.mrf.mxu0
      %1415 = vmatmul.bf16.gmra.mxu0 %v1280
      %v1416 = vpop.f32.mrf.mxu0
      %v1417 = vadd.f32 0.0, %v1416
      %v1418 = vpop.f32.mrf.mxu0
      %v1419 = vadd.f32 0.0, %v1418
      %1420 = vmatmul.bf16.gmra.mxu0 %v1283
      %v1421 = vpop.f32.mrf.mxu0
      %v1422 = vpop.f32.mrf.mxu0
      %1423 = vmatmul.bf16.gmra.mxu0 %v1286
      %v1424 = vpop.f32.mrf.mxu0
      %v1425 = vadd.f32 0.0, %v1424
      %v1426 = vpop.f32.mrf.mxu0
      %v1427 = vadd.f32 0.0, %v1426
      %1428 = vmatmul.bf16.gmra.mxu0 %v1289
      %v1429 = vpop.f32.mrf.mxu0
      %v1430 = vpop.f32.mrf.mxu0
      %1431 = vdwg.mxu0
      %v1436 = vunpack.c.l.b16 %v656
      %v1437 = vunpack.c.l.b16 %v657
      %v1438 = vunpack.c.l.b16 %v658
      %v1439 = vunpack.c.l.b16 %v659
      %v1440 = vpack.c.b16 %v1437, %v1436
      %v1441 = vpack.c.b16 %v1439, %v1438
      %v1442 = vpack.c.b16 %v859, %v859
      %v1444 = vshrl.u32 %v1440, 16
      %v1446 = vrot.slane %v1444, 3
      %v1447 = vshll.u32 %v1440, 16
      %v1449 = vrot.slane %v1447, 4
      %v1450 = vor.u32 %v1446, %v1449
      %v1452 = vshrl.u32 %v1441, 16
      %v1454 = vrot.slane %v1452, 3
      %v1455 = vshll.u32 %v1441, 16
      %v1457 = vrot.slane %v1455, 4
      %v1458 = vor.u32 %v1454, %v1457
      %v1459 = vsel %vm897, %v1450, %v1458
      %v1460 = vsel %vm897, %v1458, %v905
      %v1462 = vshrl.u32 %v1442, 16
      %v1464 = vrot.slane %v1462, 3
      %v1465 = vshll.u32 %v1442, 16
      %v1467 = vrot.slane %v1465, 4
      %v1468 = vor.u32 %v1464, %v1467
      %v1469 = vsel %vm897, %v1165, %v1468
      %v1471 = vsel %vm1194, %v1459, 0
      %v1474 = vsel %vm1194, %v1460, 0
      %v1477 = vsel %vm1194, %v1469, 0
      %v1480 = vsel %vm1291, %v731, 0
      %1482 = vmatpush.bf16.msra.mxu0 0
      %1483 = vmatpush.bf16.msra.mxu0 0
      %1484 = vmatpush.bf16.msra.mxu0 0
      %1485 = vmatpush.bf16.msra.mxu0 0
      %1486 = vmatpush.bf16.msra.mxu0 0
      %1487 = vmatpush.bf16.msra.mxu0 0
      %1488 = vmatpush.bf16.msra.mxu0 0
      %1489 = vmatpush.bf16.msra.mxu0 %v1480
      %1490 = vmatmul.bf16.gmra.mxu0 %v1471
      %v1491 = vpop.f32.mrf.mxu0
      %v1492 = vadd.f32 %v1305, %v1491
      %v1493 = vpop.f32.mrf.mxu0
      %v1494 = vadd.f32 %v1307, %v1493
      %1495 = vmatmul.bf16.gmra.mxu0 %v1474
      %v1496 = vpop.f32.mrf.mxu0
      %v1497 = vpop.f32.mrf.mxu0
      %1498 = vmatmul.bf16.gmra.mxu0 %v1196
      %v1499 = vpop.f32.mrf.mxu0
      %v1500 = vadd.f32 %v1313, %v1499
      %v1501 = vpop.f32.mrf.mxu0
      %v1502 = vadd.f32 %v1315, %v1501
      %1503 = vmatmul.bf16.gmra.mxu0 %v1199
      %v1504 = vpop.f32.mrf.mxu0
      %v1505 = vpop.f32.mrf.mxu0
      %1506 = vmatmul.bf16.gmra.mxu0 %v1202
      %v1507 = vpop.f32.mrf.mxu0
      %v1508 = vadd.f32 %v1321, %v1507
      %v1509 = vpop.f32.mrf.mxu0
      %v1510 = vadd.f32 %v1323, %v1509
      %1511 = vmatmul.bf16.gmra.mxu0 %v1205
      %v1512 = vpop.f32.mrf.mxu0
      %v1513 = vpop.f32.mrf.mxu0
      %1514 = vmatmul.bf16.gmra.mxu0 %v1208
      %v1515 = vpop.f32.mrf.mxu0
      %v1516 = vadd.f32 %v1329, %v1515
      %v1517 = vpop.f32.mrf.mxu0
      %v1518 = vadd.f32 %v1331, %v1517
      %1519 = vmatmul.bf16.gmra.mxu0 %v1211
      %v1520 = vpop.f32.mrf.mxu0
      %v1521 = vpop.f32.mrf.mxu0
      %1522 = vmatmul.bf16.gmra.mxu0 %v1214
      %v1523 = vpop.f32.mrf.mxu0
      %v1524 = vadd.f32 %v1337, %v1523
      %v1525 = vpop.f32.mrf.mxu0
      %v1526 = vadd.f32 %v1339, %v1525
      %1527 = vmatmul.bf16.gmra.mxu0 %v1217
      %v1528 = vpop.f32.mrf.mxu0
      %v1529 = vpop.f32.mrf.mxu0
      %1530 = vmatmul.bf16.gmra.mxu0 %v1220
      %v1531 = vpop.f32.mrf.mxu0
      %v1532 = vadd.f32 %v1345, %v1531
      %v1533 = vpop.f32.mrf.mxu0
      %v1534 = vadd.f32 %v1347, %v1533
      %1535 = vmatmul.bf16.gmra.mxu0 %v1223
      %v1536 = vpop.f32.mrf.mxu0
      %v1537 = vpop.f32.mrf.mxu0
      %1538 = vmatmul.bf16.gmra.mxu0 %v1226
      %v1539 = vpop.f32.mrf.mxu0
      %v1540 = vadd.f32 %v1353, %v1539
      %v1541 = vpop.f32.mrf.mxu0
      %v1542 = vadd.f32 %v1355, %v1541
      %1543 = vmatmul.bf16.gmra.mxu0 %v1229
      %v1544 = vpop.f32.mrf.mxu0
      %v1545 = vpop.f32.mrf.mxu0
      %1546 = vmatmul.bf16.gmra.mxu0 %v1232
      %v1547 = vpop.f32.mrf.mxu0
      %v1548 = vadd.f32 %v1361, %v1547
      %v1549 = vpop.f32.mrf.mxu0
      %v1550 = vadd.f32 %v1363, %v1549
      %1551 = vmatmul.bf16.gmra.mxu0 %v1235
      %v1552 = vpop.f32.mrf.mxu0
      %v1553 = vpop.f32.mrf.mxu0
      %1554 = vmatmul.bf16.gmra.mxu0 %v1238
      %v1555 = vpop.f32.mrf.mxu0
      %v1556 = vadd.f32 %v1369, %v1555
      %v1557 = vpop.f32.mrf.mxu0
      %v1558 = vadd.f32 %v1371, %v1557
      %1559 = vmatmul.bf16.gmra.mxu0 %v1241
      %v1560 = vpop.f32.mrf.mxu0
      %v1561 = vpop.f32.mrf.mxu0
      %1562 = vmatmul.bf16.gmra.mxu0 %v1244
      %v1563 = vpop.f32.mrf.mxu0
      %v1564 = vadd.f32 %v1377, %v1563
      %v1565 = vpop.f32.mrf.mxu0
      %v1566 = vadd.f32 %v1379, %v1565
      %1567 = vmatmul.bf16.gmra.mxu0 %v1247
      %v1568 = vpop.f32.mrf.mxu0
      %v1569 = vpop.f32.mrf.mxu0
      %1570 = vmatmul.bf16.gmra.mxu0 %v1250
      %v1571 = vpop.f32.mrf.mxu0
      %v1572 = vadd.f32 %v1385, %v1571
      %v1573 = vpop.f32.mrf.mxu0
      %v1574 = vadd.f32 %v1387, %v1573
      %1575 = vmatmul.bf16.gmra.mxu0 %v1253
      %v1576 = vpop.f32.mrf.mxu0
      %v1577 = vpop.f32.mrf.mxu0
      %1578 = vmatmul.bf16.gmra.mxu0 %v1256
      %v1579 = vpop.f32.mrf.mxu0
      %v1580 = vadd.f32 %v1393, %v1579
      %v1581 = vpop.f32.mrf.mxu0
      %v1582 = vadd.f32 %v1395, %v1581
      %1583 = vmatmul.bf16.gmra.mxu0 %v1259
      %v1584 = vpop.f32.mrf.mxu0
      %v1585 = vpop.f32.mrf.mxu0
      %1586 = vmatmul.bf16.gmra.mxu0 %v1262
      %v1587 = vpop.f32.mrf.mxu0
      %v1588 = vadd.f32 %v1401, %v1587
      %v1589 = vpop.f32.mrf.mxu0
      %v1590 = vadd.f32 %v1403, %v1589
      %1591 = vmatmul.bf16.gmra.mxu0 %v1265
      %v1592 = vpop.f32.mrf.mxu0
      %v1593 = vpop.f32.mrf.mxu0
      %1594 = vmatmul.bf16.gmra.mxu0 %v1268
      %v1595 = vpop.f32.mrf.mxu0
      %v1596 = vadd.f32 %v1409, %v1595
      %v1597 = vpop.f32.mrf.mxu0
      %v1598 = vadd.f32 %v1411, %v1597
      %1599 = vmatmul.bf16.gmra.mxu0 %v1271
      %v1600 = vpop.f32.mrf.mxu0
      %v1601 = vpop.f32.mrf.mxu0
      %1602 = vmatmul.bf16.gmra.mxu0 %v1274
      %v1603 = vpop.f32.mrf.mxu0
      %v1604 = vadd.f32 %v1417, %v1603
      %v1605 = vpop.f32.mrf.mxu0
      %v1606 = vadd.f32 %v1419, %v1605
      %1607 = vmatmul.bf16.gmra.mxu0 %v1277
      %v1608 = vpop.f32.mrf.mxu0
      %v1609 = vpop.f32.mrf.mxu0
      %1610 = vmatmul.bf16.gmra.mxu0 %v1280
      %v1611 = vpop.f32.mrf.mxu0
      %v1612 = vadd.f32 %v1425, %v1611
      %v1613 = vpop.f32.mrf.mxu0
      %v1614 = vadd.f32 %v1427, %v1613
      %1615 = vmatmul.bf16.gmra.mxu0 %v1477
      %v1616 = vpop.f32.mrf.mxu0
      %v1617 = vpop.f32.mrf.mxu0
      %1618 = vdwg.mxu0
      %s1619 = scalar_lea.vmem %s3, 12
      %v1620 = vld [vmem:[%s1619] sm:$0x3]
      %v1625 = vunpack.c.l.b16 %v725
      %v1626 = vunpack.c.l.b16 %v726
      %v1627 = vunpack.c.l.b16 %v727
      %v1628 = vunpack.c.l.b16 %v728
      %v1629 = vpack.c.b16 %v1625, %v863
      %v1630 = vpack.c.b16 %v1627, %v1626
      %v1631 = vpack.c.b16 %v1628, %v1628
      %v1633 = vshrl.u32 %v1629, 16
      %v1635 = vrot.slane %v1633, 3
      %v1636 = vshll.u32 %v1629, 16
      %v1638 = vrot.slane %v1636, 4
      %v1639 = vor.u32 %v1635, %v1638
      %v1640 = vsel %vm897, %v1183, %v1639
      %v1642 = vshrl.u32 %v1630, 16
      %v1644 = vrot.slane %v1642, 3
      %v1645 = vshll.u32 %v1630, 16
      %v1647 = vrot.slane %v1645, 4
      %v1648 = vor.u32 %v1644, %v1647
      %v1649 = vsel %vm897, %v1639, %v1648
      %v1651 = vshrl.u32 %v1631, 16
      %v1653 = vrot.slane %v1651, 3
      %v1654 = vshll.u32 %v1631, 16
      %v1656 = vrot.slane %v1654, 4
      %v1657 = vor.u32 %v1653, %v1656
      %v1658 = vsel %vm897, %v1648, %v1657
      %v1660 = vsel %vm1194, %v1640, 0
      %v1663 = vsel %vm1194, %v1649, 0
      %v1666 = vsel %vm1194, %v1658, 0
      %v1669 = vsel %vm1291, %v1620, 0
      %1671 = vmatpush.bf16.msra.mxu0 0
      %1672 = vmatpush.bf16.msra.mxu0 0
      %1673 = vmatpush.bf16.msra.mxu0 0
      %1674 = vmatpush.bf16.msra.mxu0 0
      %1675 = vmatpush.bf16.msra.mxu0 0
      %1676 = vmatpush.bf16.msra.mxu0 0
      %1677 = vmatpush.bf16.msra.mxu0 0
      %1678 = vmatpush.bf16.msra.mxu0 %v1669
      %1679 = vmatmul.bf16.gmra.mxu0 %v1202
      %v1680 = vpop.f32.mrf.mxu0
      %v1681 = vadd.f32 0.0, %v1680
      %v1682 = vpop.f32.mrf.mxu0
      %v1683 = vadd.f32 0.0, %v1682
      %1684 = vmatmul.bf16.gmra.mxu0 %v1205
      %v1685 = vpop.f32.mrf.mxu0
      %v1686 = vpop.f32.mrf.mxu0
      %1687 = vmatmul.bf16.gmra.mxu0 %v1208
      %v1688 = vpop.f32.mrf.mxu0
      %v1689 = vadd.f32 0.0, %v1688
      %v1690 = vpop.f32.mrf.mxu0
      %v1691 = vadd.f32 0.0, %v1690
      %1692 = vmatmul.bf16.gmra.mxu0 %v1211
      %v1693 = vpop.f32.mrf.mxu0
      %v1694 = vpop.f32.mrf.mxu0
      %1695 = vmatmul.bf16.gmra.mxu0 %v1214
      %v1696 = vpop.f32.mrf.mxu0
      %v1697 = vadd.f32 0.0, %v1696
      %v1698 = vpop.f32.mrf.mxu0
      %v1699 = vadd.f32 0.0, %v1698
      %1700 = vmatmul.bf16.gmra.mxu0 %v1217
      %v1701 = vpop.f32.mrf.mxu0
      %v1702 = vpop.f32.mrf.mxu0
      %1703 = vmatmul.bf16.gmra.mxu0 %v1220
      %v1704 = vpop.f32.mrf.mxu0
      %v1705 = vadd.f32 0.0, %v1704
      %v1706 = vpop.f32.mrf.mxu0
      %v1707 = vadd.f32 0.0, %v1706
      %1708 = vmatmul.bf16.gmra.mxu0 %v1223
      %v1709 = vpop.f32.mrf.mxu0
      %v1710 = vpop.f32.mrf.mxu0
      %1711 = vmatmul.bf16.gmra.mxu0 %v1226
      %v1712 = vpop.f32.mrf.mxu0
      %v1713 = vadd.f32 0.0, %v1712
      %v1714 = vpop.f32.mrf.mxu0
      %v1715 = vadd.f32 0.0, %v1714
      %1716 = vmatmul.bf16.gmra.mxu0 %v1229
      %v1717 = vpop.f32.mrf.mxu0
      %v1718 = vpop.f32.mrf.mxu0
      %1719 = vmatmul.bf16.gmra.mxu0 %v1232
      %v1720 = vpop.f32.mrf.mxu0
      %v1721 = vadd.f32 0.0, %v1720
      %v1722 = vpop.f32.mrf.mxu0
      %v1723 = vadd.f32 0.0, %v1722
      %1724 = vmatmul.bf16.gmra.mxu0 %v1235
      %v1725 = vpop.f32.mrf.mxu0
      %v1726 = vpop.f32.mrf.mxu0
      %1727 = vmatmul.bf16.gmra.mxu0 %v1238
      %v1728 = vpop.f32.mrf.mxu0
      %v1729 = vadd.f32 0.0, %v1728
      %v1730 = vpop.f32.mrf.mxu0
      %v1731 = vadd.f32 0.0, %v1730
      %1732 = vmatmul.bf16.gmra.mxu0 %v1241
      %v1733 = vpop.f32.mrf.mxu0
      %v1734 = vpop.f32.mrf.mxu0
      %1735 = vmatmul.bf16.gmra.mxu0 %v1244
      %v1736 = vpop.f32.mrf.mxu0
      %v1737 = vadd.f32 0.0, %v1736
      %v1738 = vpop.f32.mrf.mxu0
      %v1739 = vadd.f32 0.0, %v1738
      %1740 = vmatmul.bf16.gmra.mxu0 %v1247
      %v1741 = vpop.f32.mrf.mxu0
      %v1742 = vpop.f32.mrf.mxu0
      %1743 = vmatmul.bf16.gmra.mxu0 %v1250
      %v1744 = vpop.f32.mrf.mxu0
      %v1745 = vadd.f32 0.0, %v1744
      %v1746 = vpop.f32.mrf.mxu0
      %v1747 = vadd.f32 0.0, %v1746
      %1748 = vmatmul.bf16.gmra.mxu0 %v1253
      %v1749 = vpop.f32.mrf.mxu0
      %v1750 = vpop.f32.mrf.mxu0
      %1751 = vmatmul.bf16.gmra.mxu0 %v1256
      %v1752 = vpop.f32.mrf.mxu0
      %v1753 = vadd.f32 0.0, %v1752
      %v1754 = vpop.f32.mrf.mxu0
      %v1755 = vadd.f32 0.0, %v1754
      %1756 = vmatmul.bf16.gmra.mxu0 %v1259
      %v1757 = vpop.f32.mrf.mxu0
      %v1758 = vpop.f32.mrf.mxu0
      %1759 = vmatmul.bf16.gmra.mxu0 %v1262
      %v1760 = vpop.f32.mrf.mxu0
      %v1761 = vadd.f32 0.0, %v1760
      %v1762 = vpop.f32.mrf.mxu0
      %v1763 = vadd.f32 0.0, %v1762
      %1764 = vmatmul.bf16.gmra.mxu0 %v1265
      %v1765 = vpop.f32.mrf.mxu0
      %v1766 = vpop.f32.mrf.mxu0
      %1767 = vmatmul.bf16.gmra.mxu0 %v1268
      %v1768 = vpop.f32.mrf.mxu0
      %v1769 = vadd.f32 0.0, %v1768
      %v1770 = vpop.f32.mrf.mxu0
      %v1771 = vadd.f32 0.0, %v1770
      %1772 = vmatmul.bf16.gmra.mxu0 %v1271
      %v1773 = vpop.f32.mrf.mxu0
      %v1774 = vpop.f32.mrf.mxu0
      %1775 = vmatmul.bf16.gmra.mxu0 %v1274
      %v1776 = vpop.f32.mrf.mxu0
      %v1777 = vadd.f32 0.0, %v1776
      %v1778 = vpop.f32.mrf.mxu0
      %v1779 = vadd.f32 0.0, %v1778
      %1780 = vmatmul.bf16.gmra.mxu0 %v1277
      %v1781 = vpop.f32.mrf.mxu0
      %v1782 = vpop.f32.mrf.mxu0
      %1783 = vmatmul.bf16.gmra.mxu0 %v1280
      %v1784 = vpop.f32.mrf.mxu0
      %v1785 = vadd.f32 0.0, %v1784
      %v1786 = vpop.f32.mrf.mxu0
      %v1787 = vadd.f32 0.0, %v1786
      %1788 = vmatmul.bf16.gmra.mxu0 %v1283
      %v1789 = vpop.f32.mrf.mxu0
      %v1790 = vpop.f32.mrf.mxu0
      %1791 = vmatmul.bf16.gmra.mxu0 %v1286
      %v1792 = vpop.f32.mrf.mxu0
      %v1793 = vadd.f32 0.0, %v1792
      %v1794 = vpop.f32.mrf.mxu0
      %v1795 = vadd.f32 0.0, %v1794
      %1796 = vmatmul.bf16.gmra.mxu0 %v1660
      %v1797 = vpop.f32.mrf.mxu0
      %v1798 = vpop.f32.mrf.mxu0
      %1799 = vmatmul.bf16.gmra.mxu0 %v1663
      %v1800 = vpop.f32.mrf.mxu0
      %v1801 = vadd.f32 0.0, %v1800
      %v1802 = vpop.f32.mrf.mxu0
      %v1803 = vadd.f32 0.0, %v1802
      %1804 = vmatmul.bf16.gmra.mxu0 %v1666
      %v1805 = vpop.f32.mrf.mxu0
      %v1806 = vpop.f32.mrf.mxu0
      %1807 = vdwg.mxu0
      %v1808 = vadd.f32 %v1492, %v1681
      %v1809 = vadd.f32 %v1494, %v1683
      %v1810 = vadd.f32 %v1500, %v1689
      %v1811 = vadd.f32 %v1502, %v1691
      %v1812 = vadd.f32 %v1508, %v1697
      %v1813 = vadd.f32 %v1510, %v1699
      %v1814 = vadd.f32 %v1516, %v1705
      %v1815 = vadd.f32 %v1518, %v1707
      %v1816 = vadd.f32 %v1524, %v1713
      %v1817 = vadd.f32 %v1526, %v1715
      %v1818 = vadd.f32 %v1532, %v1721
      %v1819 = vadd.f32 %v1534, %v1723
      %v1820 = vadd.f32 %v1540, %v1729
      %v1821 = vadd.f32 %v1542, %v1731
      %v1822 = vadd.f32 %v1548, %v1737
      %v1823 = vadd.f32 %v1550, %v1739
      %v1824 = vadd.f32 %v1556, %v1745
      %v1825 = vadd.f32 %v1558, %v1747
      %v1826 = vadd.f32 %v1564, %v1753
      %v1827 = vadd.f32 %v1566, %v1755
      %v1828 = vadd.f32 %v1572, %v1761
      %v1829 = vadd.f32 %v1574, %v1763
      %v1830 = vadd.f32 %v1580, %v1769
      %v1831 = vadd.f32 %v1582, %v1771
      %v1832 = vadd.f32 %v1588, %v1777
      %v1833 = vadd.f32 %v1590, %v1779
      %v1834 = vadd.f32 %v1596, %v1785
      %v1835 = vadd.f32 %v1598, %v1787
      %v1836 = vadd.f32 %v1604, %v1793
      %v1837 = vadd.f32 %v1606, %v1795
      %v1838 = vadd.f32 %v1612, %v1801
      %v1839 = vadd.f32 %v1614, %v1803
      %s1840 = scalar_lea.vmem %s3, 2
      %v1841 = vld [vmem:[%s1840] sm:$0x3]
      %v1842 = vpack.c.b16 %v1438, %v1437
      %v1843 = vpack.c.b16 %v799, %v1439
      %v1844 = vpack.c.b16 %v801, %v800
      %v1845 = vpack.c.b16 %v803, %v802
      %v1846 = vpack.c.b16 %v805, %v804
      %v1847 = vpack.c.b16 %v807, %v806
      %v1848 = vpack.c.b16 %v809, %v808
      %v1849 = vpack.c.b16 %v811, %v810
      %v1850 = vpack.c.b16 %v813, %v812
      %v1851 = vpack.c.b16 %v815, %v814
      %v1852 = vpack.c.b16 %v817, %v816
      %v1853 = vpack.c.b16 %v819, %v818
      %v1854 = vpack.c.b16 %v821, %v820
      %v1855 = vpack.c.b16 %v823, %v822
      %v1856 = vpack.c.b16 %v825, %v824
      %v1857 = vpack.c.b16 %v827, %v826
      %v1858 = vpack.c.b16 %v829, %v828
      %v1859 = vpack.c.b16 %v831, %v830
      %v1860 = vpack.c.b16 %v833, %v832
      %v1861 = vpack.c.b16 %v835, %v834
      %v1862 = vpack.c.b16 %v837, %v836
      %v1863 = vpack.c.b16 %v839, %v838
      %v1864 = vpack.c.b16 %v841, %v840
      %v1865 = vpack.c.b16 %v843, %v842
      %v1866 = vpack.c.b16 %v845, %v844
      %v1867 = vpack.c.b16 %v847, %v846
      %v1868 = vpack.c.b16 %v849, %v848
      %v1869 = vpack.c.b16 %v851, %v850
      %v1870 = vpack.c.b16 %v853, %v852
      %v1871 = vpack.c.b16 %v855, %v854
      %v1872 = vpack.c.b16 %v857, %v856
      %v1873 = vpack.c.b16 %v859, %v858
      %v1875 = vsel %vm1194, %v1842, 0
      %v1878 = vsel %vm1194, %v1843, 0
      %v1881 = vsel %vm1194, %v1844, 0
      %v1884 = vsel %vm1194, %v1845, 0
      %v1887 = vsel %vm1194, %v1846, 0
      %v1890 = vsel %vm1194, %v1847, 0
      %v1893 = vsel %vm1194, %v1848, 0
      %v1896 = vsel %vm1194, %v1849, 0
      %v1899 = vsel %vm1194, %v1850, 0
      %v1902 = vsel %vm1194, %v1851, 0
      %v1905 = vsel %vm1194, %v1852, 0
      %v1908 = vsel %vm1194, %v1853, 0
      %v1911 = vsel %vm1194, %v1854, 0
      %v1914 = vsel %vm1194, %v1855, 0
      %v1917 = vsel %vm1194, %v1856, 0
      %v1920 = vsel %vm1194, %v1857, 0
      %v1923 = vsel %vm1194, %v1858, 0
      %v1926 = vsel %vm1194, %v1859, 0
      %v1929 = vsel %vm1194, %v1860, 0
      %v1932 = vsel %vm1194, %v1861, 0
      %v1935 = vsel %vm1194, %v1862, 0
      %v1938 = vsel %vm1194, %v1863, 0
      %v1941 = vsel %vm1194, %v1864, 0
      %v1944 = vsel %vm1194, %v1865, 0
      %v1947 = vsel %vm1194, %v1866, 0
      %v1950 = vsel %vm1194, %v1867, 0
      %v1953 = vsel %vm1194, %v1868, 0
      %v1956 = vsel %vm1194, %v1869, 0
      %v1959 = vsel %vm1194, %v1870, 0
      %v1962 = vsel %vm1194, %v1871, 0
      %v1965 = vsel %vm1194, %v1872, 0
      %v1968 = vsel %vm1194, %v1873, 0
      %v1971 = vsel %vm1291, %v1841, 0
      %1973 = vmatpush.bf16.msra.mxu0 0
      %1974 = vmatpush.bf16.msra.mxu0 0
      %1975 = vmatpush.bf16.msra.mxu0 0
      %1976 = vmatpush.bf16.msra.mxu0 0
      %1977 = vmatpush.bf16.msra.mxu0 0
      %1978 = vmatpush.bf16.msra.mxu0 0
      %1979 = vmatpush.bf16.msra.mxu0 0
      %1980 = vmatpush.bf16.msra.mxu0 %v1971
      %1981 = vmatmul.bf16.gmra.mxu0 %v1875
      %v1982 = vpop.f32.mrf.mxu0
      %v1983 = vadd.f32 0.0, %v1982
      %v1984 = vpop.f32.mrf.mxu0
      %v1985 = vadd.f32 0.0, %v1984
      %1986 = vmatmul.bf16.gmra.mxu0 %v1878
      %v1987 = vpop.f32.mrf.mxu0
      %v1988 = vpop.f32.mrf.mxu0
      %1989 = vmatmul.bf16.gmra.mxu0 %v1881
      %v1990 = vpop.f32.mrf.mxu0
      %v1991 = vadd.f32 0.0, %v1990
      %v1992 = vpop.f32.mrf.mxu0
      %v1993 = vadd.f32 0.0, %v1992
      %1994 = vmatmul.bf16.gmra.mxu0 %v1884
      %v1995 = vpop.f32.mrf.mxu0
      %v1996 = vpop.f32.mrf.mxu0
      %1997 = vmatmul.bf16.gmra.mxu0 %v1887
      %v1998 = vpop.f32.mrf.mxu0
      %v1999 = vadd.f32 0.0, %v1998
      %v2000 = vpop.f32.mrf.mxu0
      %v2001 = vadd.f32 0.0, %v2000
      %2002 = vmatmul.bf16.gmra.mxu0 %v1890
      %v2003 = vpop.f32.mrf.mxu0
      %v2004 = vpop.f32.mrf.mxu0
      %2005 = vmatmul.bf16.gmra.mxu0 %v1893
      %v2006 = vpop.f32.mrf.mxu0
      %v2007 = vadd.f32 0.0, %v2006
      %v2008 = vpop.f32.mrf.mxu0
      %v2009 = vadd.f32 0.0, %v2008
      %2010 = vmatmul.bf16.gmra.mxu0 %v1896
      %v2011 = vpop.f32.mrf.mxu0
      %v2012 = vpop.f32.mrf.mxu0
      %2013 = vmatmul.bf16.gmra.mxu0 %v1899
      %v2014 = vpop.f32.mrf.mxu0
      %v2015 = vadd.f32 0.0, %v2014
      %v2016 = vpop.f32.mrf.mxu0
      %v2017 = vadd.f32 0.0, %v2016
      %2018 = vmatmul.bf16.gmra.mxu0 %v1902
      %v2019 = vpop.f32.mrf.mxu0
      %v2020 = vpop.f32.mrf.mxu0
      %2021 = vmatmul.bf16.gmra.mxu0 %v1905
      %v2022 = vpop.f32.mrf.mxu0
      %v2023 = vadd.f32 0.0, %v2022
      %v2024 = vpop.f32.mrf.mxu0
      %v2025 = vadd.f32 0.0, %v2024
      %2026 = vmatmul.bf16.gmra.mxu0 %v1908
      %v2027 = vpop.f32.mrf.mxu0
      %v2028 = vpop.f32.mrf.mxu0
      %2029 = vmatmul.bf16.gmra.mxu0 %v1911
      %v2030 = vpop.f32.mrf.mxu0
      %v2031 = vadd.f32 0.0, %v2030
      %v2032 = vpop.f32.mrf.mxu0
      %v2033 = vadd.f32 0.0, %v2032
      %2034 = vmatmul.bf16.gmra.mxu0 %v1914
      %v2035 = vpop.f32.mrf.mxu0
      %v2036 = vpop.f32.mrf.mxu0
      %2037 = vmatmul.bf16.gmra.mxu0 %v1917
      %v2038 = vpop.f32.mrf.mxu0
      %v2039 = vadd.f32 0.0, %v2038
      %v2040 = vpop.f32.mrf.mxu0
      %v2041 = vadd.f32 0.0, %v2040
      %2042 = vmatmul.bf16.gmra.mxu0 %v1920
      %v2043 = vpop.f32.mrf.mxu0
      %v2044 = vpop.f32.mrf.mxu0
      %2045 = vmatmul.bf16.gmra.mxu0 %v1923
      %v2046 = vpop.f32.mrf.mxu0
      %v2047 = vadd.f32 0.0, %v2046
      %v2048 = vpop.f32.mrf.mxu0
      %v2049 = vadd.f32 0.0, %v2048
      %2050 = vmatmul.bf16.gmra.mxu0 %v1926
      %v2051 = vpop.f32.mrf.mxu0
      %v2052 = vpop.f32.mrf.mxu0
      %2053 = vmatmul.bf16.gmra.mxu0 %v1929
      %v2054 = vpop.f32.mrf.mxu0
      %v2055 = vadd.f32 0.0, %v2054
      %v2056 = vpop.f32.mrf.mxu0
      %v2057 = vadd.f32 0.0, %v2056
      %2058 = vmatmul.bf16.gmra.mxu0 %v1932
      %v2059 = vpop.f32.mrf.mxu0
      %v2060 = vpop.f32.mrf.mxu0
      %2061 = vmatmul.bf16.gmra.mxu0 %v1935
      %v2062 = vpop.f32.mrf.mxu0
      %v2063 = vadd.f32 0.0, %v2062
      %v2064 = vpop.f32.mrf.mxu0
      %v2065 = vadd.f32 0.0, %v2064
      %2066 = vmatmul.bf16.gmra.mxu0 %v1938
      %v2067 = vpop.f32.mrf.mxu0
      %v2068 = vpop.f32.mrf.mxu0
      %2069 = vmatmul.bf16.gmra.mxu0 %v1941
      %v2070 = vpop.f32.mrf.mxu0
      %v2071 = vadd.f32 0.0, %v2070
      %v2072 = vpop.f32.mrf.mxu0
      %v2073 = vadd.f32 0.0, %v2072
      %2074 = vmatmul.bf16.gmra.mxu0 %v1944
      %v2075 = vpop.f32.mrf.mxu0
      %v2076 = vpop.f32.mrf.mxu0
      %2077 = vmatmul.bf16.gmra.mxu0 %v1947
      %v2078 = vpop.f32.mrf.mxu0
      %v2079 = vadd.f32 0.0, %v2078
      %v2080 = vpop.f32.mrf.mxu0
      %v2081 = vadd.f32 0.0, %v2080
      %2082 = vmatmul.bf16.gmra.mxu0 %v1950
      %v2083 = vpop.f32.mrf.mxu0
      %v2084 = vpop.f32.mrf.mxu0
      %2085 = vmatmul.bf16.gmra.mxu0 %v1953
      %v2086 = vpop.f32.mrf.mxu0
      %v2087 = vadd.f32 0.0, %v2086
      %v2088 = vpop.f32.mrf.mxu0
      %v2089 = vadd.f32 0.0, %v2088
      %2090 = vmatmul.bf16.gmra.mxu0 %v1956
      %v2091 = vpop.f32.mrf.mxu0
      %v2092 = vpop.f32.mrf.mxu0
      %2093 = vmatmul.bf16.gmra.mxu0 %v1959
      %v2094 = vpop.f32.mrf.mxu0
      %v2095 = vadd.f32 0.0, %v2094
      %v2096 = vpop.f32.mrf.mxu0
      %v2097 = vadd.f32 0.0, %v2096
      %2098 = vmatmul.bf16.gmra.mxu0 %v1962
      %v2099 = vpop.f32.mrf.mxu0
      %v2100 = vpop.f32.mrf.mxu0
      %2101 = vmatmul.bf16.gmra.mxu0 %v1965
      %v2102 = vpop.f32.mrf.mxu0
      %v2103 = vadd.f32 0.0, %v2102
      %v2104 = vpop.f32.mrf.mxu0
      %v2105 = vadd.f32 0.0, %v2104
      %2106 = vmatmul.bf16.gmra.mxu0 %v1968
      %v2107 = vpop.f32.mrf.mxu0
      %v2108 = vpop.f32.mrf.mxu0
      %2109 = vdwg.mxu0
      %v2110 = vadd.f32 %v1808, %v1983
      %v2111 = vadd.f32 %v1809, %v1985
      %v2112 = vadd.f32 %v1810, %v1991
      %v2113 = vadd.f32 %v1811, %v1993
      %v2114 = vadd.f32 %v1812, %v1999
      %v2115 = vadd.f32 %v1813, %v2001
      %v2116 = vadd.f32 %v1814, %v2007
      %v2117 = vadd.f32 %v1815, %v2009
      %v2118 = vadd.f32 %v1816, %v2015
      %v2119 = vadd.f32 %v1817, %v2017
      %v2120 = vadd.f32 %v1818, %v2023
      %v2121 = vadd.f32 %v1819, %v2025
      %v2122 = vadd.f32 %v1820, %v2031
      %v2123 = vadd.f32 %v1821, %v2033
      %v2124 = vadd.f32 %v1822, %v2039
      %v2125 = vadd.f32 %v1823, %v2041
      %v2126 = vadd.f32 %v1824, %v2047
      %v2127 = vadd.f32 %v1825, %v2049
      %v2128 = vadd.f32 %v1826, %v2055
      %v2129 = vadd.f32 %v1827, %v2057
      %v2130 = vadd.f32 %v1828, %v2063
      %v2131 = vadd.f32 %v1829, %v2065
      %v2132 = vadd.f32 %v1830, %v2071
      %v2133 = vadd.f32 %v1831, %v2073
      %v2134 = vadd.f32 %v1832, %v2079
      %v2135 = vadd.f32 %v1833, %v2081
      %v2136 = vadd.f32 %v1834, %v2087
      %v2137 = vadd.f32 %v1835, %v2089
      %v2138 = vadd.f32 %v1836, %v2095
      %v2139 = vadd.f32 %v1837, %v2097
      %v2140 = vadd.f32 %v1838, %v2103
      %v2141 = vadd.f32 %v1839, %v2105
      %s2142 = scalar_lea.vmem %s3, 8
      %v2143 = vld [vmem:[%s2142] sm:$0x3]
      %v2144 = vpack.c.b16 %v861, %v860
      %v2145 = vpack.c.b16 %v863, %v862
      %v2147 = vsel %vm1194, %v2144, 0
      %v2150 = vsel %vm1194, %v2145, 0
      %v2153 = vsel %vm1291, %v2143, 0
      %2155 = vmatpush.bf16.msra.mxu0 0
      %2156 = vmatpush.bf16.msra.mxu0 0
      %2157 = vmatpush.bf16.msra.mxu0 0
      %2158 = vmatpush.bf16.msra.mxu0 0
      %2159 = vmatpush.bf16.msra.mxu0 0
      %2160 = vmatpush.bf16.msra.mxu0 0
      %2161 = vmatpush.bf16.msra.mxu0 0
      %2162 = vmatpush.bf16.msra.mxu0 %v2153
      %2163 = vmatmul.bf16.gmra.mxu0 %v1881
      %v2164 = vpop.f32.mrf.mxu0
      %v2165 = vadd.f32 0.0, %v2164
      %v2166 = vpop.f32.mrf.mxu0
      %v2167 = vadd.f32 0.0, %v2166
      %2168 = vmatmul.bf16.gmra.mxu0 %v1884
      %v2169 = vpop.f32.mrf.mxu0
      %v2170 = vpop.f32.mrf.mxu0
      %2171 = vmatmul.bf16.gmra.mxu0 %v1887
      %v2172 = vpop.f32.mrf.mxu0
      %v2173 = vadd.f32 0.0, %v2172
      %v2174 = vpop.f32.mrf.mxu0
      %v2175 = vadd.f32 0.0, %v2174
      %2176 = vmatmul.bf16.gmra.mxu0 %v1890
      %v2177 = vpop.f32.mrf.mxu0
      %v2178 = vpop.f32.mrf.mxu0
      %2179 = vmatmul.bf16.gmra.mxu0 %v1893
      %v2180 = vpop.f32.mrf.mxu0
      %v2181 = vadd.f32 0.0, %v2180
      %v2182 = vpop.f32.mrf.mxu0
      %v2183 = vadd.f32 0.0, %v2182
      %2184 = vmatmul.bf16.gmra.mxu0 %v1896
      %v2185 = vpop.f32.mrf.mxu0
      %v2186 = vpop.f32.mrf.mxu0
      %2187 = vmatmul.bf16.gmra.mxu0 %v1899
      %v2188 = vpop.f32.mrf.mxu0
      %v2189 = vadd.f32 0.0, %v2188
      %v2190 = vpop.f32.mrf.mxu0
      %v2191 = vadd.f32 0.0, %v2190
      %2192 = vmatmul.bf16.gmra.mxu0 %v1902
      %v2193 = vpop.f32.mrf.mxu0
      %v2194 = vpop.f32.mrf.mxu0
      %2195 = vmatmul.bf16.gmra.mxu0 %v1905
      %v2196 = vpop.f32.mrf.mxu0
      %v2197 = vadd.f32 0.0, %v2196
      %v2198 = vpop.f32.mrf.mxu0
      %v2199 = vadd.f32 0.0, %v2198
      %2200 = vmatmul.bf16.gmra.mxu0 %v1908
      %v2201 = vpop.f32.mrf.mxu0
      %v2202 = vpop.f32.mrf.mxu0
      %2203 = vmatmul.bf16.gmra.mxu0 %v1911
      %v2204 = vpop.f32.mrf.mxu0
      %v2205 = vadd.f32 0.0, %v2204
      %v2206 = vpop.f32.mrf.mxu0
      %v2207 = vadd.f32 0.0, %v2206
      %2208 = vmatmul.bf16.gmra.mxu0 %v1914
      %v2209 = vpop.f32.mrf.mxu0
      %v2210 = vpop.f32.mrf.mxu0
      %2211 = vmatmul.bf16.gmra.mxu0 %v1917
      %v2212 = vpop.f32.mrf.mxu0
      %v2213 = vadd.f32 0.0, %v2212
      %v2214 = vpop.f32.mrf.mxu0
      %v2215 = vadd.f32 0.0, %v2214
      %2216 = vmatmul.bf16.gmra.mxu0 %v1920
      %v2217 = vpop.f32.mrf.mxu0
      %v2218 = vpop.f32.mrf.mxu0
      %2219 = vmatmul.bf16.gmra.mxu0 %v1923
      %v2220 = vpop.f32.mrf.mxu0
      %v2221 = vadd.f32 0.0, %v2220
      %v2222 = vpop.f32.mrf.mxu0
      %v2223 = vadd.f32 0.0, %v2222
      %2224 = vmatmul.bf16.gmra.mxu0 %v1926
      %v2225 = vpop.f32.mrf.mxu0
      %v2226 = vpop.f32.mrf.mxu0
      %2227 = vmatmul.bf16.gmra.mxu0 %v1929
      %v2228 = vpop.f32.mrf.mxu0
      %v2229 = vadd.f32 0.0, %v2228
      %v2230 = vpop.f32.mrf.mxu0
      %v2231 = vadd.f32 0.0, %v2230
      %2232 = vmatmul.bf16.gmra.mxu0 %v1932
      %v2233 = vpop.f32.mrf.mxu0
      %v2234 = vpop.f32.mrf.mxu0
      %2235 = vmatmul.bf16.gmra.mxu0 %v1935
      %v2236 = vpop.f32.mrf.mxu0
      %v2237 = vadd.f32 0.0, %v2236
      %v2238 = vpop.f32.mrf.mxu0
      %v2239 = vadd.f32 0.0, %v2238
      %2240 = vmatmul.bf16.gmra.mxu0 %v1938
      %v2241 = vpop.f32.mrf.mxu0
      %v2242 = vpop.f32.mrf.mxu0
      %2243 = vmatmul.bf16.gmra.mxu0 %v1941
      %v2244 = vpop.f32.mrf.mxu0
      %v2245 = vadd.f32 0.0, %v2244
      %v2246 = vpop.f32.mrf.mxu0
      %v2247 = vadd.f32 0.0, %v2246
      %2248 = vmatmul.bf16.gmra.mxu0 %v1944
      %v2249 = vpop.f32.mrf.mxu0
      %v2250 = vpop.f32.mrf.mxu0
      %2251 = vmatmul.bf16.gmra.mxu0 %v1947
      %v2252 = vpop.f32.mrf.mxu0
      %v2253 = vadd.f32 0.0, %v2252
      %v2254 = vpop.f32.mrf.mxu0
      %v2255 = vadd.f32 0.0, %v2254
      %2256 = vmatmul.bf16.gmra.mxu0 %v1950
      %v2257 = vpop.f32.mrf.mxu0
      %v2258 = vpop.f32.mrf.mxu0
      %2259 = vmatmul.bf16.gmra.mxu0 %v1953
      %v2260 = vpop.f32.mrf.mxu0
      %v2261 = vadd.f32 0.0, %v2260
      %v2262 = vpop.f32.mrf.mxu0
      %v2263 = vadd.f32 0.0, %v2262
      %2264 = vmatmul.bf16.gmra.mxu0 %v1956
      %v2265 = vpop.f32.mrf.mxu0
      %v2266 = vpop.f32.mrf.mxu0
      %2267 = vmatmul.bf16.gmra.mxu0 %v1959
      %v2268 = vpop.f32.mrf.mxu0
      %v2269 = vadd.f32 0.0, %v2268
      %v2270 = vpop.f32.mrf.mxu0
      %v2271 = vadd.f32 0.0, %v2270
      %2272 = vmatmul.bf16.gmra.mxu0 %v1962
      %v2273 = vpop.f32.mrf.mxu0
      %v2274 = vpop.f32.mrf.mxu0
      %2275 = vmatmul.bf16.gmra.mxu0 %v1965
      %v2276 = vpop.f32.mrf.mxu0
      %v2277 = vadd.f32 0.0, %v2276
      %v2278 = vpop.f32.mrf.mxu0
      %v2279 = vadd.f32 0.0, %v2278
      %2280 = vmatmul.bf16.gmra.mxu0 %v1968
      %v2281 = vpop.f32.mrf.mxu0
      %v2282 = vpop.f32.mrf.mxu0
      %2283 = vmatmul.bf16.gmra.mxu0 %v2147
      %v2284 = vpop.f32.mrf.mxu0
      %v2285 = vadd.f32 0.0, %v2284
      %v2286 = vpop.f32.mrf.mxu0
      %v2287 = vadd.f32 0.0, %v2286
      %2288 = vmatmul.bf16.gmra.mxu0 %v2150
      %v2289 = vpop.f32.mrf.mxu0
      %v2290 = vpop.f32.mrf.mxu0
      %2291 = vdwg.mxu0
      %v2292 = vadd.f32 %v2110, %v2165
      %v2293 = vadd.f32 %v2111, %v2167
      %v2294 = vadd.f32 %v2112, %v2173
      %v2295 = vadd.f32 %v2113, %v2175
      %v2296 = vadd.f32 %v2114, %v2181
      %v2297 = vadd.f32 %v2115, %v2183
      %v2298 = vadd.f32 %v2116, %v2189
      %v2299 = vadd.f32 %v2117, %v2191
      %v2300 = vadd.f32 %v2118, %v2197
      %v2301 = vadd.f32 %v2119, %v2199
      %v2302 = vadd.f32 %v2120, %v2205
      %v2303 = vadd.f32 %v2121, %v2207
      %v2304 = vadd.f32 %v2122, %v2213
      %v2305 = vadd.f32 %v2123, %v2215
      %v2306 = vadd.f32 %v2124, %v2221
      %v2307 = vadd.f32 %v2125, %v2223
      %v2308 = vadd.f32 %v2126, %v2229
      %v2309 = vadd.f32 %v2127, %v2231
      %v2310 = vadd.f32 %v2128, %v2237
      %v2311 = vadd.f32 %v2129, %v2239
      %v2312 = vadd.f32 %v2130, %v2245
      %v2313 = vadd.f32 %v2131, %v2247
      %v2314 = vadd.f32 %v2132, %v2253
      %v2315 = vadd.f32 %v2133, %v2255
      %v2316 = vadd.f32 %v2134, %v2261
      %v2317 = vadd.f32 %v2135, %v2263
      %v2318 = vadd.f32 %v2136, %v2269
      %v2319 = vadd.f32 %v2137, %v2271
      %v2320 = vadd.f32 %v2138, %v2277
      %v2321 = vadd.f32 %v2139, %v2279
      %v2322 = vadd.f32 %v2140, %v2285
      %v2323 = vadd.f32 %v2141, %v2287
      %s2324 = scalar_lea.vmem %s3, 14
      %v2325 = vld [vmem:[%s2324] sm:$0x3]
      %v2326 = vpack.c.b16 %v1626, %v1625
      %v2327 = vpack.c.b16 %v1628, %v1627
      %v2329 = vsel %vm1194, %v2326, 0
      %v2332 = vsel %vm1194, %v2327, 0
      %v2335 = vsel %vm1291, %v2325, 0
      %2337 = vmatpush.bf16.msra.mxu0 0
      %2338 = vmatpush.bf16.msra.mxu0 0
      %2339 = vmatpush.bf16.msra.mxu0 0
      %2340 = vmatpush.bf16.msra.mxu0 0
      %2341 = vmatpush.bf16.msra.mxu0 0
      %2342 = vmatpush.bf16.msra.mxu0 0
      %2343 = vmatpush.bf16.msra.mxu0 0
      %2344 = vmatpush.bf16.msra.mxu0 %v2335
      %2345 = vmatmul.bf16.gmra.mxu0 %v1887
      %v2346 = vpop.f32.mrf.mxu0
      %v2347 = vadd.f32 0.0, %v2346
      %v2348 = vpop.f32.mrf.mxu0
      %v2349 = vadd.f32 0.0, %v2348
      %2350 = vmatmul.bf16.gmra.mxu0 %v1890
      %v2351 = vpop.f32.mrf.mxu0
      %v2352 = vpop.f32.mrf.mxu0
      %2353 = vmatmul.bf16.gmra.mxu0 %v1893
      %v2354 = vpop.f32.mrf.mxu0
      %v2355 = vadd.f32 0.0, %v2354
      %v2356 = vpop.f32.mrf.mxu0
      %v2357 = vadd.f32 0.0, %v2356
      %2358 = vmatmul.bf16.gmra.mxu0 %v1896
      %v2359 = vpop.f32.mrf.mxu0
      %v2360 = vpop.f32.mrf.mxu0
      %2361 = vmatmul.bf16.gmra.mxu0 %v1899
      %v2362 = vpop.f32.mrf.mxu0
      %v2363 = vadd.f32 0.0, %v2362
      %v2364 = vpop.f32.mrf.mxu0
      %v2365 = vadd.f32 0.0, %v2364
      %2366 = vmatmul.bf16.gmra.mxu0 %v1902
      %v2367 = vpop.f32.mrf.mxu0
      %v2368 = vpop.f32.mrf.mxu0
      %2369 = vmatmul.bf16.gmra.mxu0 %v1905
      %v2370 = vpop.f32.mrf.mxu0
      %v2371 = vadd.f32 0.0, %v2370
      %v2372 = vpop.f32.mrf.mxu0
      %v2373 = vadd.f32 0.0, %v2372
      %2374 = vmatmul.bf16.gmra.mxu0 %v1908
      %v2375 = vpop.f32.mrf.mxu0
      %v2376 = vpop.f32.mrf.mxu0
      %2377 = vmatmul.bf16.gmra.mxu0 %v1911
      %v2378 = vpop.f32.mrf.mxu0
      %v2379 = vadd.f32 0.0, %v2378
      %v2380 = vpop.f32.mrf.mxu0
      %v2381 = vadd.f32 0.0, %v2380
      %2382 = vmatmul.bf16.gmra.mxu0 %v1914
      %v2383 = vpop.f32.mrf.mxu0
      %v2384 = vpop.f32.mrf.mxu0
      %2385 = vmatmul.bf16.gmra.mxu0 %v1917
      %v2386 = vpop.f32.mrf.mxu0
      %v2387 = vadd.f32 0.0, %v2386
      %v2388 = vpop.f32.mrf.mxu0
      %v2389 = vadd.f32 0.0, %v2388
      %2390 = vmatmul.bf16.gmra.mxu0 %v1920
      %v2391 = vpop.f32.mrf.mxu0
      %v2392 = vpop.f32.mrf.mxu0
      %2393 = vmatmul.bf16.gmra.mxu0 %v1923
      %v2394 = vpop.f32.mrf.mxu0
      %v2395 = vadd.f32 0.0, %v2394
      %v2396 = vpop.f32.mrf.mxu0
      %v2397 = vadd.f32 0.0, %v2396
      %2398 = vmatmul.bf16.gmra.mxu0 %v1926
      %v2399 = vpop.f32.mrf.mxu0
      %v2400 = vpop.f32.mrf.mxu0
      %2401 = vmatmul.bf16.gmra.mxu0 %v1929
      %v2402 = vpop.f32.mrf.mxu0
      %v2403 = vadd.f32 0.0, %v2402
      %v2404 = vpop.f32.mrf.mxu0
      %v2405 = vadd.f32 0.0, %v2404
      %2406 = vmatmul.bf16.gmra.mxu0 %v1932
      %v2407 = vpop.f32.mrf.mxu0
      %v2408 = vpop.f32.mrf.mxu0
      %2409 = vmatmul.bf16.gmra.mxu0 %v1935
      %v2410 = vpop.f32.mrf.mxu0
      %v2411 = vadd.f32 0.0, %v2410
      %v2412 = vpop.f32.mrf.mxu0
      %v2413 = vadd.f32 0.0, %v2412
      %2414 = vmatmul.bf16.gmra.mxu0 %v1938
      %v2415 = vpop.f32.mrf.mxu0
      %v2416 = vpop.f32.mrf.mxu0
      %2417 = vmatmul.bf16.gmra.mxu0 %v1941
      %v2418 = vpop.f32.mrf.mxu0
      %v2419 = vadd.f32 0.0, %v2418
      %v2420 = vpop.f32.mrf.mxu0
      %v2421 = vadd.f32 0.0, %v2420
      %2422 = vmatmul.bf16.gmra.mxu0 %v1944
      %v2423 = vpop.f32.mrf.mxu0
      %v2424 = vpop.f32.mrf.mxu0
      %2425 = vmatmul.bf16.gmra.mxu0 %v1947
      %v2426 = vpop.f32.mrf.mxu0
      %v2427 = vadd.f32 0.0, %v2426
      %v2428 = vpop.f32.mrf.mxu0
      %v2429 = vadd.f32 0.0, %v2428
      %2430 = vmatmul.bf16.gmra.mxu0 %v1950
      %v2431 = vpop.f32.mrf.mxu0
      %v2432 = vpop.f32.mrf.mxu0
      %2433 = vmatmul.bf16.gmra.mxu0 %v1953
      %v2434 = vpop.f32.mrf.mxu0
      %v2435 = vadd.f32 0.0, %v2434
      %v2436 = vpop.f32.mrf.mxu0
      %v2437 = vadd.f32 0.0, %v2436
      %2438 = vmatmul.bf16.gmra.mxu0 %v1956
      %v2439 = vpop.f32.mrf.mxu0
      %v2440 = vpop.f32.mrf.mxu0
      %2441 = vmatmul.bf16.gmra.mxu0 %v1959
      %v2442 = vpop.f32.mrf.mxu0
      %v2443 = vadd.f32 0.0, %v2442
      %v2444 = vpop.f32.mrf.mxu0
      %v2445 = vadd.f32 0.0, %v2444
      %2446 = vmatmul.bf16.gmra.mxu0 %v1962
      %v2447 = vpop.f32.mrf.mxu0
      %v2448 = vpop.f32.mrf.mxu0
      %2449 = vmatmul.bf16.gmra.mxu0 %v1965
      %v2450 = vpop.f32.mrf.mxu0
      %v2451 = vadd.f32 0.0, %v2450
      %v2452 = vpop.f32.mrf.mxu0
      %v2453 = vadd.f32 0.0, %v2452
      %2454 = vmatmul.bf16.gmra.mxu0 %v1968
      %v2455 = vpop.f32.mrf.mxu0
      %v2456 = vpop.f32.mrf.mxu0
      %2457 = vmatmul.bf16.gmra.mxu0 %v2147
      %v2458 = vpop.f32.mrf.mxu0
      %v2459 = vadd.f32 0.0, %v2458
      %v2460 = vpop.f32.mrf.mxu0
      %v2461 = vadd.f32 0.0, %v2460
      %2462 = vmatmul.bf16.gmra.mxu0 %v2150
      %v2463 = vpop.f32.mrf.mxu0
      %v2464 = vpop.f32.mrf.mxu0
      %2465 = vmatmul.bf16.gmra.mxu0 %v2329
      %v2466 = vpop.f32.mrf.mxu0
      %v2467 = vadd.f32 0.0, %v2466
      %v2468 = vpop.f32.mrf.mxu0
      %v2469 = vadd.f32 0.0, %v2468
      %2470 = vmatmul.bf16.gmra.mxu0 %v2332
      %v2471 = vpop.f32.mrf.mxu0
      %v2472 = vpop.f32.mrf.mxu0
      %2473 = vdwg.mxu0
      %v2474 = vadd.f32 %v2292, %v2347
      %v2475 = vadd.f32 %v2293, %v2349
      %v2476 = vadd.f32 %v2294, %v2355
      %v2477 = vadd.f32 %v2295, %v2357
      %v2478 = vadd.f32 %v2296, %v2363
      %v2479 = vadd.f32 %v2297, %v2365
      %v2480 = vadd.f32 %v2298, %v2371
      %v2481 = vadd.f32 %v2299, %v2373
      %v2482 = vadd.f32 %v2300, %v2379
      %v2483 = vadd.f32 %v2301, %v2381
      %v2484 = vadd.f32 %v2302, %v2387
      %v2485 = vadd.f32 %v2303, %v2389
      %v2486 = vadd.f32 %v2304, %v2395
      %v2487 = vadd.f32 %v2305, %v2397
      %v2488 = vadd.f32 %v2306, %v2403
      %v2489 = vadd.f32 %v2307, %v2405
      %v2490 = vadd.f32 %v2308, %v2411
      %v2491 = vadd.f32 %v2309, %v2413
      %v2492 = vadd.f32 %v2310, %v2419
      %v2493 = vadd.f32 %v2311, %v2421
      %v2494 = vadd.f32 %v2312, %v2427
      %v2495 = vadd.f32 %v2313, %v2429
      %v2496 = vadd.f32 %v2314, %v2435
      %v2497 = vadd.f32 %v2315, %v2437
      %v2498 = vadd.f32 %v2316, %v2443
      %v2499 = vadd.f32 %v2317, %v2445
      %v2500 = vadd.f32 %v2318, %v2451
      %v2501 = vadd.f32 %v2319, %v2453
      %v2502 = vadd.f32 %v2320, %v2459
      %v2503 = vadd.f32 %v2321, %v2461
      %v2504 = vadd.f32 %v2322, %v2467
      %v2505 = vadd.f32 %v2323, %v2469
      %s2506 = scalar_lea.vmem %s3, 4
      %v2507 = vld [vmem:[%s2506] sm:$0x3]
      %v2508 = vpack.c.b16 %v860, %v860
      %vm2509 = vsmask.f32 7424
      %v2510 = vshrl.u32 %v1842, 16
      %v2512 = vshll.u32 %v1842, 16
      %v2514 = vrot.slane %v2512, 1
      %v2515 = vor.u32 %v2510, %v2514
      %v2516 = vshll.u32 %v1843, 16
      %v2518 = vrot.slane %v2516, 1
      %v2519 = vsel %vm2509, %v2515, %v2518
      %v2520 = vshrl.u32 %v1843, 16
      %v2522 = vor.u32 %v2520, %v2518
      %v2523 = vshll.u32 %v1844, 16
      %v2525 = vrot.slane %v2523, 1
      %v2526 = vsel %vm2509, %v2522, %v2525
      %v2527 = vshrl.u32 %v1844, 16
      %v2529 = vor.u32 %v2527, %v2525
      %v2530 = vshll.u32 %v1845, 16
      %v2532 = vrot.slane %v2530, 1
      %v2533 = vsel %vm2509, %v2529, %v2532
      %v2534 = vshrl.u32 %v1845, 16
      %v2536 = vor.u32 %v2534, %v2532
      %v2537 = vshll.u32 %v1846, 16
      %v2539 = vrot.slane %v2537, 1
      %v2540 = vsel %vm2509, %v2536, %v2539
      %v2541 = vshrl.u32 %v1846, 16
      %v2543 = vor.u32 %v2541, %v2539
      %v2544 = vshll.u32 %v1847, 16
      %v2546 = vrot.slane %v2544, 1
      %v2547 = vsel %vm2509, %v2543, %v2546
      %v2548 = vshrl.u32 %v1847, 16
      %v2550 = vor.u32 %v2548, %v2546
      %v2551 = vshll.u32 %v1848, 16
      %v2553 = vrot.slane %v2551, 1
      %v2554 = vsel %vm2509, %v2550, %v2553
      %v2555 = vshrl.u32 %v1848, 16
      %v2557 = vor.u32 %v2555, %v2553
      %v2558 = vshll.u32 %v1849, 16
      %v2560 = vrot.slane %v2558, 1
      %v2561 = vsel %vm2509, %v2557, %v2560
      %v2562 = vshrl.u32 %v1849, 16
      %v2564 = vor.u32 %v2562, %v2560
      %v2565 = vshll.u32 %v1850, 16
      %v2567 = vrot.slane %v2565, 1
      %v2568 = vsel %vm2509, %v2564, %v2567
      %v2569 = vshrl.u32 %v1850, 16
      %v2571 = vor.u32 %v2569, %v2567
      %v2572 = vshll.u32 %v1851, 16
      %v2574 = vrot.slane %v2572, 1
      %v2575 = vsel %vm2509, %v2571, %v2574
      %v2576 = vshrl.u32 %v1851, 16
      %v2578 = vor.u32 %v2576, %v2574
      %v2579 = vshll.u32 %v1852, 16
      %v2581 = vrot.slane %v2579, 1
      %v2582 = vsel %vm2509, %v2578, %v2581
      %v2583 = vshrl.u32 %v1852, 16
      %v2585 = vor.u32 %v2583, %v2581
      %v2586 = vshll.u32 %v1853, 16
      %v2588 = vrot.slane %v2586, 1
      %v2589 = vsel %vm2509, %v2585, %v2588
      %v2590 = vshrl.u32 %v1853, 16
      %v2592 = vor.u32 %v2590, %v2588
      %v2593 = vshll.u32 %v1854, 16
      %v2595 = vrot.slane %v2593, 1
      %v2596 = vsel %vm2509, %v2592, %v2595
      %v2597 = vshrl.u32 %v1854, 16
      %v2599 = vor.u32 %v2597, %v2595
      %v2600 = vshll.u32 %v1855, 16
      %v2602 = vrot.slane %v2600, 1
      %v2603 = vsel %vm2509, %v2599, %v2602
      %v2604 = vshrl.u32 %v1855, 16
      %v2606 = vor.u32 %v2604, %v2602
      %v2607 = vshll.u32 %v1856, 16
      %v2609 = vrot.slane %v2607, 1
      %v2610 = vsel %vm2509, %v2606, %v2609
      %v2611 = vshrl.u32 %v1856, 16
      %v2613 = vor.u32 %v2611, %v2609
      %v2614 = vshll.u32 %v1857, 16
      %v2616 = vrot.slane %v2614, 1
      %v2617 = vsel %vm2509, %v2613, %v2616
      %v2618 = vshrl.u32 %v1857, 16
      %v2620 = vor.u32 %v2618, %v2616
      %v2621 = vshll.u32 %v1858, 16
      %v2623 = vrot.slane %v2621, 1
      %v2624 = vsel %vm2509, %v2620, %v2623
      %v2625 = vshrl.u32 %v1858, 16
      %v2627 = vor.u32 %v2625, %v2623
      %v2628 = vshll.u32 %v1859, 16
      %v2630 = vrot.slane %v2628, 1
      %v2631 = vsel %vm2509, %v2627, %v2630
      %v2632 = vshrl.u32 %v1859, 16
      %v2634 = vor.u32 %v2632, %v2630
      %v2635 = vshll.u32 %v1860, 16
      %v2637 = vrot.slane %v2635, 1
      %v2638 = vsel %vm2509, %v2634, %v2637
      %v2639 = vshrl.u32 %v1860, 16
      %v2641 = vor.u32 %v2639, %v2637
      %v2642 = vshll.u32 %v1861, 16
      %v2644 = vrot.slane %v2642, 1
      %v2645 = vsel %vm2509, %v2641, %v2644
      %v2646 = vshrl.u32 %v1861, 16
      %v2648 = vor.u32 %v2646, %v2644
      %v2649 = vshll.u32 %v1862, 16
      %v2651 = vrot.slane %v2649, 1
      %v2652 = vsel %vm2509, %v2648, %v2651
      %v2653 = vshrl.u32 %v1862, 16
      %v2655 = vor.u32 %v2653, %v2651
      %v2656 = vshll.u32 %v1863, 16
      %v2658 = vrot.slane %v2656, 1
      %v2659 = vsel %vm2509, %v2655, %v2658
      %v2660 = vshrl.u32 %v1863, 16
      %v2662 = vor.u32 %v2660, %v2658
      %v2663 = vshll.u32 %v1864, 16
      %v2665 = vrot.slane %v2663, 1
      %v2666 = vsel %vm2509, %v2662, %v2665
      %v2667 = vshrl.u32 %v1864, 16
      %v2669 = vor.u32 %v2667, %v2665
      %v2670 = vshll.u32 %v1865, 16
      %v2672 = vrot.slane %v2670, 1
      %v2673 = vsel %vm2509, %v2669, %v2672
      %v2674 = vshrl.u32 %v1865, 16
      %v2676 = vor.u32 %v2674, %v2672
      %v2677 = vshll.u32 %v1866, 16
      %v2679 = vrot.slane %v2677, 1
      %v2680 = vsel %vm2509, %v2676, %v2679
      %v2681 = vshrl.u32 %v1866, 16
      %v2683 = vor.u32 %v2681, %v2679
      %v2684 = vshll.u32 %v1867, 16
      %v2686 = vrot.slane %v2684, 1
      %v2687 = vsel %vm2509, %v2683, %v2686
      %v2688 = vshrl.u32 %v1867, 16
      %v2690 = vor.u32 %v2688, %v2686
      %v2691 = vshll.u32 %v1868, 16
      %v2693 = vrot.slane %v2691, 1
      %v2694 = vsel %vm2509, %v2690, %v2693
      %v2695 = vshrl.u32 %v1868, 16
      %v2697 = vor.u32 %v2695, %v2693
      %v2698 = vshll.u32 %v1869, 16
      %v2700 = vrot.slane %v2698, 1
      %v2701 = vsel %vm2509, %v2697, %v2700
      %v2702 = vshrl.u32 %v1869, 16
      %v2704 = vor.u32 %v2702, %v2700
      %v2705 = vshll.u32 %v1870, 16
      %v2707 = vrot.slane %v2705, 1
      %v2708 = vsel %vm2509, %v2704, %v2707
      %v2709 = vshrl.u32 %v1870, 16
      %v2711 = vor.u32 %v2709, %v2707
      %v2712 = vshll.u32 %v1871, 16
      %v2714 = vrot.slane %v2712, 1
      %v2715 = vsel %vm2509, %v2711, %v2714
      %v2716 = vshrl.u32 %v1871, 16
      %v2718 = vor.u32 %v2716, %v2714
      %v2719 = vshll.u32 %v1872, 16
      %v2721 = vrot.slane %v2719, 1
      %v2722 = vsel %vm2509, %v2718, %v2721
      %v2723 = vshrl.u32 %v1872, 16
      %v2725 = vor.u32 %v2723, %v2721
      %v2726 = vshll.u32 %v1873, 16
      %v2728 = vrot.slane %v2726, 1
      %v2729 = vsel %vm2509, %v2725, %v2728
      %v2730 = vshrl.u32 %v1873, 16
      %v2732 = vor.u32 %v2730, %v2728
      %v2734 = vshll.u32 %v2508, 16
      %v2736 = vrot.slane %v2734, 1
      %v2737 = vsel %vm2509, %v2732, %v2736
      %v2739 = vsel %vm1194, %v2519, 0
      %v2742 = vsel %vm1194, %v2526, 0
      %v2745 = vsel %vm1194, %v2533, 0
      %v2748 = vsel %vm1194, %v2540, 0
      %v2751 = vsel %vm1194, %v2547, 0
      %v2754 = vsel %vm1194, %v2554, 0
      %v2757 = vsel %vm1194, %v2561, 0
      %v2760 = vsel %vm1194, %v2568, 0
      %v2763 = vsel %vm1194, %v2575, 0
      %v2766 = vsel %vm1194, %v2582, 0
      %v2769 = vsel %vm1194, %v2589, 0
      %v2772 = vsel %vm1194, %v2596, 0
      %v2775 = vsel %vm1194, %v2603, 0
      %v2778 = vsel %vm1194, %v2610, 0
      %v2781 = vsel %vm1194, %v2617, 0
      %v2784 = vsel %vm1194, %v2624, 0
      %v2787 = vsel %vm1194, %v2631, 0
      %v2790 = vsel %vm1194, %v2638, 0
      %v2793 = vsel %vm1194, %v2645, 0
      %v2796 = vsel %vm1194, %v2652, 0
      %v2799 = vsel %vm1194, %v2659, 0
      %v2802 = vsel %vm1194, %v2666, 0
      %v2805 = vsel %vm1194, %v2673, 0
      %v2808 = vsel %vm1194, %v2680, 0
      %v2811 = vsel %vm1194, %v2687, 0
      %v2814 = vsel %vm1194, %v2694, 0
      %v2817 = vsel %vm1194, %v2701, 0
      %v2820 = vsel %vm1194, %v2708, 0
      %v2823 = vsel %vm1194, %v2715, 0
      %v2826 = vsel %vm1194, %v2722, 0
      %v2829 = vsel %vm1194, %v2729, 0
      %v2832 = vsel %vm1194, %v2737, 0
      %v2835 = vsel %vm1291, %v2507, 0
      %2837 = vmatpush.bf16.msra.mxu0 0
      %2838 = vmatpush.bf16.msra.mxu0 0
      %2839 = vmatpush.bf16.msra.mxu0 0
      %2840 = vmatpush.bf16.msra.mxu0 0
      %2841 = vmatpush.bf16.msra.mxu0 0
      %2842 = vmatpush.bf16.msra.mxu0 0
      %2843 = vmatpush.bf16.msra.mxu0 0
      %2844 = vmatpush.bf16.msra.mxu0 %v2835
      %2845 = vmatmul.bf16.gmra.mxu0 %v2739
      %v2846 = vpop.f32.mrf.mxu0
      %v2847 = vadd.f32 0.0, %v2846
      %v2848 = vpop.f32.mrf.mxu0
      %v2849 = vadd.f32 0.0, %v2848
      %2850 = vmatmul.bf16.gmra.mxu0 %v2742
      %v2851 = vpop.f32.mrf.mxu0
      %v2852 = vpop.f32.mrf.mxu0
      %2853 = vmatmul.bf16.gmra.mxu0 %v2745
      %v2854 = vpop.f32.mrf.mxu0
      %v2855 = vadd.f32 0.0, %v2854
      %v2856 = vpop.f32.mrf.mxu0
      %v2857 = vadd.f32 0.0, %v2856
      %2858 = vmatmul.bf16.gmra.mxu0 %v2748
      %v2859 = vpop.f32.mrf.mxu0
      %v2860 = vpop.f32.mrf.mxu0
      %2861 = vmatmul.bf16.gmra.mxu0 %v2751
      %v2862 = vpop.f32.mrf.mxu0
      %v2863 = vadd.f32 0.0, %v2862
      %v2864 = vpop.f32.mrf.mxu0
      %v2865 = vadd.f32 0.0, %v2864
      %2866 = vmatmul.bf16.gmra.mxu0 %v2754
      %v2867 = vpop.f32.mrf.mxu0
      %v2868 = vpop.f32.mrf.mxu0
      %2869 = vmatmul.bf16.gmra.mxu0 %v2757
      %v2870 = vpop.f32.mrf.mxu0
      %v2871 = vadd.f32 0.0, %v2870
      %v2872 = vpop.f32.mrf.mxu0
      %v2873 = vadd.f32 0.0, %v2872
      %2874 = vmatmul.bf16.gmra.mxu0 %v2760
      %v2875 = vpop.f32.mrf.mxu0
      %v2876 = vpop.f32.mrf.mxu0
      %2877 = vmatmul.bf16.gmra.mxu0 %v2763
      %v2878 = vpop.f32.mrf.mxu0
      %v2879 = vadd.f32 0.0, %v2878
      %v2880 = vpop.f32.mrf.mxu0
      %v2881 = vadd.f32 0.0, %v2880
      %2882 = vmatmul.bf16.gmra.mxu0 %v2766
      %v2883 = vpop.f32.mrf.mxu0
      %v2884 = vpop.f32.mrf.mxu0
      %2885 = vmatmul.bf16.gmra.mxu0 %v2769
      %v2886 = vpop.f32.mrf.mxu0
      %v2887 = vadd.f32 0.0, %v2886
      %v2888 = vpop.f32.mrf.mxu0
      %v2889 = vadd.f32 0.0, %v2888
      %2890 = vmatmul.bf16.gmra.mxu0 %v2772
      %v2891 = vpop.f32.mrf.mxu0
      %v2892 = vpop.f32.mrf.mxu0
      %2893 = vmatmul.bf16.gmra.mxu0 %v2775
      %v2894 = vpop.f32.mrf.mxu0
      %v2895 = vadd.f32 0.0, %v2894
      %v2896 = vpop.f32.mrf.mxu0
      %v2897 = vadd.f32 0.0, %v2896
      %2898 = vmatmul.bf16.gmra.mxu0 %v2778
      %v2899 = vpop.f32.mrf.mxu0
      %v2900 = vpop.f32.mrf.mxu0
      %2901 = vmatmul.bf16.gmra.mxu0 %v2781
      %v2902 = vpop.f32.mrf.mxu0
      %v2903 = vadd.f32 0.0, %v2902
      %v2904 = vpop.f32.mrf.mxu0
      %v2905 = vadd.f32 0.0, %v2904
      %2906 = vmatmul.bf16.gmra.mxu0 %v2784
      %v2907 = vpop.f32.mrf.mxu0
      %v2908 = vpop.f32.mrf.mxu0
      %2909 = vmatmul.bf16.gmra.mxu0 %v2787
      %v2910 = vpop.f32.mrf.mxu0
      %v2911 = vadd.f32 0.0, %v2910
      %v2912 = vpop.f32.mrf.mxu0
      %v2913 = vadd.f32 0.0, %v2912
      %2914 = vmatmul.bf16.gmra.mxu0 %v2790
      %v2915 = vpop.f32.mrf.mxu0
      %v2916 = vpop.f32.mrf.mxu0
      %2917 = vmatmul.bf16.gmra.mxu0 %v2793
      %v2918 = vpop.f32.mrf.mxu0
      %v2919 = vadd.f32 0.0, %v2918
      %v2920 = vpop.f32.mrf.mxu0
      %v2921 = vadd.f32 0.0, %v2920
      %2922 = vmatmul.bf16.gmra.mxu0 %v2796
      %v2923 = vpop.f32.mrf.mxu0
      %v2924 = vpop.f32.mrf.mxu0
      %2925 = vmatmul.bf16.gmra.mxu0 %v2799
      %v2926 = vpop.f32.mrf.mxu0
      %v2927 = vadd.f32 0.0, %v2926
      %v2928 = vpop.f32.mrf.mxu0
      %v2929 = vadd.f32 0.0, %v2928
      %2930 = vmatmul.bf16.gmra.mxu0 %v2802
      %v2931 = vpop.f32.mrf.mxu0
      %v2932 = vpop.f32.mrf.mxu0
      %2933 = vmatmul.bf16.gmra.mxu0 %v2805
      %v2934 = vpop.f32.mrf.mxu0
      %v2935 = vadd.f32 0.0, %v2934
      %v2936 = vpop.f32.mrf.mxu0
      %v2937 = vadd.f32 0.0, %v2936
      %2938 = vmatmul.bf16.gmra.mxu0 %v2808
      %v2939 = vpop.f32.mrf.mxu0
      %v2940 = vpop.f32.mrf.mxu0
      %2941 = vmatmul.bf16.gmra.mxu0 %v2811
      %v2942 = vpop.f32.mrf.mxu0
      %v2943 = vadd.f32 0.0, %v2942
      %v2944 = vpop.f32.mrf.mxu0
      %v2945 = vadd.f32 0.0, %v2944
      %2946 = vmatmul.bf16.gmra.mxu0 %v2814
      %v2947 = vpop.f32.mrf.mxu0
      %v2948 = vpop.f32.mrf.mxu0
      %2949 = vmatmul.bf16.gmra.mxu0 %v2817
      %v2950 = vpop.f32.mrf.mxu0
      %v2951 = vadd.f32 0.0, %v2950
      %v2952 = vpop.f32.mrf.mxu0
      %v2953 = vadd.f32 0.0, %v2952
      %2954 = vmatmul.bf16.gmra.mxu0 %v2820
      %v2955 = vpop.f32.mrf.mxu0
      %v2956 = vpop.f32.mrf.mxu0
      %2957 = vmatmul.bf16.gmra.mxu0 %v2823
      %v2958 = vpop.f32.mrf.mxu0
      %v2959 = vadd.f32 0.0, %v2958
      %v2960 = vpop.f32.mrf.mxu0
      %v2961 = vadd.f32 0.0, %v2960
      %2962 = vmatmul.bf16.gmra.mxu0 %v2826
      %v2963 = vpop.f32.mrf.mxu0
      %v2964 = vpop.f32.mrf.mxu0
      %2965 = vmatmul.bf16.gmra.mxu0 %v2829
      %v2966 = vpop.f32.mrf.mxu0
      %v2967 = vadd.f32 0.0, %v2966
      %v2968 = vpop.f32.mrf.mxu0
      %v2969 = vadd.f32 0.0, %v2968
      %2970 = vmatmul.bf16.gmra.mxu0 %v2832
      %v2971 = vpop.f32.mrf.mxu0
      %v2972 = vpop.f32.mrf.mxu0
      %2973 = vdwg.mxu0
      %v2974 = vadd.f32 %v2474, %v2847
      %v2975 = vadd.f32 %v2475, %v2849
      %v2976 = vadd.f32 %v2476, %v2855
      %v2977 = vadd.f32 %v2477, %v2857
      %v2978 = vadd.f32 %v2478, %v2863
      %v2979 = vadd.f32 %v2479, %v2865
      %v2980 = vadd.f32 %v2480, %v2871
      %v2981 = vadd.f32 %v2481, %v2873
      %v2982 = vadd.f32 %v2482, %v2879
      %v2983 = vadd.f32 %v2483, %v2881
      %v2984 = vadd.f32 %v2484, %v2887
      %v2985 = vadd.f32 %v2485, %v2889
      %v2986 = vadd.f32 %v2486, %v2895
      %v2987 = vadd.f32 %v2487, %v2897
      %v2988 = vadd.f32 %v2488, %v2903
      %v2989 = vadd.f32 %v2489, %v2905
      %v2990 = vadd.f32 %v2490, %v2911
      %v2991 = vadd.f32 %v2491, %v2913
      %v2992 = vadd.f32 %v2492, %v2919
      %v2993 = vadd.f32 %v2493, %v2921
      %v2994 = vadd.f32 %v2494, %v2927
      %v2995 = vadd.f32 %v2495, %v2929
      %v2996 = vadd.f32 %v2496, %v2935
      %v2997 = vadd.f32 %v2497, %v2937
      %v2998 = vadd.f32 %v2498, %v2943
      %v2999 = vadd.f32 %v2499, %v2945
      %v3000 = vadd.f32 %v2500, %v2951
      %v3001 = vadd.f32 %v2501, %v2953
      %v3002 = vadd.f32 %v2502, %v2959
      %v3003 = vadd.f32 %v2503, %v2961
      %v3004 = vadd.f32 %v2504, %v2967
      %v3005 = vadd.f32 %v2505, %v2969
      %s3006 = scalar_lea.vmem %s3, 10
      %v3007 = vld [vmem:[%s3006] sm:$0x3]
      %v3008 = vpack.c.b16 %v1625, %v1625
      %v3009 = vshll.u32 %v2144, 16
      %v3011 = vrot.slane %v3009, 1
      %v3012 = vsel %vm2509, %v2732, %v3011
      %v3013 = vshrl.u32 %v2144, 16
      %v3015 = vor.u32 %v3013, %v3011
      %v3016 = vshll.u32 %v2145, 16
      %v3018 = vrot.slane %v3016, 1
      %v3019 = vsel %vm2509, %v3015, %v3018
      %v3020 = vshrl.u32 %v2145, 16
      %v3022 = vor.u32 %v3020, %v3018
      %v3024 = vshll.u32 %v3008, 16
      %v3026 = vrot.slane %v3024, 1
      %v3027 = vsel %vm2509, %v3022, %v3026
      %v3029 = vsel %vm1194, %v3012, 0
      %v3032 = vsel %vm1194, %v3019, 0
      %v3035 = vsel %vm1194, %v3027, 0
      %v3038 = vsel %vm1291, %v3007, 0
      %3040 = vmatpush.bf16.msra.mxu0 0
      %3041 = vmatpush.bf16.msra.mxu0 0
      %3042 = vmatpush.bf16.msra.mxu0 0
      %3043 = vmatpush.bf16.msra.mxu0 0
      %3044 = vmatpush.bf16.msra.mxu0 0
      %3045 = vmatpush.bf16.msra.mxu0 0
      %3046 = vmatpush.bf16.msra.mxu0 0
      %3047 = vmatpush.bf16.msra.mxu0 %v3038
      %3048 = vmatmul.bf16.gmra.mxu0 %v2745
      %v3049 = vpop.f32.mrf.mxu0
      %v3050 = vadd.f32 0.0, %v3049
      %v3051 = vpop.f32.mrf.mxu0
      %v3052 = vadd.f32 0.0, %v3051
      %3053 = vmatmul.bf16.gmra.mxu0 %v2748
      %v3054 = vpop.f32.mrf.mxu0
      %v3055 = vpop.f32.mrf.mxu0
      %3056 = vmatmul.bf16.gmra.mxu0 %v2751
      %v3057 = vpop.f32.mrf.mxu0
      %v3058 = vadd.f32 0.0, %v3057
      %v3059 = vpop.f32.mrf.mxu0
      %v3060 = vadd.f32 0.0, %v3059
      %3061 = vmatmul.bf16.gmra.mxu0 %v2754
      %v3062 = vpop.f32.mrf.mxu0
      %v3063 = vpop.f32.mrf.mxu0
      %3064 = vmatmul.bf16.gmra.mxu0 %v2757
      %v3065 = vpop.f32.mrf.mxu0
      %v3066 = vadd.f32 0.0, %v3065
      %v3067 = vpop.f32.mrf.mxu0
      %v3068 = vadd.f32 0.0, %v3067
      %3069 = vmatmul.bf16.gmra.mxu0 %v2760
      %v3070 = vpop.f32.mrf.mxu0
      %v3071 = vpop.f32.mrf.mxu0
      %3072 = vmatmul.bf16.gmra.mxu0 %v2763
      %v3073 = vpop.f32.mrf.mxu0
      %v3074 = vadd.f32 0.0, %v3073
      %v3075 = vpop.f32.mrf.mxu0
      %v3076 = vadd.f32 0.0, %v3075
      %3077 = vmatmul.bf16.gmra.mxu0 %v2766
      %v3078 = vpop.f32.mrf.mxu0
      %v3079 = vpop.f32.mrf.mxu0
      %3080 = vmatmul.bf16.gmra.mxu0 %v2769
      %v3081 = vpop.f32.mrf.mxu0
      %v3082 = vadd.f32 0.0, %v3081
      %v3083 = vpop.f32.mrf.mxu0
      %v3084 = vadd.f32 0.0, %v3083
      %3085 = vmatmul.bf16.gmra.mxu0 %v2772
      %v3086 = vpop.f32.mrf.mxu0
      %v3087 = vpop.f32.mrf.mxu0
      %3088 = vmatmul.bf16.gmra.mxu0 %v2775
      %v3089 = vpop.f32.mrf.mxu0
      %v3090 = vadd.f32 0.0, %v3089
      %v3091 = vpop.f32.mrf.mxu0
      %v3092 = vadd.f32 0.0, %v3091
      %3093 = vmatmul.bf16.gmra.mxu0 %v2778
      %v3094 = vpop.f32.mrf.mxu0
      %v3095 = vpop.f32.mrf.mxu0
      %3096 = vmatmul.bf16.gmra.mxu0 %v2781
      %v3097 = vpop.f32.mrf.mxu0
      %v3098 = vadd.f32 0.0, %v3097
      %v3099 = vpop.f32.mrf.mxu0
      %v3100 = vadd.f32 0.0, %v3099
      %3101 = vmatmul.bf16.gmra.mxu0 %v2784
      %v3102 = vpop.f32.mrf.mxu0
      %v3103 = vpop.f32.mrf.mxu0
      %3104 = vmatmul.bf16.gmra.mxu0 %v2787
      %v3105 = vpop.f32.mrf.mxu0
      %v3106 = vadd.f32 0.0, %v3105
      %v3107 = vpop.f32.mrf.mxu0
      %v3108 = vadd.f32 0.0, %v3107
      %3109 = vmatmul.bf16.gmra.mxu0 %v2790
      %v3110 = vpop.f32.mrf.mxu0
      %v3111 = vpop.f32.mrf.mxu0
      %3112 = vmatmul.bf16.gmra.mxu0 %v2793
      %v3113 = vpop.f32.mrf.mxu0
      %v3114 = vadd.f32 0.0, %v3113
      %v3115 = vpop.f32.mrf.mxu0
      %v3116 = vadd.f32 0.0, %v3115
      %3117 = vmatmul.bf16.gmra.mxu0 %v2796
      %v3118 = vpop.f32.mrf.mxu0
      %v3119 = vpop.f32.mrf.mxu0
      %3120 = vmatmul.bf16.gmra.mxu0 %v2799
      %v3121 = vpop.f32.mrf.mxu0
      %v3122 = vadd.f32 0.0, %v3121
      %v3123 = vpop.f32.mrf.mxu0
      %v3124 = vadd.f32 0.0, %v3123
      %3125 = vmatmul.bf16.gmra.mxu0 %v2802
      %v3126 = vpop.f32.mrf.mxu0
      %v3127 = vpop.f32.mrf.mxu0
      %3128 = vmatmul.bf16.gmra.mxu0 %v2805
      %v3129 = vpop.f32.mrf.mxu0
      %v3130 = vadd.f32 0.0, %v3129
      %v3131 = vpop.f32.mrf.mxu0
      %v3132 = vadd.f32 0.0, %v3131
      %3133 = vmatmul.bf16.gmra.mxu0 %v2808
      %v3134 = vpop.f32.mrf.mxu0
      %v3135 = vpop.f32.mrf.mxu0
      %3136 = vmatmul.bf16.gmra.mxu0 %v2811
      %v3137 = vpop.f32.mrf.mxu0
      %v3138 = vadd.f32 0.0, %v3137
      %v3139 = vpop.f32.mrf.mxu0
      %v3140 = vadd.f32 0.0, %v3139
      %3141 = vmatmul.bf16.gmra.mxu0 %v2814
      %v3142 = vpop.f32.mrf.mxu0
      %v3143 = vpop.f32.mrf.mxu0
      %3144 = vmatmul.bf16.gmra.mxu0 %v2817
      %v3145 = vpop.f32.mrf.mxu0
      %v3146 = vadd.f32 0.0, %v3145
      %v3147 = vpop.f32.mrf.mxu0
      %v3148 = vadd.f32 0.0, %v3147
      %3149 = vmatmul.bf16.gmra.mxu0 %v2820
      %v3150 = vpop.f32.mrf.mxu0
      %v3151 = vpop.f32.mrf.mxu0
      %3152 = vmatmul.bf16.gmra.mxu0 %v2823
      %v3153 = vpop.f32.mrf.mxu0
      %v3154 = vadd.f32 0.0, %v3153
      %v3155 = vpop.f32.mrf.mxu0
      %v3156 = vadd.f32 0.0, %v3155
      %3157 = vmatmul.bf16.gmra.mxu0 %v2826
      %v3158 = vpop.f32.mrf.mxu0
      %v3159 = vpop.f32.mrf.mxu0
      %3160 = vmatmul.bf16.gmra.mxu0 %v2829
      %v3161 = vpop.f32.mrf.mxu0
      %v3162 = vadd.f32 0.0, %v3161
      %v3163 = vpop.f32.mrf.mxu0
      %v3164 = vadd.f32 0.0, %v3163
      %3165 = vmatmul.bf16.gmra.mxu0 %v3029
      %v3166 = vpop.f32.mrf.mxu0
      %v3167 = vpop.f32.mrf.mxu0
      %3168 = vmatmul.bf16.gmra.mxu0 %v3032
      %v3169 = vpop.f32.mrf.mxu0
      %v3170 = vadd.f32 0.0, %v3169
      %v3171 = vpop.f32.mrf.mxu0
      %v3172 = vadd.f32 0.0, %v3171
      %3173 = vmatmul.bf16.gmra.mxu0 %v3035
      %v3174 = vpop.f32.mrf.mxu0
      %v3175 = vpop.f32.mrf.mxu0
      %3176 = vdwg.mxu0
      %v3177 = vadd.f32 %v2974, %v3050
      %v3178 = vadd.f32 %v2975, %v3052
      %v3179 = vadd.f32 %v2976, %v3058
      %v3180 = vadd.f32 %v2977, %v3060
      %v3181 = vadd.f32 %v2978, %v3066
      %v3182 = vadd.f32 %v2979, %v3068
      %v3183 = vadd.f32 %v2980, %v3074
      %v3184 = vadd.f32 %v2981, %v3076
      %v3185 = vadd.f32 %v2982, %v3082
      %v3186 = vadd.f32 %v2983, %v3084
      %v3187 = vadd.f32 %v2984, %v3090
      %v3188 = vadd.f32 %v2985, %v3092
      %v3189 = vadd.f32 %v2986, %v3098
      %v3190 = vadd.f32 %v2987, %v3100
      %v3191 = vadd.f32 %v2988, %v3106
      %v3192 = vadd.f32 %v2989, %v3108
      %v3193 = vadd.f32 %v2990, %v3114
      %v3194 = vadd.f32 %v2991, %v3116
      %v3195 = vadd.f32 %v2992, %v3122
      %v3196 = vadd.f32 %v2993, %v3124
      %v3197 = vadd.f32 %v2994, %v3130
      %v3198 = vadd.f32 %v2995, %v3132
      %v3199 = vadd.f32 %v2996, %v3138
      %v3200 = vadd.f32 %v2997, %v3140
      %v3201 = vadd.f32 %v2998, %v3146
      %v3202 = vadd.f32 %v2999, %v3148
      %v3203 = vadd.f32 %v3000, %v3154
      %v3204 = vadd.f32 %v3001, %v3156
      %v3205 = vadd.f32 %v3002, %v3162
      %v3206 = vadd.f32 %v3003, %v3164
      %v3207 = vadd.f32 %v3004, %v3170
      %v3208 = vadd.f32 %v3005, %v3172
      %s3209 = scalar_lea.vmem %s3, 16
      %v3210 = vld [vmem:[%s3209] sm:$0x3]
      %v3212 = vunpack.c.l.b16 %v729
      %v3213 = vpack.c.b16 %v3212, %v3212
      %v3214 = vshll.u32 %v2326, 16
      %v3216 = vrot.slane %v3214, 1
      %v3217 = vsel %vm2509, %v3022, %v3216
      %v3218 = vshrl.u32 %v2326, 16
      %v3220 = vor.u32 %v3218, %v3216
      %v3221 = vshll.u32 %v2327, 16
      %v3223 = vrot.slane %v3221, 1
      %v3224 = vsel %vm2509, %v3220, %v3223
      %v3225 = vshrl.u32 %v2327, 16
      %v3227 = vor.u32 %v3225, %v3223
      %v3229 = vshll.u32 %v3213, 16
      %v3231 = vrot.slane %v3229, 1
      %v3232 = vsel %vm2509, %v3227, %v3231
      %v3234 = vsel %vm1194, %v3217, 0
      %v3237 = vsel %vm1194, %v3224, 0
      %v3240 = vsel %vm1194, %v3232, 0
      %v3243 = vsel %vm1291, %v3210, 0
      %3245 = vmatpush.bf16.msra.mxu0 0
      %3246 = vmatpush.bf16.msra.mxu0 0
      %3247 = vmatpush.bf16.msra.mxu0 0
      %3248 = vmatpush.bf16.msra.mxu0 0
      %3249 = vmatpush.bf16.msra.mxu0 0
      %3250 = vmatpush.bf16.msra.mxu0 0
      %3251 = vmatpush.bf16.msra.mxu0 0
      %3252 = vmatpush.bf16.msra.mxu0 %v3243
      %3253 = vmatmul.bf16.gmra.mxu0 %v2751
      %v3254 = vpop.f32.mrf.mxu0
      %v3255 = vadd.f32 0.0, %v3254
      %v3256 = vpop.f32.mrf.mxu0
      %v3257 = vadd.f32 0.0, %v3256
      %3258 = vmatmul.bf16.gmra.mxu0 %v2754
      %v3259 = vpop.f32.mrf.mxu0
      %v3260 = vpop.f32.mrf.mxu0
      %3261 = vmatmul.bf16.gmra.mxu0 %v2757
      %v3262 = vpop.f32.mrf.mxu0
      %v3263 = vadd.f32 0.0, %v3262
      %v3264 = vpop.f32.mrf.mxu0
      %v3265 = vadd.f32 0.0, %v3264
      %3266 = vmatmul.bf16.gmra.mxu0 %v2760
      %v3267 = vpop.f32.mrf.mxu0
      %v3268 = vpop.f32.mrf.mxu0
      %3269 = vmatmul.bf16.gmra.mxu0 %v2763
      %v3270 = vpop.f32.mrf.mxu0
      %v3271 = vadd.f32 0.0, %v3270
      %v3272 = vpop.f32.mrf.mxu0
      %v3273 = vadd.f32 0.0, %v3272
      %3274 = vmatmul.bf16.gmra.mxu0 %v2766
      %v3275 = vpop.f32.mrf.mxu0
      %v3276 = vpop.f32.mrf.mxu0
      %3277 = vmatmul.bf16.gmra.mxu0 %v2769
      %v3278 = vpop.f32.mrf.mxu0
      %v3279 = vadd.f32 0.0, %v3278
      %v3280 = vpop.f32.mrf.mxu0
      %v3281 = vadd.f32 0.0, %v3280
      %3282 = vmatmul.bf16.gmra.mxu0 %v2772
      %v3283 = vpop.f32.mrf.mxu0
      %v3284 = vpop.f32.mrf.mxu0
      %3285 = vmatmul.bf16.gmra.mxu0 %v2775
      %v3286 = vpop.f32.mrf.mxu0
      %v3287 = vadd.f32 0.0, %v3286
      %v3288 = vpop.f32.mrf.mxu0
      %v3289 = vadd.f32 0.0, %v3288
      %3290 = vmatmul.bf16.gmra.mxu0 %v2778
      %v3291 = vpop.f32.mrf.mxu0
      %v3292 = vpop.f32.mrf.mxu0
      %3293 = vmatmul.bf16.gmra.mxu0 %v2781
      %v3294 = vpop.f32.mrf.mxu0
      %v3295 = vadd.f32 0.0, %v3294
      %v3296 = vpop.f32.mrf.mxu0
      %v3297 = vadd.f32 0.0, %v3296
      %3298 = vmatmul.bf16.gmra.mxu0 %v2784
      %v3299 = vpop.f32.mrf.mxu0
      %v3300 = vpop.f32.mrf.mxu0
      %3301 = vmatmul.bf16.gmra.mxu0 %v2787
      %v3302 = vpop.f32.mrf.mxu0
      %v3303 = vadd.f32 0.0, %v3302
      %v3304 = vpop.f32.mrf.mxu0
      %v3305 = vadd.f32 0.0, %v3304
      %3306 = vmatmul.bf16.gmra.mxu0 %v2790
      %v3307 = vpop.f32.mrf.mxu0
      %v3308 = vpop.f32.mrf.mxu0
      %3309 = vmatmul.bf16.gmra.mxu0 %v2793
      %v3310 = vpop.f32.mrf.mxu0
      %v3311 = vadd.f32 0.0, %v3310
      %v3312 = vpop.f32.mrf.mxu0
      %v3313 = vadd.f32 0.0, %v3312
      %3314 = vmatmul.bf16.gmra.mxu0 %v2796
      %v3315 = vpop.f32.mrf.mxu0
      %v3316 = vpop.f32.mrf.mxu0
      %3317 = vmatmul.bf16.gmra.mxu0 %v2799
      %v3318 = vpop.f32.mrf.mxu0
      %v3319 = vadd.f32 0.0, %v3318
      %v3320 = vpop.f32.mrf.mxu0
      %v3321 = vadd.f32 0.0, %v3320
      %3322 = vmatmul.bf16.gmra.mxu0 %v2802
      %v3323 = vpop.f32.mrf.mxu0
      %v3324 = vpop.f32.mrf.mxu0
      %3325 = vmatmul.bf16.gmra.mxu0 %v2805
      %v3326 = vpop.f32.mrf.mxu0
      %v3327 = vadd.f32 0.0, %v3326
      %v3328 = vpop.f32.mrf.mxu0
      %v3329 = vadd.f32 0.0, %v3328
      %3330 = vmatmul.bf16.gmra.mxu0 %v2808
      %v3331 = vpop.f32.mrf.mxu0
      %v3332 = vpop.f32.mrf.mxu0
      %3333 = vmatmul.bf16.gmra.mxu0 %v2811
      %v3334 = vpop.f32.mrf.mxu0
      %v3335 = vadd.f32 0.0, %v3334
      %v3336 = vpop.f32.mrf.mxu0
      %v3337 = vadd.f32 0.0, %v3336
      %3338 = vmatmul.bf16.gmra.mxu0 %v2814
      %v3339 = vpop.f32.mrf.mxu0
      %v3340 = vpop.f32.mrf.mxu0
      %3341 = vmatmul.bf16.gmra.mxu0 %v2817
      %v3342 = vpop.f32.mrf.mxu0
      %v3343 = vadd.f32 0.0, %v3342
      %v3344 = vpop.f32.mrf.mxu0
      %v3345 = vadd.f32 0.0, %v3344
      %3346 = vmatmul.bf16.gmra.mxu0 %v2820
      %v3347 = vpop.f32.mrf.mxu0
      %v3348 = vpop.f32.mrf.mxu0
      %3349 = vmatmul.bf16.gmra.mxu0 %v2823
      %v3350 = vpop.f32.mrf.mxu0
      %v3351 = vadd.f32 0.0, %v3350
      %v3352 = vpop.f32.mrf.mxu0
      %v3353 = vadd.f32 0.0, %v3352
      %3354 = vmatmul.bf16.gmra.mxu0 %v2826
      %v3355 = vpop.f32.mrf.mxu0
      %v3356 = vpop.f32.mrf.mxu0
      %3357 = vmatmul.bf16.gmra.mxu0 %v2829
      %v3358 = vpop.f32.mrf.mxu0
      %v3359 = vadd.f32 0.0, %v3358
      %v3360 = vpop.f32.mrf.mxu0
      %v3361 = vadd.f32 0.0, %v3360
      %3362 = vmatmul.bf16.gmra.mxu0 %v3029
      %v3363 = vpop.f32.mrf.mxu0
      %v3364 = vpop.f32.mrf.mxu0
      %3365 = vmatmul.bf16.gmra.mxu0 %v3032
      %v3366 = vpop.f32.mrf.mxu0
      %v3367 = vadd.f32 0.0, %v3366
      %v3368 = vpop.f32.mrf.mxu0
      %v3369 = vadd.f32 0.0, %v3368
      %3370 = vmatmul.bf16.gmra.mxu0 %v3234
      %v3371 = vpop.f32.mrf.mxu0
      %v3372 = vpop.f32.mrf.mxu0
      %3373 = vmatmul.bf16.gmra.mxu0 %v3237
      %v3374 = vpop.f32.mrf.mxu0
      %v3375 = vadd.f32 0.0, %v3374
      %v3376 = vpop.f32.mrf.mxu0
      %v3377 = vadd.f32 0.0, %v3376
      %3378 = vmatmul.bf16.gmra.mxu0 %v3240
      %v3379 = vpop.f32.mrf.mxu0
      %v3380 = vpop.f32.mrf.mxu0
      %3381 = vdwg.mxu0
      %v3382 = vadd.f32 %v3177, %v3255
      %v3383 = vadd.f32 %v3178, %v3257
      %v3384 = vadd.f32 %v3179, %v3263
      %v3385 = vadd.f32 %v3180, %v3265
      %v3386 = vadd.f32 %v3181, %v3271
      %v3387 = vadd.f32 %v3182, %v3273
      %v3388 = vadd.f32 %v3183, %v3279
      %v3389 = vadd.f32 %v3184, %v3281
      %v3390 = vadd.f32 %v3185, %v3287
      %v3391 = vadd.f32 %v3186, %v3289
      %v3392 = vadd.f32 %v3187, %v3295
      %v3393 = vadd.f32 %v3188, %v3297
      %v3394 = vadd.f32 %v3189, %v3303
      %v3395 = vadd.f32 %v3190, %v3305
      %v3396 = vadd.f32 %v3191, %v3311
      %v3397 = vadd.f32 %v3192, %v3313
      %v3398 = vadd.f32 %v3193, %v3319
      %v3399 = vadd.f32 %v3194, %v3321
      %v3400 = vadd.f32 %v3195, %v3327
      %v3401 = vadd.f32 %v3196, %v3329
      %v3402 = vadd.f32 %v3197, %v3335
      %v3403 = vadd.f32 %v3198, %v3337
      %v3404 = vadd.f32 %v3199, %v3343
      %v3405 = vadd.f32 %v3200, %v3345
      %v3406 = vadd.f32 %v3201, %v3351
      %v3407 = vadd.f32 %v3202, %v3353
      %v3408 = vadd.f32 %v3203, %v3359
      %v3409 = vadd.f32 %v3204, %v3361
      %v3410 = vadd.f32 %v3205, %v3367
      %v3411 = vadd.f32 %v3206, %v3369
      %v3412 = vadd.f32 %v3207, %v3375
      %v3413 = vadd.f32 %v3208, %v3377
      %v3415 = vperm.slane %v730, 0
      %v3417 = vadd.f32 %v3382, %v3415
      %v3418 = vadd.f32 %v3383, %v3415
      %v3419 = vadd.f32 %v3384, %v3415
      %v3420 = vadd.f32 %v3385, %v3415
      %v3421 = vadd.f32 %v3386, %v3415
      %v3422 = vadd.f32 %v3387, %v3415
      %v3423 = vadd.f32 %v3388, %v3415
      %v3424 = vadd.f32 %v3389, %v3415
      %v3425 = vadd.f32 %v3390, %v3415
      %v3426 = vadd.f32 %v3391, %v3415
      %v3427 = vadd.f32 %v3392, %v3415
      %v3428 = vadd.f32 %v3393, %v3415
      %v3429 = vadd.f32 %v3394, %v3415
      %v3430 = vadd.f32 %v3395, %v3415
      %v3431 = vadd.f32 %v3396, %v3415
      %v3432 = vadd.f32 %v3397, %v3415
      %v3433 = vadd.f32 %v3398, %v3415
      %v3434 = vadd.f32 %v3399, %v3415
      %v3435 = vadd.f32 %v3400, %v3415
      %v3436 = vadd.f32 %v3401, %v3415
      %v3437 = vadd.f32 %v3402, %v3415
      %v3438 = vadd.f32 %v3403, %v3415
      %v3439 = vadd.f32 %v3404, %v3415
      %v3440 = vadd.f32 %v3405, %v3415
      %v3441 = vadd.f32 %v3406, %v3415
      %v3442 = vadd.f32 %v3407, %v3415
      %v3443 = vadd.f32 %v3408, %v3415
      %v3444 = vadd.f32 %v3409, %v3415
      %v3445 = vadd.f32 %v3410, %v3415
      %v3446 = vadd.f32 %v3411, %v3415
      %v3447 = vadd.f32 %v3412, %v3415
      %v3448 = vadd.f32 %v3413, %v3415
      %v3449 = vmax.f32 %v3417, 0.0
      %v3450 = vmax.f32 %v3418, 0.0
      %v3451 = vmax.f32 %v3419, 0.0
      %v3452 = vmax.f32 %v3420, 0.0
      %v3453 = vmax.f32 %v3421, 0.0
      %v3454 = vmax.f32 %v3422, 0.0
      %v3455 = vmax.f32 %v3423, 0.0
      %v3456 = vmax.f32 %v3424, 0.0
      %v3457 = vmax.f32 %v3425, 0.0
      %v3458 = vmax.f32 %v3426, 0.0
      %v3459 = vmax.f32 %v3427, 0.0
      %v3460 = vmax.f32 %v3428, 0.0
      %v3461 = vmax.f32 %v3429, 0.0
      %v3462 = vmax.f32 %v3430, 0.0
      %v3463 = vmax.f32 %v3431, 0.0
      %v3464 = vmax.f32 %v3432, 0.0
      %v3465 = vmax.f32 %v3433, 0.0
      %v3466 = vmax.f32 %v3434, 0.0
      %v3467 = vmax.f32 %v3435, 0.0
      %v3468 = vmax.f32 %v3436, 0.0
      %v3469 = vmax.f32 %v3437, 0.0
      %v3470 = vmax.f32 %v3438, 0.0
      %v3471 = vmax.f32 %v3439, 0.0
      %v3472 = vmax.f32 %v3440, 0.0
      %v3473 = vmax.f32 %v3441, 0.0
      %v3474 = vmax.f32 %v3442, 0.0
      %v3475 = vmax.f32 %v3443, 0.0
      %v3476 = vmax.f32 %v3444, 0.0
      %v3477 = vmax.f32 %v3445, 0.0
      %v3478 = vmax.f32 %v3446, 0.0
      %v3479 = vmax.f32 %v3447, 0.0
      %v3480 = vmax.f32 %v3448, 0.0
      %3481 = vst.msk [vmem:[%s391] sm:$0xff] %vm1194, %v3449
      %3482 = vst.msk [vmem:[%s391 + $0x8] sm:$0xff] %vm1194, %v3450
      %3483 = vst.msk [vmem:[%s391 + $0x10] sm:$0xff] %vm1194, %v3451
      %3484 = vst.msk [vmem:[%s391 + $0x18] sm:$0xff] %vm1194, %v3452
      %3485 = vst.msk [vmem:[%s391 + $0x20] sm:$0xff] %vm1194, %v3453
      %3486 = vst.msk [vmem:[%s391 + $0x28] sm:$0xff] %vm1194, %v3454
      %3487 = vst.msk [vmem:[%s391 + $0x30] sm:$0xff] %vm1194, %v3455
      %3488 = vst.msk [vmem:[%s391 + $0x38] sm:$0xff] %vm1194, %v3456
      %3489 = vst.msk [vmem:[%s391 + $0x40] sm:$0xff] %vm1194, %v3457
      %3490 = vst.msk [vmem:[%s391 + $0x48] sm:$0xff] %vm1194, %v3458
      %3491 = vst.msk [vmem:[%s391 + $0x50] sm:$0xff] %vm1194, %v3459
      %3492 = vst.msk [vmem:[%s391 + $0x58] sm:$0xff] %vm1194, %v3460
      %3493 = vst.msk [vmem:[%s391 + $0x60] sm:$0xff] %vm1194, %v3461
      %3494 = vst.msk [vmem:[%s391 + $0x68] sm:$0xff] %vm1194, %v3462
      %3495 = vst.msk [vmem:[%s391 + $0x70] sm:$0xff] %vm1194, %v3463
      %3496 = vst.msk [vmem:[%s391 + $0x78] sm:$0xff] %vm1194, %v3464
      %3497 = vst.msk [vmem:[%s391 + $0x80] sm:$0xff] %vm1194, %v3465
      %3498 = vst.msk [vmem:[%s391 + $0x88] sm:$0xff] %vm1194, %v3466
      %3499 = vst.msk [vmem:[%s391 + $0x90] sm:$0xff] %vm1194, %v3467
      %3500 = vst.msk [vmem:[%s391 + $0x98] sm:$0xff] %vm1194, %v3468
      %3501 = vst.msk [vmem:[%s391 + $0xa0] sm:$0xff] %vm1194, %v3469
      %3502 = vst.msk [vmem:[%s391 + $0xa8] sm:$0xff] %vm1194, %v3470
      %3503 = vst.msk [vmem:[%s391 + $0xb0] sm:$0xff] %vm1194, %v3471
      %3504 = vst.msk [vmem:[%s391 + $0xb8] sm:$0xff] %vm1194, %v3472
      %3505 = vst.msk [vmem:[%s391 + $0xc0] sm:$0xff] %vm1194, %v3473
      %3506 = vst.msk [vmem:[%s391 + $0xc8] sm:$0xff] %vm1194, %v3474
      %3507 = vst.msk [vmem:[%s391 + $0xd0] sm:$0xff] %vm1194, %v3475
      %3508 = vst.msk [vmem:[%s391 + $0xd8] sm:$0xff] %vm1194, %v3476
      %3509 = vst.msk [vmem:[%s391 + $0xe0] sm:$0xff] %vm1194, %v3477
      %3510 = vst.msk [vmem:[%s391 + $0xe8] sm:$0xff] %vm1194, %v3478
      %3511 = vst.msk [vmem:[%s391 + $0xf0] sm:$0xff] %vm1194, %v3479
      %3512 = vst.msk [vmem:[%s391 + $0xf8] sm:$0xff] %vm1194, %v3480
      %s3513 = smul.u32 16, %s21
      %p3514 = scmp.lt.s32.totalorder %s20, 1
      %s3515 = scalar_select %p3514, %s20, 1
      %p3516 = scmp.lt.s32.totalorder %s3513, 15
      %s3517 = scalar_select %p3516, %s3513, 15
      %s3518 = smul.addr %s3517, 2
      %s3519 = smul.addr %s3515, 32
      %s3520 = sadd.s32 %s3518, %s3519
      %s3521 = smul.addr %s3520, 8
      %s3522 = scalar_lea.vmem %s5, %s3521
      // Predicated region
      $region41: #{_forward_nchw.2} parent=39 // pred_check
        %p3523 = pneg %p190
      $region42: #{_forward_nchw.2} parent=39 // pred_check_branch
        %3525 = sbr.rel (%p3523) target = $region44
      $region43: #{_forward_nchw.2} parent=39 // pred_region
        %s3526 = smul.u32 16, %s21
      $region44: #{_forward_nchw.2} parent=39 // pred_fallthru
        _
    $region40: #{_forward_nchw.2} parent=5 // pred_fallthru
      _
    %p3527 = scmp.le.s32.totalorder 2, %s11
    // Predicated region
    $region45: #{_forward_nchw.2} parent=5 // pred_check
      %p3528 = pneg %p3527
    $region46: #{_forward_nchw.2} parent=5 // pred_check_branch
      %3530 = sbr.rel (%p3528) target = $region48
    $region47: #{_forward_nchw.2} parent=5 // pred_region
      %s3531 = ssub.s32 %s11, 2
      // Predicated region
      $region49: #{_forward_nchw.2} parent=47 // pred_check
        %p3532 = pneg %p196
      $region50: #{_forward_nchw.2} parent=47 // pred_check_branch
        %3534 = sbr.rel (%p3532) target = $region52
      $region51: #{_forward_nchw.2} parent=47 // pred_region
        %s3535 = smul.u32 16, %s23
        %p3536 = scmp.lt.s32.totalorder %s22, 1
        %s3537 = scalar_select %p3536, %s22, 1
        %p3538 = scmp.lt.s32.totalorder %s3535, 15
        %s3539 = scalar_select %p3538, %s3535, 15
        %s3540 = smul.addr %s3539, 2
        %s3541 = smul.addr %s3537, 32
        %s3542 = sadd.s32 %s3540, %s3541
        %s3543 = smul.addr %s3542, 8
        %s3544 = scalar_lea.vmem %s5, %s3543
      $region52: #{_forward_nchw.2} parent=47 // pred_fallthru
        _
    $region48: #{_forward_nchw.2} parent=5 // pred_fallthru
      _
  $region6: #{_forward_nchw.2} parent=0 // loop_footer
    %s15 = sadd.s32 1, %s11
  $region7: #{_forward_nchw.2} parent=0 // loop_footer_branch
    %10 = sbr.rel target = $region3
  $region8: #{_forward_nchw.2} parent=0 // loop_exit
    _

</llo_original>
